<compile_context>
chip_gen: v7x
topology: tpu7x:2x2x1
jax: 0.10.0
libtpu: 0.0.40
codegen_flags: <defaults>
</compile_context>

<pallas_src>
import functools
import math

import jax
import jax.numpy as jnp
from jax.experimental import pallas as pl
from jax.experimental.pallas import tpu as pltpu

# bf16 storage halves HBM traffic and doubles MXU throughput on v5e/v6e/v7x; all accumulation,
# LayerNorm and softmax math stays f32 inside the kernels.
_STORAGE_DTYPE = jnp.bfloat16
_SUBLANE = 16 if _STORAGE_DTYPE == jnp.bfloat16 else 8


def _default_vmem_limit():
    """Generation-aware scoped-VMEM limit (v7x: 64 MiB/TC, v5e/v6e: 128 MiB)."""
    try:
        cap = pltpu.get_tpu_info().vmem_capacity_bytes
    except Exception:
        cap = 64 * 1024 * 1024
    return int(min(max(cap - 16 * 1024 * 1024, 32 * 1024 * 1024), 112 * 1024 * 1024))


_VMEM_LIMIT = _default_vmem_limit()


# ---------------------------- tiling helpers ----------------------------

def _round_up(v, m):
    return (v + m - 1) // m * m


def _pick_tile(dim, preferred, align):
    """Largest multiple of `align` <= `preferred` that divides `dim`; else `dim` itself."""
    if dim <= preferred:
        return dim
    t = (preferred // align) * align
    while t >= align:
        if dim % t == 0:
            return t
        t -= align
    return dim


def _row_tiling(M, tm_pref):
    """Pick (tm, M_pad): pad the row dim instead of falling back to a full-extent block."""
    tm = tm_pref if M >= tm_pref else _round_up(M, _SUBLANE)
    return tm, _round_up(M, tm)


def _pad_rows(a, m_pad):
    m = a.shape[0]
    if m == m_pad:
        return a
    return jnp.pad(a, ((0, m_pad - m),) + ((0, 0),) * (a.ndim - 1))


# ---------------------------- tiled dense (+bias, +residual/LN) ----------------------------

def _dense_kernel(*refs, k_axis, activation, fuse_ln, eps):
    if fuse_ln:
        x_ref, w_ref, b_ref, r_ref, g_ref, bb_ref, o_ref, acc_ref = refs
    else:
        x_ref, w_ref, b_ref, o_ref, acc_ref = refs

    k = pl.program_id(k_axis)

    @pl.when(k == 0)
    def _():
        acc_ref[...] = jnp.zeros_like(acc_ref)

    acc_ref[...] += jnp.dot(x_ref[...], w_ref[...], preferred_element_type=jnp.float32)

    @pl.when(k == pl.num_programs(k_axis) - 1)
    def _():
        y = acc_ref[...] + b_ref[...].astype(jnp.float32)
        if activation == "gelu":
            # TODO(synk): HF BERT uses exact erf-GELU; tanh approximation used here.
            y = jax.nn.gelu(y, approximate=True)
        if fuse_ln:
            y = y + r_ref[...].astype(jnp.float32)
            mean = jnp.mean(y, axis=-1, keepdims=True)
            var = jnp.mean(jnp.square(y - mean), axis=-1, keepdims=True)
            y = (y - mean) * jax.lax.rsqrt(var + eps)
            y = y * g_ref[...].astype(jnp.float32) + bb_ref[...].astype(jnp.float32)
        o_ref[...] = y.astype(o_ref.dtype)


def dense(x, w, b, *, activation="none", residual=None, gamma=None, beta=None,
          eps=1e-12, tm=512, tn=512, tk=512, out_dtype=None):
    """Tiled (M,K)@(K,N)+b with optional GELU and optional fused residual-add + LayerNorm."""
    M, K = x.shape
    K2, N = w.shape
    assert K == K2
    fuse_ln = residual is not None
    out_dtype = out_dtype or x.dtype

    tm, M_pad = _row_tiling(M, tm)
    tk = _pick_tile(K, tk, 128)
    tn = N if fuse_ln else _pick_tile(N, tn, 128)   # LN needs the full row in one tile
    grid = (M_pad // tm, N // tn, K // tk)

    in_specs = [
        pl.BlockSpec((tm, tk), lambda i, j, k: (i, k)),
        pl.BlockSpec((tk, tn), lambda i, j, k: (k, j)),
        pl.BlockSpec((1, tn), lambda i, j, k: (0, j)),
    ]
    args = [_pad_rows(x, M_pad), w, b.reshape(1, N)]
    if fuse_ln:
        in_specs += [
            pl.BlockSpec((tm, tn), lambda i, j, k: (i, j)),   # residual (once per (i,j))
            pl.BlockSpec((1, tn), lambda i, j, k: (0, j)),    # gamma
            pl.BlockSpec((1, tn), lambda i, j, k: (0, j)),    # beta
        ]
        args += [_pad_rows(residual, M_pad), gamma.reshape(1, N), beta.reshape(1, N)]

    kernel = functools.partial(_dense_kernel, k_axis=2, activation=activation,
                               fuse_ln=fuse_ln, eps=eps)
    out = pl.pallas_call(
        kernel,
        out_shape=jax.ShapeDtypeStruct((M_pad, N), out_dtype),
        grid_spec=pltpu.PrefetchScalarGridSpec(
            num_scalar_prefetch=0,
            grid=grid,
            in_specs=in_specs,
            out_specs=pl.BlockSpec((tm, tn), lambda i, j, k: (i, j)),
            scratch_shapes=[pltpu.VMEM((tm, tn), jnp.float32)],
        ),
        compiler_params=pltpu.CompilerParams(
            dimension_semantics=("parallel", "parallel", "arbitrary"),
            vmem_limit_bytes=_VMEM_LIMIT,
        ),
    )(*args)
    return out if M_pad == M else out[:M]


def dense_qkv(x, w_qkv, b_qkv, *, tm=512, tn=512, tk=512):
    """Fused QKV projection: x:(M,H) @ w_qkv:(3,H,H) + b_qkv:(3,1,H) -> (3,M,H).
    x is read once; the output is already split q/k/v on the leading axis and lane-dense in H,
    so no XLA transpose/slicing is needed before attention."""
    M, H = x.shape
    assert w_qkv.shape == (3, H, H)
    tm, M_pad = _row_tiling(M, tm)
    tk = _pick_tile(H, tk, 128)
    tn = _pick_tile(H, tn, 128)
    grid = (M_pad // tm, 3, H // tn, H // tk)

    kernel = functools.partial(_dense_kernel, k_axis=3, activation="none",
                               fuse_ln=False, eps=0.0)
    out = pl.pallas_call(
        kernel,
        out_shape=jax.ShapeDtypeStruct((3, M_pad, H), x.dtype),
        grid_spec=pltpu.PrefetchScalarGridSpec(
            num_scalar_prefetch=0,
            grid=grid,
            in_specs=[
                pl.BlockSpec((tm, tk), lambda i, s, j, k: (i, k)),
                pl.BlockSpec((None, tk, tn), lambda i, s, j, k: (s, k, j)),
                pl.BlockSpec((None, 1, tn), lambda i, s, j, k: (s, 0, j)),
            ],
            out_specs=pl.BlockSpec((None, tm, tn), lambda i, s, j, k: (s, i, j)),
            scratch_shapes=[pltpu.VMEM((tm, tn), jnp.float32)],
        ),
        compiler_params=pltpu.CompilerParams(
            dimension_semantics=("parallel", "parallel", "parallel", "arbitrary"),
            vmem_limit_bytes=_VMEM_LIMIT,
        ),
    )(_pad_rows(x, M_pad), w_qkv, b_qkv)
    return out if M_pad == M else out[:, :M, :]


# ---------------------------- fused FFN (W1 + GELU + W2 + residual + LN) ----------------------------

def _ffn_kernel(x_ref, w1_ref, b1_ref, w2_ref, b2_ref, r_ref, g_ref, bb_ref,
                o_ref, acc_ref, *, eps):
    l = pl.program_id(1)

    @pl.when(l == 0)
    def _():
        acc_ref[...] = jnp.zeros_like(acc_ref)

    h = jnp.dot(x_ref[...], w1_ref[...], preferred_element_type=jnp.float32)
    h = h + b1_ref[...].astype(jnp.float32)
    # TODO(synk): HF BERT uses exact erf-GELU; tanh approximation used here.
    h = jax.nn.gelu(h, approximate=True)
    acc_ref[...] += jnp.dot(h.astype(w2_ref.dtype), w2_ref[...],
                            preferred_element_type=jnp.float32)

    @pl.when(l == pl.num_programs(1) - 1)
    def _():
        y = acc_ref[...] + b2_ref[...].astype(jnp.float32) + r_ref[...].astype(jnp.float32)
        mean = jnp.mean(y, axis=-1, keepdims=True)
        var = jnp.mean(jnp.square(y - mean), axis=-1, keepdims=True)
        y = (y - mean) * jax.lax.rsqrt(var + eps)
        y = y * g_ref[...].astype(jnp.float32) + bb_ref[...].astype(jnp.float32)
        o_ref[...] = y.astype(o_ref.dtype)


def ffn(x, w1, b1, w2, b2, residual, gamma, beta, *, eps=1e-12, tm=512, ti=512):
    """Fused GELU(x@W1+b1)@W2 + b2 + residual + LayerNorm; the (M, intermediate) activation
    never touches HBM (inner grid loop over intermediate-dim chunks)."""
    M, H = x.shape
    H2, I = w1.shape
    assert H2 == H and w2.shape == (I, H)
    tm, M_pad = _row_tiling(M, tm)
    ti = _pick_tile(I, ti, 128)
    grid = (M_pad // tm, I // ti)

    out = pl.pallas_call(
        functools.partial(_ffn_kernel, eps=eps),
        out_shape=jax.ShapeDtypeStruct((M_pad, H), x.dtype),
        grid_spec=pltpu.PrefetchScalarGridSpec(
            num_scalar_prefetch=0,
            grid=grid,
            in_specs=[
                pl.BlockSpec((tm, H), lambda i, l: (i, 0)),   # x (once per i)
                pl.BlockSpec((H, ti), lambda i, l: (0, l)),   # W1 chunk
                pl.BlockSpec((1, ti), lambda i, l: (0, l)),   # b1 chunk
                pl.BlockSpec((ti, H), lambda i, l: (l, 0)),   # W2 chunk
                pl.BlockSpec((1, H), lambda i, l: (0, 0)),    # b2
                pl.BlockSpec((tm, H), lambda i, l: (i, 0)),   # residual (once per i)
                pl.BlockSpec((1, H), lambda i, l: (0, 0)),    # gamma
                pl.BlockSpec((1, H), lambda i, l: (0, 0)),    # beta
            ],
            out_specs=pl.BlockSpec((tm, H), lambda i, l: (i, 0)),
            scratch_shapes=[pltpu.VMEM((tm, H), jnp.float32)],
        ),
        compiler_params=pltpu.CompilerParams(
            dimension_semantics=("parallel", "arbitrary"),
            vmem_limit_bytes=_VMEM_LIMIT,
        ),
    )(_pad_rows(x, M_pad), w1, b1.reshape(1, I), w2, b2.reshape(1, H),
      _pad_rows(residual, M_pad), gamma.reshape(1, H), beta.reshape(1, H))
    return out if M_pad == M else out[:M]


# ---------------------------- standalone LayerNorm (embeddings) ----------------------------

def _ln_kernel(x_ref, g_ref, b_ref, o_ref, *, eps):
    x = x_ref[...].astype(jnp.float32)
    mean = jnp.mean(x, axis=-1, keepdims=True)
    var = jnp.mean(jnp.square(x - mean), axis=-1, keepdims=True)
    y = (x - mean) * jax.lax.rsqrt(var + eps)
    o_ref[...] = (y * g_ref[...] + b_ref[...]).astype(o_ref.dtype)


def layernorm(x, gamma, beta, *, eps=1e-12, tm=1024, out_dtype=None):
    M, H = x.shape
    out_dtype = out_dtype or x.dtype
    tm, M_pad = _row_tiling(M, tm)
    out = pl.pallas_call(
        functools.partial(_ln_kernel, eps=eps),
        out_shape=jax.ShapeDtypeStruct((M_pad, H), out_dtype),
        grid_spec=pltpu.PrefetchScalarGridSpec(
            num_scalar_prefetch=0,
            grid=(M_pad // tm,),
            in_specs=[pl.BlockSpec((tm, H), lambda i: (i, 0)),
                      pl.BlockSpec((1, H), lambda i: (0, 0)),
                      pl.BlockSpec((1, H), lambda i: (0, 0))],
            out_specs=pl.BlockSpec((tm, H), lambda i: (i, 0)),
        ),
        compiler_params=pltpu.CompilerParams(
            dimension_semantics=("parallel",),
            vmem_limit_bytes=_VMEM_LIMIT,
        ),
    )(_pad_rows(x, M_pad), gamma.reshape(1, H), beta.reshape(1, H))
    return out if M_pad == M else out[:M]


# ---------------------------- attention (full-S K/V, heads sliced in-kernel) ----------------------------

def _attn_kernel(q_ref, k_ref, v_ref, m_ref, o_ref, *, scale, nh, dh):
    addm = m_ref[...].astype(jnp.float32)          # (1, S) additive mask, bcast over queries
    for h in range(nh):                            # static unroll (nh is small)
        sl = slice(h * dh, (h + 1) * dh)
        q = q_ref[:, sl]                           # (tq, dh)
        k = k_ref[:, sl]                           # (S, dh)
        v = v_ref[:, sl]                           # (S, dh)
        s = jax.lax.dot_general(q, k, (((1,), (1,)), ((), ())),
                                preferred_element_type=jnp.float32) * scale   # (tq, S)
        s = s + addm
        m = jnp.max(s, axis=-1, keepdims=True)
        p = jnp.exp(s - m)
        l = jnp.sum(p, axis=-1, keepdims=True)
        ctx = jnp.dot(p.astype(v.dtype), v, preferred_element_type=jnp.float32)
        o_ref[:, sl] = (ctx * pl.reciprocal(l, approx=True)).astype(o_ref.dtype)


def attention(qkv, addmask, *, B, S, H, nh, scale, tq=256):
    """qkv: (3, B*S, H) from dense_qkv; addmask: (B, 1, S) additive mask.
    K/V blocks span the full sequence (BERT S <= 512 -> a few hundred KiB in bf16), so there is
    no kv grid axis and no online-softmax carry.  Output is (B*S, H), lane-dense, with no XLA
    head transposes on either side."""
    dh = H // nh
    qkv4 = qkv.reshape(3, B, S, H)
    tq = _pick_tile(S, tq, _SUBLANE)
    grid = (B, S // tq)
    out = pl.pallas_call(
        functools.partial(_attn_kernel, scale=scale, nh=nh, dh=dh),
        out_shape=jax.ShapeDtypeStruct((B, S, H), qkv.dtype),
        grid_spec=pltpu.PrefetchScalarGridSpec(
            num_scalar_prefetch=0,
            grid=grid,
            in_specs=[
                pl.BlockSpec((None, None, tq, H), lambda b, qi: (0, b, qi, 0)),  # Q tile
                pl.BlockSpec((None, None, S, H), lambda b, qi: (1, b, 0, 0)),    # K (full S)
                pl.BlockSpec((None, None, S, H), lambda b, qi: (2, b, 0, 0)),    # V (full S)
                pl.BlockSpec((None, 1, S), lambda b, qi: (b, 0, 0)),             # mask per batch
            ],
            out_specs=pl.BlockSpec((None, tq, H), lambda b, qi: (b, qi, 0)),
        ),
        compiler_params=pltpu.CompilerParams(
            dimension_semantics=("parallel", "parallel"),
            vmem_limit_bytes=_VMEM_LIMIT,
        ),
    )(qkv4, qkv4, qkv4, addmask)
    return out.reshape(B * S, H)


# ---------------------------- parameters ----------------------------

def init_params(key, cfg):
    H = cfg["hidden_size"]
    I = cfg["intermediate_size"]
    std = 0.02

    def nrm(k, shape):
        return std * jax.random.normal(k, shape, jnp.float32)

    keys = iter(jax.random.split(key, 16 + 16 * cfg["num_layers"]))
    params = {
        "embeddings": {
            "token": nrm(next(keys), (cfg["vocab_size"], H)),
            "position": nrm(next(keys), (cfg["max_position_embeddings"], H)),
            "token_type": nrm(next(keys), (cfg["type_vocab_size"], H)),
            "ln_g": jnp.ones((H,), jnp.float32),
            "ln_b": jnp.zeros((H,), jnp.float32),
        },
        "layers": [],
        "sentiment_W": nrm(next(keys), (H, 2)),
        "sentiment_b": jnp.zeros((2,), jnp.float32),
        "star_W": nrm(next(keys), (H, 1)),
        "star_b": jnp.zeros((1,), jnp.float32),
    }
    for _ in range(cfg["num_layers"]):
        params["layers"].append({
            "Wq": nrm(next(keys), (H, H)), "bq": jnp.zeros((H,), jnp.float32),
            "Wk": nrm(next(keys), (H, H)), "bk": jnp.zeros((H,), jnp.float32),
            "Wv": nrm(next(keys), (H, H)), "bv": jnp.zeros((H,), jnp.float32),
            "Wo": nrm(next(keys), (H, H)), "bo": jnp.zeros((H,), jnp.float32),
            "ln1_g": jnp.ones((H,), jnp.float32), "ln1_b": jnp.zeros((H,), jnp.float32),
            "W1": nrm(next(keys), (H, I)), "b1": jnp.zeros((I,), jnp.float32),
            "W2": nrm(next(keys), (I, H)), "b2": jnp.zeros((H,), jnp.float32),
            "ln2_g": jnp.ones((H,), jnp.float32), "ln2_b": jnp.zeros((H,), jnp.float32),
        })
    return params


def prepare_params(params, cfg):
    """One-time weight prep (outside the forward hot loop): stacked (3,H,H) QKV weight,
    bf16 storage for matmul weights / embedding tables, lane-dense padded classifier heads."""
    H = cfg["hidden_size"]
    dt = _STORAGE_DTYPE
    emb = params["embeddings"]
    prep = {
        "embeddings": {
            "token": emb["token"].astype(dt),
            "position": emb["position"].astype(dt),
            "token_type": emb["token_type"].astype(dt),
            "ln_g": emb["ln_g"], "ln_b": emb["ln_b"],
        },
        "layers": [],
    }
    for layer in params["layers"]:
        prep["layers"].append({
            "W_qkv": jnp.stack([layer["Wq"], layer["Wk"], layer["Wv"]]).astype(dt),  # (3,H,H)
            "b_qkv": jnp.stack([layer["bq"], layer["bk"], layer["bv"]]).reshape(3, 1, H),
            "Wo": layer["Wo"].astype(dt), "bo": layer["bo"],
            "ln1_g": layer["ln1_g"], "ln1_b": layer["ln1_b"],
            "W1": layer["W1"].astype(dt), "b1": layer["b1"],
            "W2": layer["W2"].astype(dt), "b2": layer["b2"],
            "ln2_g": layer["ln2_g"], "ln2_b": layer["ln2_b"],
        })
    head_pad = 128
    W_heads = jnp.zeros((H, head_pad), jnp.float32)
    W_heads = W_heads.at[:, 0:2].set(params["sentiment_W"])
    W_heads = W_heads.at[:, 2:3].set(params["star_W"])
    b_heads = jnp.zeros((head_pad,), jnp.float32)
    b_heads = b_heads.at[0:2].set(params["sentiment_b"])
    b_heads = b_heads.at[2:3].set(params["star_b"])
    prep["W_heads"] = W_heads.astype(dt)
    prep["b_heads"] = b_heads
    return prep


# ---------------------------- forward ----------------------------

def bert_classifier_forward(prep, input_ids, one_zero_attention_mask, token_type_ids, *, cfg):
    B, S = input_ids.shape
    H = cfg["hidden_size"]
    nh = cfg["num_heads"]
    dh = H // nh

    if one_zero_attention_mask is None:
        one_zero_attention_mask = jnp.ones((B, S), jnp.float32)
    if token_type_ids is None:
        token_type_ids = jnp.zeros((B, S), jnp.int32)

    emb = prep["embeddings"]
    # embedding gathers are XLA glue (data-dependent); summed in f32, LayerNormed in Pallas
    x3 = (emb["token"][input_ids].astype(jnp.float32)
          + emb["position"][:S][None, :, :].astype(jnp.float32)
          + emb["token_type"][token_type_ids].astype(jnp.float32))
    x = layernorm(x3.reshape(B * S, H), emb["ln_g"], emb["ln_b"], out_dtype=_STORAGE_DTYPE)

    # additive attention mask (HF convention), kept at (B, 1, S)
    addmask = ((1.0 - one_zero_attention_mask.astype(jnp.float32)) * -10000.0).reshape(B, 1, S)
    scale = 1.0 / math.sqrt(dh)

    for layer in prep["layers"]:
        x_res = x                                                   # (B*S, H)
        qkv = dense_qkv(x, layer["W_qkv"], layer["b_qkv"])          # (3, B*S, H), x read once
        ctx = attention(qkv, addmask, B=B, S=S, H=H, nh=nh, scale=scale)   # (B*S, H)
        # output projection with fused residual-add + LayerNorm epilogue
        x = dense(ctx, layer["Wo"], layer["bo"],
                  residual=x_res, gamma=layer["ln1_g"], beta=layer["ln1_b"])
        # fully fused FFN: GELU(x@W1+b1)@W2 + b2 + residual + LayerNorm
        x = ffn(x, layer["W1"], layer["b1"], layer["W2"], layer["b2"],
                residual=x, gamma=layer["ln2_g"], beta=layer["ln2_b"])

    cls = x.reshape(B, S, H)[:, 0, :]                                # (B, H) — CLS token
    # dropout: identity at inference
    heads = dense(cls, prep["W_heads"], prep["b_heads"], out_dtype=jnp.float32)   # (B, 128)
    sentiment = heads[:, :2]
    star = 5.0 + 5.0 * heads[:, 2:3]                                 # matches 5 + 5*star_fc(x)
    return {"sentiment": sentiment, "star": star}


# ---------------------------- demo ----------------------------

if __name__ == "__main__":
    cfg = dict(
        vocab_size=128,
        hidden_size=32,
        intermediate_size=128,
        num_heads=4,
        num_layers=2,
        max_position_embeddings=64,
        type_vocab_size=2,
        dropout=0.1,   # unused at inference
    )
    B, S = 2, 8

    key = jax.random.PRNGKey(0)
    pkey, ikey, tkey = jax.random.split(key, 3)
    params = init_params(pkey, cfg)
    prep = prepare_params(params, cfg)

    input_ids = jax.random.randint(ikey, (B, S), 0, cfg["vocab_size"], dtype=jnp.int32)
    one_zero_attention_mask = jnp.ones((B, S), jnp.float32).at[1, -2:].set(0.0)
    token_type_ids = jax.random.randint(tkey, (B, S), 0, cfg["type_vocab_size"], dtype=jnp.int32)

    fwd = jax.jit(functools.partial(bert_classifier_forward, cfg=cfg))
    out = fwd(prep, input_ids, one_zero_attention_mask, token_type_ids)
    jax.block_until_ready(out)

    assert out["sentiment"].shape == (B, 2)
    assert out["star"].shape == (B, 1)
    assert bool(jnp.all(jnp.isfinite(out["sentiment"]))) and bool(jnp.all(jnp.isfinite(out["star"])))
    print("KERNEL_OK")
</pallas_src>

<mosaic_0001>
module attributes {stable_mosaic.version = 11 : i64} {
  func.func @_ln_kernel(%arg0: i32, %arg1: memref<16x32xf32, #tpu.memory_space<vmem>>, %arg2: memref<1x32xf32, #tpu.memory_space<vmem>>, %arg3: memref<1x32xf32, #tpu.memory_space<vmem>>, %arg4: memref<16x32xbf16, #tpu.memory_space<vmem>>) attributes {dimension_semantics = [#tpu.dimension_semantics<parallel>], iteration_bounds = array<i64: 1>, scalar_prefetch = 0 : i64, scratch_operands = 0 : i64, tpu.core_type = #tpu.core_type<tc>, window_params = [{transform_indices = @transform_0, window_bounds = array<i64: 16, 32>}, {pipeline_mode = #tpu.pipeline_mode<synchronous>, transform_indices = @transform_1, window_bounds = array<i64: 1, 32>}, {pipeline_mode = #tpu.pipeline_mode<synchronous>, transform_indices = @transform_2, window_bounds = array<i64: 1, 32>}, {transform_indices = @transform_3, window_bounds = array<i64: 16, 32>}]} {
    %c0 = arith.constant 0 : index
    %c0_0 = arith.constant 0 : index
    %0 = vector.load %arg1[%c0, %c0_0] : memref<16x32xf32, #tpu.memory_space<vmem>>, vector<16x32xf32>
    %cst = arith.constant dense<0.000000e+00> : vector<16xf32>
    %1 = vector.multi_reduction <add>, %0, %cst [1] : vector<16x32xf32> to vector<16xf32>
    %2 = vector.shape_cast %1 : vector<16xf32> to vector<16x1xf32>
    %cst_1 = arith.constant 3.200000e+01 : f32
    %3 = vector.broadcast %cst_1 : f32 to vector<16x1xf32>
    %4 = arith.divf %2, %3 : vector<16x1xf32>
    %5 = vector.broadcast %4 : vector<16x1xf32> to vector<16x32xf32>
    %6 = arith.subf %0, %5 : vector<16x32xf32>
    %7 = arith.mulf %6, %6 : vector<16x32xf32>
    %cst_2 = arith.constant dense<0.000000e+00> : vector<16xf32>
    %8 = vector.multi_reduction <add>, %7, %cst_2 [1] : vector<16x32xf32> to vector<16xf32>
    %9 = vector.shape_cast %8 : vector<16xf32> to vector<16x1xf32>
    %cst_3 = arith.constant 3.200000e+01 : f32
    %10 = vector.broadcast %cst_3 : f32 to vector<16x1xf32>
    %11 = arith.divf %9, %10 : vector<16x1xf32>
    %12 = vector.broadcast %4 : vector<16x1xf32> to vector<16x32xf32>
    %13 = arith.subf %0, %12 : vector<16x32xf32>
    %cst_4 = arith.constant 9.99999996E-13 : f32
    %14 = vector.broadcast %cst_4 : f32 to vector<16x1xf32>
    %15 = arith.addf %11, %14 : vector<16x1xf32>
    %16 = math.rsqrt %15 : vector<16x1xf32>
    %17 = vector.broadcast %16 : vector<16x1xf32> to vector<16x32xf32>
    %18 = arith.mulf %13, %17 : vector<16x32xf32>
    %c0_5 = arith.constant 0 : index
    %c0_6 = arith.constant 0 : index
    %19 = vector.load %arg2[%c0_5, %c0_6] : memref<1x32xf32, #tpu.memory_space<vmem>>, vector<1x32xf32>
    %20 = vector.broadcast %19 : vector<1x32xf32> to vector<16x32xf32>
    %21 = arith.mulf %18, %20 : vector<16x32xf32>
    %c0_7 = arith.constant 0 : index
    %c0_8 = arith.constant 0 : index
    %22 = vector.load %arg3[%c0_7, %c0_8] : memref<1x32xf32, #tpu.memory_space<vmem>>, vector<1x32xf32>
    %23 = vector.broadcast %22 : vector<1x32xf32> to vector<16x32xf32>
    %24 = arith.addf %21, %23 : vector<16x32xf32>
    %25 = arith.truncf %24 : vector<16x32xf32> to vector<16x32xbf16>
    %c0_9 = arith.constant 0 : index
    %c0_10 = arith.constant 0 : index
    %26 = vector.load %arg4[%c0_9, %c0_10] : memref<16x32xbf16, #tpu.memory_space<vmem>>, vector<16x32xbf16>
    tpu.vector_store %arg4[%c0_9, %c0_10], %25 {strides = array<i32>} : memref<16x32xbf16, #tpu.memory_space<vmem>>, vector<16x32xbf16>,
    return
  }
  func.func @transform_0(%arg0: i32) -> (i32, i32) {
    %c0_i32 = arith.constant 0 : i32
    %c0_i32_0 = arith.constant 0 : i32
    return %arg0, %c0_i32 : i32, i32
  }
  func.func @transform_1(%arg0: i32) -> (i32, i32) {
    %c0_i32 = arith.constant 0 : i32
    %c0_i32_0 = arith.constant 0 : i32
    %c0_i32_1 = arith.constant 0 : i32
    return %c0_i32, %c0_i32_0 : i32, i32
  }
  func.func @transform_2(%arg0: i32) -> (i32, i32) {
    %c0_i32 = arith.constant 0 : i32
    %c0_i32_0 = arith.constant 0 : i32
    %c0_i32_1 = arith.constant 0 : i32
    return %c0_i32, %c0_i32_0 : i32, i32
  }
  func.func @transform_3(%arg0: i32) -> (i32, i32) {
    %c0_i32 = arith.constant 0 : i32
    %c0_i32_0 = arith.constant 0 : i32
    return %arg0, %c0_i32 : i32, i32
  }
}

module attributes {stable_mosaic.version = 11 : i64} {
  func.func @_dense_kernel(%arg0: i32, %arg1: i32, %arg2: i32, %arg3: memref<16x32xbf16, #tpu.memory_space<vmem>>, %arg4: memref<32x32xbf16, #tpu.memory_space<vmem>>, %arg5: memref<1x32xf32, #tpu.memory_space<vmem>>, %arg6: memref<16x32xbf16, #tpu.memory_space<vmem>>, %arg7: memref<1x32xf32, #tpu.memory_space<vmem>>, %arg8: memref<1x32xf32, #tpu.memory_space<vmem>>, %arg9: memref<16x32xbf16, #tpu.memory_space<vmem>>, %arg10: memref<16x32xf32, #tpu.memory_space<vmem>>) attributes {dimension_semantics = [#tpu.dimension_semantics<parallel>, #tpu.dimension_semantics<parallel>, #tpu.dimension_semantics<arbitrary>], iteration_bounds = array<i64: 1, 1, 1>, scalar_prefetch = 0 : i64, scratch_operands = 1 : i64, tpu.core_type = #tpu.core_type<tc>, window_params = [{transform_indices = @transform_0, window_bounds = array<i64: 16, 32>}, {transform_indices = @transform_1, window_bounds = array<i64: 32, 32>}, {transform_indices = @transform_2, window_bounds = array<i64: 1, 32>}, {transform_indices = @transform_3, window_bounds = array<i64: 16, 32>}, {transform_indices = @transform_4, window_bounds = array<i64: 1, 32>}, {transform_indices = @transform_5, window_bounds = array<i64: 1, 32>}, {transform_indices = @transform_6, window_bounds = array<i64: 16, 32>}]} {
    %c0_i32 = arith.constant 0 : i32
    %0 = arith.cmpi eq, %arg2, %c0_i32 : i32
    %1 = arith.extui %0 : i1 to i32
    %c0_i32_0 = arith.constant 0 : i32
    %2 = arith.cmpi ne, %1, %c0_i32_0 : i32
    scf.if %2 {
      %cst_10 = arith.constant 0.000000e+00 : f32
      %12 = vector.broadcast %cst_10 : f32 to vector<16x32xf32>
      %c0_11 = arith.constant 0 : index
      %c0_12 = arith.constant 0 : index
      %13 = vector.load %arg10[%c0_11, %c0_12] : memref<16x32xf32, #tpu.memory_space<vmem>>, vector<16x32xf32>
      tpu.vector_store %arg10[%c0_11, %c0_12], %12 {strides = array<i32>} : memref<16x32xf32, #tpu.memory_space<vmem>>, vector<16x32xf32>,
    } else {
    }
    %c0 = arith.constant 0 : index
    %c0_1 = arith.constant 0 : index
    %3 = vector.load %arg10[%c0, %c0_1] : memref<16x32xf32, #tpu.memory_space<vmem>>, vector<16x32xf32>
    %c0_2 = arith.constant 0 : index
    %c0_3 = arith.constant 0 : index
    %4 = vector.load %arg3[%c0_2, %c0_3] : memref<16x32xbf16, #tpu.memory_space<vmem>>, vector<16x32xbf16>
    %c0_4 = arith.constant 0 : index
    %c0_5 = arith.constant 0 : index
    %5 = vector.load %arg4[%c0_4, %c0_5] : memref<32x32xbf16, #tpu.memory_space<vmem>>, vector<32x32xbf16>
    %cst = arith.constant dense<0.000000e+00> : vector<16x32xf32>
    %6 = tpu.matmul %4, %5, %cst {dimension_numbers = #tpu.dot_dimension_numbers<[1], [0], [0], [1], [0, 0, 1, 1], [], []>} : vector<16x32xbf16>, vector<32x32xbf16>, vector<16x32xf32> -> vector<16x32xf32>
    %7 = arith.addf %3, %6 : vector<16x32xf32>
    %c0_6 = arith.constant 0 : index
    %c0_7 = arith.constant 0 : index
    %8 = vector.load %arg10[%c0_6, %c0_7] : memref<16x32xf32, #tpu.memory_space<vmem>>, vector<16x32xf32>
    tpu.vector_store %arg10[%c0_6, %c0_7], %7 {strides = array<i32>} : memref<16x32xf32, #tpu.memory_space<vmem>>, vector<16x32xf32>,
    %c0_i32_8 = arith.constant 0 : i32
    %9 = arith.cmpi eq, %arg2, %c0_i32_8 : i32
    %10 = arith.extui %9 : i1 to i32
    %c0_i32_9 = arith.constant 0 : i32
    %11 = arith.cmpi ne, %10, %c0_i32_9 : i32
    scf.if %11 {
      %c0_10 = arith.constant 0 : index
      %c0_11 = arith.constant 0 : index
      %12 = vector.load %arg10[%c0_10, %c0_11] : memref<16x32xf32, #tpu.memory_space<vmem>>, vector<16x32xf32>
      %c0_12 = arith.constant 0 : index
      %c0_13 = arith.constant 0 : index
      %13 = vector.load %arg5[%c0_12, %c0_13] : memref<1x32xf32, #tpu.memory_space<vmem>>, vector<1x32xf32>
      %14 = vector.broadcast %13 : vector<1x32xf32> to vector<16x32xf32>
      %15 = arith.addf %12, %14 : vector<16x32xf32>
      %c0_14 = arith.constant 0 : index
      %c0_15 = arith.constant 0 : index
      %16 = vector.load %arg6[%c0_14, %c0_15] : memref<16x32xbf16, #tpu.memory_space<vmem>>, vector<16x32xbf16>
      %17 = arith.extf %16 : vector<16x32xbf16> to vector<16x32xf32>
      %18 = arith.addf %15, %17 : vector<16x32xf32>
      %cst_16 = arith.constant dense<0.000000e+00> : vector<16xf32>
      %19 = vector.multi_reduction <add>, %18, %cst_16 [1] : vector<16x32xf32> to vector<16xf32>
      %20 = vector.shape_cast %19 : vector<16xf32> to vector<16x1xf32>
      %cst_17 = arith.constant 3.200000e+01 : f32
      %21 = vector.broadcast %cst_17 : f32 to vector<16x1xf32>
      %22 = arith.divf %20, %21 : vector<16x1xf32>
      %23 = vector.broadcast %22 : vector<16x1xf32> to vector<16x32xf32>
      %24 = arith.subf %18, %23 : vector<16x32xf32>
      %25 = arith.mulf %24, %24 : vector<16x32xf32>
      %cst_18 = arith.constant dense<0.000000e+00> : vector<16xf32>
      %26 = vector.multi_reduction <add>, %25, %cst_18 [1] : vector<16x32xf32> to vector<16xf32>
      %27 = vector.shape_cast %26 : vector<16xf32> to vector<16x1xf32>
      %cst_19 = arith.constant 3.200000e+01 : f32
      %28 = vector.broadcast %cst_19 : f32 to vector<16x1xf32>
      %29 = arith.divf %27, %28 : vector<16x1xf32>
      %30 = vector.broadcast %22 : vector<16x1xf32> to vector<16x32xf32>
      %31 = arith.subf %18, %30 : vector<16x32xf32>
      %cst_20 = arith.constant 9.99999996E-13 : f32
      %32 = vector.broadcast %cst_20 : f32 to vector<16x1xf32>
      %33 = arith.addf %29, %32 : vector<16x1xf32>
      %34 = math.rsqrt %33 : vector<16x1xf32>
      %35 = vector.broadcast %34 : vector<16x1xf32> to vector<16x32xf32>
      %36 = arith.mulf %31, %35 : vector<16x32xf32>
      %c0_21 = arith.constant 0 : index
      %c0_22 = arith.constant 0 : index
      %37 = vector.load %arg7[%c0_21, %c0_22] : memref<1x32xf32, #tpu.memory_space<vmem>>, vector<1x32xf32>
      %38 = vector.broadcast %37 : vector<1x32xf32> to vector<16x32xf32>
      %39 = arith.mulf %36, %38 : vector<16x32xf32>
      %c0_23 = arith.constant 0 : index
      %c0_24 = arith.constant 0 : index
      %40 = vector.load %arg8[%c0_23, %c0_24] : memref<1x32xf32, #tpu.memory_space<vmem>>, vector<1x32xf32>
      %41 = vector.broadcast %40 : vector<1x32xf32> to vector<16x32xf32>
      %42 = arith.addf %39, %41 : vector<16x32xf32>
      %43 = arith.truncf %42 : vector<16x32xf32> to vector<16x32xbf16>
      %c0_25 = arith.constant 0 : index
      %c0_26 = arith.constant 0 : index
      %44 = vector.load %arg9[%c0_25, %c0_26] : memref<16x32xbf16, #tpu.memory_space<vmem>>, vector<16x32xbf16>
      tpu.vector_store %arg9[%c0_25, %c0_26], %43 {strides = array<i32>} : memref<16x32xbf16, #tpu.memory_space<vmem>>, vector<16x32xbf16>,
    } else {
    }
    return
  }
  func.func @transform_0(%arg0: i32, %arg1: i32, %arg2: i32) -> (i32, i32) {
    %c0_i32 = arith.constant 0 : i32
    return %arg0, %arg2 : i32, i32
  }
  func.func @transform_1(%arg0: i32, %arg1: i32, %arg2: i32) -> (i32, i32) {
    %c0_i32 = arith.constant 0 : i32
    return %arg2, %arg1 : i32, i32
  }
  func.func @transform_2(%arg0: i32, %arg1: i32, %arg2: i32) -> (i32, i32) {
    %c0_i32 = arith.constant 0 : i32
    %c0_i32_0 = arith.constant 0 : i32
    return %c0_i32, %arg1 : i32, i32
  }
  func.func @transform_3(%arg0: i32, %arg1: i32, %arg2: i32) -> (i32, i32) {
    %c0_i32 = arith.constant 0 : i32
    return %arg0, %arg1 : i32, i32
  }
  func.func @transform_4(%arg0: i32, %arg1: i32, %arg2: i32) -> (i32, i32) {
    %c0_i32 = arith.constant 0 : i32
    %c0_i32_0 = arith.constant 0 : i32
    return %c0_i32, %arg1 : i32, i32
  }
  func.func @transform_5(%arg0: i32, %arg1: i32, %arg2: i32) -> (i32, i32) {
    %c0_i32 = arith.constant 0 : i32
    %c0_i32_0 = arith.constant 0 : i32
    return %c0_i32, %arg1 : i32, i32
  }
  func.func @transform_6(%arg0: i32, %arg1: i32, %arg2: i32) -> (i32, i32) {
    %c0_i32 = arith.constant 0 : i32
    return %arg0, %arg1 : i32, i32
  }
}

module attributes {stable_mosaic.version = 11 : i64} {
  func.func @_attn_kernel(%arg0: i32, %arg1: i32, %arg2: memref<1x1x8x32xbf16, #tpu.memory_space<vmem>>, %arg3: memref<1x1x8x32xbf16, #tpu.memory_space<vmem>>, %arg4: memref<1x1x8x32xbf16, #tpu.memory_space<vmem>>, %arg5: memref<1x1x8xf32, #tpu.memory_space<vmem>>, %arg6: memref<1x8x32xbf16, #tpu.memory_space<vmem>>) attributes {dimension_semantics = [#tpu.dimension_semantics<parallel>, #tpu.dimension_semantics<parallel>], iteration_bounds = array<i64: 2, 1>, scalar_prefetch = 0 : i64, scratch_operands = 0 : i64, tpu.core_type = #tpu.core_type<tc>, window_params = [{transform_indices = @transform_0, window_bounds = array<i64: 1, 1, 8, 32>}, {transform_indices = @transform_1, window_bounds = array<i64: 1, 1, 8, 32>}, {transform_indices = @transform_2, window_bounds = array<i64: 1, 1, 8, 32>}, {transform_indices = @transform_3, window_bounds = array<i64: 1, 1, 8>}, {transform_indices = @transform_4, window_bounds = array<i64: 1, 8, 32>}]} {
    %c0 = arith.constant 0 : index
    %c0_0 = arith.constant 0 : index
    %c0_1 = arith.constant 0 : index
    %0 = vector.load %arg5[%c0, %c0_0, %c0_1] : memref<1x1x8xf32, #tpu.memory_space<vmem>>, vector<1x1x8xf32>
    %1 = vector.shape_cast %0 : vector<1x1x8xf32> to vector<1x8xf32>
    %c0_2 = arith.constant 0 : index
    %c0_3 = arith.constant 0 : index
    %c0_4 = arith.constant 0 : index
    %c0_5 = arith.constant 0 : index
    %2 = vector.load %arg2[%c0_2, %c0_3, %c0_4, %c0_5] : memref<1x1x8x32xbf16, #tpu.memory_space<vmem>>, vector<1x1x8x8xbf16>
    %3 = vector.shape_cast %2 : vector<1x1x8x8xbf16> to vector<8x8xbf16>
    %c0_6 = arith.constant 0 : index
    %c0_7 = arith.constant 0 : index
    %c0_8 = arith.constant 0 : index
    %c0_9 = arith.constant 0 : index
    %4 = vector.load %arg3[%c0_6, %c0_7, %c0_8, %c0_9] : memref<1x1x8x32xbf16, #tpu.memory_space<vmem>>, vector<1x1x8x8xbf16>
    %5 = vector.shape_cast %4 : vector<1x1x8x8xbf16> to vector<8x8xbf16>
    %c0_10 = arith.constant 0 : index
    %c0_11 = arith.constant 0 : index
    %c0_12 = arith.constant 0 : index
    %c0_13 = arith.constant 0 : index
    %6 = vector.load %arg4[%c0_10, %c0_11, %c0_12, %c0_13] : memref<1x1x8x32xbf16, #tpu.memory_space<vmem>>, vector<1x1x8x8xbf16>
    %7 = vector.shape_cast %6 : vector<1x1x8x8xbf16> to vector<8x8xbf16>
    %cst = arith.constant dense<0.000000e+00> : vector<8x8xf32>
    %8 = tpu.matmul %3, %5, %cst {dimension_numbers = #tpu.dot_dimension_numbers<[1], [1], [0], [0], [0, 0, 1, 0], [], []>} : vector<8x8xbf16>, vector<8x8xbf16>, vector<8x8xf32> -> vector<8x8xf32>
    %cst_14 = arith.constant 0.353553385 : f32
    %9 = vector.broadcast %cst_14 : f32 to vector<8x8xf32>
    %10 = arith.mulf %8, %9 : vector<8x8xf32>
    %11 = vector.broadcast %1 : vector<1x8xf32> to vector<8x8xf32>
    %12 = arith.addf %10, %11 : vector<8x8xf32>
    %cst_15 = arith.constant dense<0xFF800000> : vector<8xf32>
    %13 = vector.multi_reduction <maximumf>, %12, %cst_15 [1] : vector<8x8xf32> to vector<8xf32>
    %14 = vector.shape_cast %13 : vector<8xf32> to vector<8x1xf32>
    %15 = vector.broadcast %14 : vector<8x1xf32> to vector<8x8xf32>
    %16 = arith.subf %12, %15 : vector<8x8xf32>
    %17 = math.exp %16 : vector<8x8xf32>
    %cst_16 = arith.constant dense<0.000000e+00> : vector<8xf32>
    %18 = vector.multi_reduction <add>, %17, %cst_16 [1] : vector<8x8xf32> to vector<8xf32>
    %19 = vector.shape_cast %18 : vector<8xf32> to vector<8x1xf32>
    %20 = arith.truncf %17 : vector<8x8xf32> to vector<8x8xbf16>
    %cst_17 = arith.constant dense<0.000000e+00> : vector<8x8xf32>
    %21 = tpu.matmul %20, %7, %cst_17 {dimension_numbers = #tpu.dot_dimension_numbers<[1], [0], [0], [1], [0, 0, 1, 1], [], []>} : vector<8x8xbf16>, vector<8x8xbf16>, vector<8x8xf32> -> vector<8x8xf32>
    %22 = tpu.reciprocal %19 {approx = true} : vector<8x1xf32> -> vector<8x1xf32>
    %23 = vector.broadcast %22 : vector<8x1xf32> to vector<8x8xf32>
    %24 = arith.mulf %21, %23 : vector<8x8xf32>
    %25 = arith.truncf %24 : vector<8x8xf32> to vector<8x8xbf16>
    %c0_18 = arith.constant 0 : index
    %c0_19 = arith.constant 0 : index
    %c0_20 = arith.constant 0 : index
    %26 = vector.load %arg6[%c0_18, %c0_19, %c0_20] : memref<1x8x32xbf16, #tpu.memory_space<vmem>>, vector<1x8x8xbf16>
    %27 = vector.shape_cast %26 : vector<1x8x8xbf16> to vector<8x8xbf16>
    %28 = vector.shape_cast %25 : vector<8x8xbf16> to vector<1x8x8xbf16>
    tpu.vector_store %arg6[%c0_18, %c0_19, %c0_20], %28 {strides = array<i32>} : memref<1x8x32xbf16, #tpu.memory_space<vmem>>, vector<1x8x8xbf16>,
    %c0_21 = arith.constant 0 : index
    %c0_22 = arith.constant 0 : index
    %c0_23 = arith.constant 0 : index
    %c8 = arith.constant 8 : index
    %29 = vector.load %arg2[%c0_21, %c0_22, %c0_23, %c8] : memref<1x1x8x32xbf16, #tpu.memory_space<vmem>>, vector<1x1x8x8xbf16>
    %30 = vector.shape_cast %29 : vector<1x1x8x8xbf16> to vector<8x8xbf16>
    %c0_24 = arith.constant 0 : index
    %c0_25 = arith.constant 0 : index
    %c0_26 = arith.constant 0 : index
    %c8_27 = arith.constant 8 : index
    %31 = vector.load %arg3[%c0_24, %c0_25, %c0_26, %c8_27] : memref<1x1x8x32xbf16, #tpu.memory_space<vmem>>, vector<1x1x8x8xbf16>
    %32 = vector.shape_cast %31 : vector<1x1x8x8xbf16> to vector<8x8xbf16>
    %c0_28 = arith.constant 0 : index
    %c0_29 = arith.constant 0 : index
    %c0_30 = arith.constant 0 : index
    %c8_31 = arith.constant 8 : index
    %33 = vector.load %arg4[%c0_28, %c0_29, %c0_30, %c8_31] : memref<1x1x8x32xbf16, #tpu.memory_space<vmem>>, vector<1x1x8x8xbf16>
    %34 = vector.shape_cast %33 : vector<1x1x8x8xbf16> to vector<8x8xbf16>
    %cst_32 = arith.constant dense<0.000000e+00> : vector<8x8xf32>
    %35 = tpu.matmul %30, %32, %cst_32 {dimension_numbers = #tpu.dot_dimension_numbers<[1], [1], [0], [0], [0, 0, 1, 0], [], []>} : vector<8x8xbf16>, vector<8x8xbf16>, vector<8x8xf32> -> vector<8x8xf32>
    %cst_33 = arith.constant 0.353553385 : f32
    %36 = vector.broadcast %cst_33 : f32 to vector<8x8xf32>
    %37 = arith.mulf %35, %36 : vector<8x8xf32>
    %38 = vector.broadcast %1 : vector<1x8xf32> to vector<8x8xf32>
    %39 = arith.addf %37, %38 : vector<8x8xf32>
    %cst_34 = arith.constant dense<0xFF800000> : vector<8xf32>
    %40 = vector.multi_reduction <maximumf>, %39, %cst_34 [1] : vector<8x8xf32> to vector<8xf32>
    %41 = vector.shape_cast %40 : vector<8xf32> to vector<8x1xf32>
    %42 = vector.broadcast %41 : vector<8x1xf32> to vector<8x8xf32>
    %43 = arith.subf %39, %42 : vector<8x8xf32>
    %44 = math.exp %43 : vector<8x8xf32>
    %cst_35 = arith.constant dense<0.000000e+00> : vector<8xf32>
    %45 = vector.multi_reduction <add>, %44, %cst_35 [1] : vector<8x8xf32> to vector<8xf32>
    %46 = vector.shape_cast %45 : vector<8xf32> to vector<8x1xf32>
    %47 = arith.truncf %44 : vector<8x8xf32> to vector<8x8xbf16>
    %cst_36 = arith.constant dense<0.000000e+00> : vector<8x8xf32>
    %48 = tpu.matmul %47, %34, %cst_36 {dimension_numbers = #tpu.dot_dimension_numbers<[1], [0], [0], [1], [0, 0, 1, 1], [], []>} : vector<8x8xbf16>, vector<8x8xbf16>, vector<8x8xf32> -> vector<8x8xf32>
    %49 = tpu.reciprocal %46 {approx = true} : vector<8x1xf32> -> vector<8x1xf32>
    %50 = vector.broadcast %49 : vector<8x1xf32> to vector<8x8xf32>
    %51 = arith.mulf %48, %50 : vector<8x8xf32>
    %52 = arith.truncf %51 : vector<8x8xf32> to vector<8x8xbf16>
    %c0_37 = arith.constant 0 : index
    %c0_38 = arith.constant 0 : index
    %c8_39 = arith.constant 8 : index
    %53 = vector.load %arg6[%c0_37, %c0_38, %c8_39] : memref<1x8x32xbf16, #tpu.memory_space<vmem>>, vector<1x8x8xbf16>
    %54 = vector.shape_cast %53 : vector<1x8x8xbf16> to vector<8x8xbf16>
    %55 = vector.shape_cast %52 : vector<8x8xbf16> to vector<1x8x8xbf16>
    tpu.vector_store %arg6[%c0_37, %c0_38, %c8_39], %55 {strides = array<i32>} : memref<1x8x32xbf16, #tpu.memory_space<vmem>>, vector<1x8x8xbf16>,
    %c0_40 = arith.constant 0 : index
    %c0_41 = arith.constant 0 : index
    %c0_42 = arith.constant 0 : index
    %c16 = arith.constant 16 : index
    %56 = vector.load %arg2[%c0_40, %c0_41, %c0_42, %c16] : memref<1x1x8x32xbf16, #tpu.memory_space<vmem>>, vector<1x1x8x8xbf16>
    %57 = vector.shape_cast %56 : vector<1x1x8x8xbf16> to vector<8x8xbf16>
    %c0_43 = arith.constant 0 : index
    %c0_44 = arith.constant 0 : index
    %c0_45 = arith.constant 0 : index
    %c16_46 = arith.constant 16 : index
    %58 = vector.load %arg3[%c0_43, %c0_44, %c0_45, %c16_46] : memref<1x1x8x32xbf16, #tpu.memory_space<vmem>>, vector<1x1x8x8xbf16>
    %59 = vector.shape_cast %58 : vector<1x1x8x8xbf16> to vector<8x8xbf16>
    %c0_47 = arith.constant 0 : index
    %c0_48 = arith.constant 0 : index
    %c0_49 = arith.constant 0 : index
    %c16_50 = arith.constant 16 : index
    %60 = vector.load %arg4[%c0_47, %c0_48, %c0_49, %c16_50] : memref<1x1x8x32xbf16, #tpu.memory_space<vmem>>, vector<1x1x8x8xbf16>
    %61 = vector.shape_cast %60 : vector<1x1x8x8xbf16> to vector<8x8xbf16>
    %cst_51 = arith.constant dense<0.000000e+00> : vector<8x8xf32>
    %62 = tpu.matmul %57, %59, %cst_51 {dimension_numbers = #tpu.dot_dimension_numbers<[1], [1], [0], [0], [0, 0, 1, 0], [], []>} : vector<8x8xbf16>, vector<8x8xbf16>, vector<8x8xf32> -> vector<8x8xf32>
    %cst_52 = arith.constant 0.353553385 : f32
    %63 = vector.broadcast %cst_52 : f32 to vector<8x8xf32>
    %64 = arith.mulf %62, %63 : vector<8x8xf32>
    %65 = vector.broadcast %1 : vector<1x8xf32> to vector<8x8xf32>
    %66 = arith.addf %64, %65 : vector<8x8xf32>
    %cst_53 = arith.constant dense<0xFF800000> : vector<8xf32>
    %67 = vector.multi_reduction <maximumf>, %66, %cst_53 [1] : vector<8x8xf32> to vector<8xf32>
    %68 = vector.shape_cast %67 : vector<8xf32> to vector<8x1xf32>
    %69 = vector.broadcast %68 : vector<8x1xf32> to vector<8x8xf32>
    %70 = arith.subf %66, %69 : vector<8x8xf32>
    %71 = math.exp %70 : vector<8x8xf32>
    %cst_54 = arith.constant dense<0.000000e+00> : vector<8xf32>
    %72 = vector.multi_reduction <add>, %71, %cst_54 [1] : vector<8x8xf32> to vector<8xf32>
    %73 = vector.shape_cast %72 : vector<8xf32> to vector<8x1xf32>
    %74 = arith.truncf %71 : vector<8x8xf32> to vector<8x8xbf16>
    %cst_55 = arith.constant dense<0.000000e+00> : vector<8x8xf32>
    %75 = tpu.matmul %74, %61, %cst_55 {dimension_numbers = #tpu.dot_dimension_numbers<[1], [0], [0], [1], [0, 0, 1, 1], [], []>} : vector<8x8xbf16>, vector<8x8xbf16>, vector<8x8xf32> -> vector<8x8xf32>
    %76 = tpu.reciprocal %73 {approx = true} : vector<8x1xf32> -> vector<8x1xf32>
    %77 = vector.broadcast %76 : vector<8x1xf32> to vector<8x8xf32>
    %78 = arith.mulf %75, %77 : vector<8x8xf32>
    %79 = arith.truncf %78 : vector<8x8xf32> to vector<8x8xbf16>
    %c0_56 = arith.constant 0 : index
    %c0_57 = arith.constant 0 : index
    %c16_58 = arith.constant 16 : index
    %80 = vector.load %arg6[%c0_56, %c0_57, %c16_58] : memref<1x8x32xbf16, #tpu.memory_space<vmem>>, vector<1x8x8xbf16>
    %81 = vector.shape_cast %80 : vector<1x8x8xbf16> to vector<8x8xbf16>
    %82 = vector.shape_cast %79 : vector<8x8xbf16> to vector<1x8x8xbf16>
    tpu.vector_store %arg6[%c0_56, %c0_57, %c16_58], %82 {strides = array<i32>} : memref<1x8x32xbf16, #tpu.memory_space<vmem>>, vector<1x8x8xbf16>,
    %c0_59 = arith.constant 0 : index
    %c0_60 = arith.constant 0 : index
    %c0_61 = arith.constant 0 : index
    %c24 = arith.constant 24 : index
    %83 = vector.load %arg2[%c0_59, %c0_60, %c0_61, %c24] : memref<1x1x8x32xbf16, #tpu.memory_space<vmem>>, vector<1x1x8x8xbf16>
    %84 = vector.shape_cast %83 : vector<1x1x8x8xbf16> to vector<8x8xbf16>
    %c0_62 = arith.constant 0 : index
    %c0_63 = arith.constant 0 : index
    %c0_64 = arith.constant 0 : index
    %c24_65 = arith.constant 24 : index
    %85 = vector.load %arg3[%c0_62, %c0_63, %c0_64, %c24_65] : memref<1x1x8x32xbf16, #tpu.memory_space<vmem>>, vector<1x1x8x8xbf16>
    %86 = vector.shape_cast %85 : vector<1x1x8x8xbf16> to vector<8x8xbf16>
    %c0_66 = arith.constant 0 : index
    %c0_67 = arith.constant 0 : index
    %c0_68 = arith.constant 0 : index
    %c24_69 = arith.constant 24 : index
    %87 = vector.load %arg4[%c0_66, %c0_67, %c0_68, %c24_69] : memref<1x1x8x32xbf16, #tpu.memory_space<vmem>>, vector<1x1x8x8xbf16>
    %88 = vector.shape_cast %87 : vector<1x1x8x8xbf16> to vector<8x8xbf16>
    %cst_70 = arith.constant dense<0.000000e+00> : vector<8x8xf32>
    %89 = tpu.matmul %84, %86, %cst_70 {dimension_numbers = #tpu.dot_dimension_numbers<[1], [1], [0], [0], [0, 0, 1, 0], [], []>} : vector<8x8xbf16>, vector<8x8xbf16>, vector<8x8xf32> -> vector<8x8xf32>
    %cst_71 = arith.constant 0.353553385 : f32
    %90 = vector.broadcast %cst_71 : f32 to vector<8x8xf32>
    %91 = arith.mulf %89, %90 : vector<8x8xf32>
    %92 = vector.broadcast %1 : vector<1x8xf32> to vector<8x8xf32>
    %93 = arith.addf %91, %92 : vector<8x8xf32>
    %cst_72 = arith.constant dense<0xFF800000> : vector<8xf32>
    %94 = vector.multi_reduction <maximumf>, %93, %cst_72 [1] : vector<8x8xf32> to vector<8xf32>
    %95 = vector.shape_cast %94 : vector<8xf32> to vector<8x1xf32>
    %96 = vector.broadcast %95 : vector<8x1xf32> to vector<8x8xf32>
    %97 = arith.subf %93, %96 : vector<8x8xf32>
    %98 = math.exp %97 : vector<8x8xf32>
    %cst_73 = arith.constant dense<0.000000e+00> : vector<8xf32>
    %99 = vector.multi_reduction <add>, %98, %cst_73 [1] : vector<8x8xf32> to vector<8xf32>
    %100 = vector.shape_cast %99 : vector<8xf32> to vector<8x1xf32>
    %101 = arith.truncf %98 : vector<8x8xf32> to vector<8x8xbf16>
    %cst_74 = arith.constant dense<0.000000e+00> : vector<8x8xf32>
    %102 = tpu.matmul %101, %88, %cst_74 {dimension_numbers = #tpu.dot_dimension_numbers<[1], [0], [0], [1], [0, 0, 1, 1], [], []>} : vector<8x8xbf16>, vector<8x8xbf16>, vector<8x8xf32> -> vector<8x8xf32>
    %103 = tpu.reciprocal %100 {approx = true} : vector<8x1xf32> -> vector<8x1xf32>
    %104 = vector.broadcast %103 : vector<8x1xf32> to vector<8x8xf32>
    %105 = arith.mulf %102, %104 : vector<8x8xf32>
    %106 = arith.truncf %105 : vector<8x8xf32> to vector<8x8xbf16>
    %c0_75 = arith.constant 0 : index
    %c0_76 = arith.constant 0 : index
    %c24_77 = arith.constant 24 : index
    %107 = vector.load %arg6[%c0_75, %c0_76, %c24_77] : memref<1x8x32xbf16, #tpu.memory_space<vmem>>, vector<1x8x8xbf16>
    %108 = vector.shape_cast %107 : vector<1x8x8xbf16> to vector<8x8xbf16>
    %109 = vector.shape_cast %106 : vector<8x8xbf16> to vector<1x8x8xbf16>
    tpu.vector_store %arg6[%c0_75, %c0_76, %c24_77], %109 {strides = array<i32>} : memref<1x8x32xbf16, #tpu.memory_space<vmem>>, vector<1x8x8xbf16>,
    return
  }
  func.func @transform_0(%arg0: i32, %arg1: i32) -> (i32, i32, i32, i32) {
    %c0_i32 = arith.constant 0 : i32
    %c0_i32_0 = arith.constant 0 : i32
    %c0_i32_1 = arith.constant 0 : i32
    return %c0_i32, %arg0, %arg1, %c0_i32_0 : i32, i32, i32, i32
  }
  func.func @transform_1(%arg0: i32, %arg1: i32) -> (i32, i32, i32, i32) {
    %c1_i32 = arith.constant 1 : i32
    %c0_i32 = arith.constant 0 : i32
    %c0_i32_0 = arith.constant 0 : i32
    %c0_i32_1 = arith.constant 0 : i32
    return %c1_i32, %arg0, %c0_i32, %c0_i32_0 : i32, i32, i32, i32
  }
  func.func @transform_2(%arg0: i32, %arg1: i32) -> (i32, i32, i32, i32) {
    %c2_i32 = arith.constant 2 : i32
    %c0_i32 = arith.constant 0 : i32
    %c0_i32_0 = arith.constant 0 : i32
    %c0_i32_1 = arith.constant 0 : i32
    return %c2_i32, %arg0, %c0_i32, %c0_i32_0 : i32, i32, i32, i32
  }
  func.func @transform_3(%arg0: i32, %arg1: i32) -> (i32, i32, i32) {
    %c0_i32 = arith.constant 0 : i32
    %c0_i32_0 = arith.constant 0 : i32
    %c0_i32_1 = arith.constant 0 : i32
    return %arg0, %c0_i32, %c0_i32_0 : i32, i32, i32
  }
  func.func @transform_4(%arg0: i32, %arg1: i32) -> (i32, i32, i32) {
    %c0_i32 = arith.constant 0 : i32
    %c0_i32_0 = arith.constant 0 : i32
    return %arg0, %arg1, %c0_i32 : i32, i32, i32
  }
}

module attributes {stable_mosaic.version = 11 : i64} {
  func.func @_dense_kernel(%arg0: i32, %arg1: i32, %arg2: i32, %arg3: i32, %arg4: memref<16x32xbf16, #tpu.memory_space<vmem>>, %arg5: memref<1x32x32xbf16, #tpu.memory_space<vmem>>, %arg6: memref<1x1x32xf32, #tpu.memory_space<vmem>>, %arg7: memref<1x16x32xbf16, #tpu.memory_space<vmem>>, %arg8: memref<16x32xf32, #tpu.memory_space<vmem>>) attributes {dimension_semantics = [#tpu.dimension_semantics<parallel>, #tpu.dimension_semantics<parallel>, #tpu.dimension_semantics<parallel>, #tpu.dimension_semantics<arbitrary>], iteration_bounds = array<i64: 1, 3, 1, 1>, scalar_prefetch = 0 : i64, scratch_operands = 1 : i64, tpu.core_type = #tpu.core_type<tc>, window_params = [{transform_indices = @transform_0, window_bounds = array<i64: 16, 32>}, {transform_indices = @transform_1, window_bounds = array<i64: 1, 32, 32>}, {transform_indices = @transform_2, window_bounds = array<i64: 1, 1, 32>}, {transform_indices = @transform_3, window_bounds = array<i64: 1, 16, 32>}]} {
    %c0_i32 = arith.constant 0 : i32
    %0 = arith.cmpi eq, %arg3, %c0_i32 : i32
    %1 = arith.extui %0 : i1 to i32
    %c0_i32_0 = arith.constant 0 : i32
    %2 = arith.cmpi ne, %1, %c0_i32_0 : i32
    scf.if %2 {
      %cst_11 = arith.constant 0.000000e+00 : f32
      %13 = vector.broadcast %cst_11 : f32 to vector<16x32xf32>
      %c0_12 = arith.constant 0 : index
      %c0_13 = arith.constant 0 : index
      %14 = vector.load %arg8[%c0_12, %c0_13] : memref<16x32xf32, #tpu.memory_space<vmem>>, vector<16x32xf32>
      tpu.vector_store %arg8[%c0_12, %c0_13], %13 {strides = array<i32>} : memref<16x32xf32, #tpu.memory_space<vmem>>, vector<16x32xf32>,
    } else {
    }
    %c0 = arith.constant 0 : index
    %c0_1 = arith.constant 0 : index
    %3 = vector.load %arg8[%c0, %c0_1] : memref<16x32xf32, #tpu.memory_space<vmem>>, vector<16x32xf32>
    %c0_2 = arith.constant 0 : index
    %c0_3 = arith.constant 0 : index
    %4 = vector.load %arg4[%c0_2, %c0_3] : memref<16x32xbf16, #tpu.memory_space<vmem>>, vector<16x32xbf16>
    %c0_4 = arith.constant 0 : index
    %c0_5 = arith.constant 0 : index
    %c0_6 = arith.constant 0 : index
    %5 = vector.load %arg5[%c0_4, %c0_5, %c0_6] : memref<1x32x32xbf16, #tpu.memory_space<vmem>>, vector<1x32x32xbf16>
    %6 = vector.shape_cast %5 : vector<1x32x32xbf16> to vector<32x32xbf16>
    %cst = arith.constant dense<0.000000e+00> : vector<16x32xf32>
    %7 = tpu.matmul %4, %6, %cst {dimension_numbers = #tpu.dot_dimension_numbers<[1], [0], [0], [1], [0, 0, 1, 1], [], []>} : vector<16x32xbf16>, vector<32x32xbf16>, vector<16x32xf32> -> vector<16x32xf32>
    %8 = arith.addf %3, %7 : vector<16x32xf32>
    %c0_7 = arith.constant 0 : index
    %c0_8 = arith.constant 0 : index
    %9 = vector.load %arg8[%c0_7, %c0_8] : memref<16x32xf32, #tpu.memory_space<vmem>>, vector<16x32xf32>
    tpu.vector_store %arg8[%c0_7, %c0_8], %8 {strides = array<i32>} : memref<16x32xf32, #tpu.memory_space<vmem>>, vector<16x32xf32>,
    %c0_i32_9 = arith.constant 0 : i32
    %10 = arith.cmpi eq, %arg3, %c0_i32_9 : i32
    %11 = arith.extui %10 : i1 to i32
    %c0_i32_10 = arith.constant 0 : i32
    %12 = arith.cmpi ne, %11, %c0_i32_10 : i32
    scf.if %12 {
      %c0_11 = arith.constant 0 : index
      %c0_12 = arith.constant 0 : index
      %13 = vector.load %arg8[%c0_11, %c0_12] : memref<16x32xf32, #tpu.memory_space<vmem>>, vector<16x32xf32>
      %c0_13 = arith.constant 0 : index
      %c0_14 = arith.constant 0 : index
      %c0_15 = arith.constant 0 : index
      %14 = vector.load %arg6[%c0_13, %c0_14, %c0_15] : memref<1x1x32xf32, #tpu.memory_space<vmem>>, vector<1x1x32xf32>
      %15 = vector.shape_cast %14 : vector<1x1x32xf32> to vector<1x32xf32>
      %16 = vector.broadcast %15 : vector<1x32xf32> to vector<16x32xf32>
      %17 = arith.addf %13, %16 : vector<16x32xf32>
      %18 = arith.truncf %17 : vector<16x32xf32> to vector<16x32xbf16>
      %c0_16 = arith.constant 0 : index
      %c0_17 = arith.constant 0 : index
      %c0_18 = arith.constant 0 : index
      %19 = vector.load %arg7[%c0_16, %c0_17, %c0_18] : memref<1x16x32xbf16, #tpu.memory_space<vmem>>, vector<1x16x32xbf16>
      %20 = vector.shape_cast %19 : vector<1x16x32xbf16> to vector<16x32xbf16>
      %21 = vector.shape_cast %18 : vector<16x32xbf16> to vector<1x16x32xbf16>
      tpu.vector_store %arg7[%c0_16, %c0_17, %c0_18], %21 {strides = array<i32>} : memref<1x16x32xbf16, #tpu.memory_space<vmem>>, vector<1x16x32xbf16>,
    } else {
    }
    return
  }
  func.func @transform_0(%arg0: i32, %arg1: i32, %arg2: i32, %arg3: i32) -> (i32, i32) {
    %c0_i32 = arith.constant 0 : i32
    return %arg0, %arg3 : i32, i32
  }
  func.func @transform_1(%arg0: i32, %arg1: i32, %arg2: i32, %arg3: i32) -> (i32, i32, i32) {
    %c0_i32 = arith.constant 0 : i32
    return %arg1, %arg3, %arg2 : i32, i32, i32
  }
  func.func @transform_2(%arg0: i32, %arg1: i32, %arg2: i32, %arg3: i32) -> (i32, i32, i32) {
    %c0_i32 = arith.constant 0 : i32
    %c0_i32_0 = arith.constant 0 : i32
    return %arg1, %c0_i32, %arg2 : i32, i32, i32
  }
  func.func @transform_3(%arg0: i32, %arg1: i32, %arg2: i32, %arg3: i32) -> (i32, i32, i32) {
    %c0_i32 = arith.constant 0 : i32
    return %arg1, %arg0, %arg2 : i32, i32, i32
  }
}

module attributes {stable_mosaic.version = 11 : i64} {
  func.func @_ffn_kernel(%arg0: i32, %arg1: i32, %arg2: memref<16x32xbf16, #tpu.memory_space<vmem>>, %arg3: memref<32x128xbf16, #tpu.memory_space<vmem>>, %arg4: memref<1x128xf32, #tpu.memory_space<vmem>>, %arg5: memref<128x32xbf16, #tpu.memory_space<vmem>>, %arg6: memref<1x32xf32, #tpu.memory_space<vmem>>, %arg7: memref<16x32xbf16, #tpu.memory_space<vmem>>, %arg8: memref<1x32xf32, #tpu.memory_space<vmem>>, %arg9: memref<1x32xf32, #tpu.memory_space<vmem>>, %arg10: memref<16x32xbf16, #tpu.memory_space<vmem>>, %arg11: memref<16x32xf32, #tpu.memory_space<vmem>>) attributes {dimension_semantics = [#tpu.dimension_semantics<parallel>, #tpu.dimension_semantics<arbitrary>], iteration_bounds = array<i64: 1, 1>, scalar_prefetch = 0 : i64, scratch_operands = 1 : i64, tpu.core_type = #tpu.core_type<tc>, window_params = [{transform_indices = @transform_0, window_bounds = array<i64: 16, 32>}, {transform_indices = @transform_1, window_bounds = array<i64: 32, 128>}, {transform_indices = @transform_2, window_bounds = array<i64: 1, 128>}, {transform_indices = @transform_3, window_bounds = array<i64: 128, 32>}, {pipeline_mode = #tpu.pipeline_mode<synchronous>, transform_indices = @transform_4, window_bounds = array<i64: 1, 32>}, {transform_indices = @transform_5, window_bounds = array<i64: 16, 32>}, {pipeline_mode = #tpu.pipeline_mode<synchronous>, transform_indices = @transform_6, window_bounds = array<i64: 1, 32>}, {pipeline_mode = #tpu.pipeline_mode<synchronous>, transform_indices = @transform_7, window_bounds = array<i64: 1, 32>}, {transform_indices = @transform_8, window_bounds = array<i64: 16, 32>}]} {
    %c0_i32 = arith.constant 0 : i32
    %0 = arith.cmpi eq, %arg1, %c0_i32 : i32
    %1 = arith.extui %0 : i1 to i32
    %c0_i32_0 = arith.constant 0 : i32
    %2 = arith.cmpi ne, %1, %c0_i32_0 : i32
    scf.if %2 {
      %cst_19 = arith.constant 0.000000e+00 : f32
      %31 = vector.broadcast %cst_19 : f32 to vector<16x32xf32>
      %c0_20 = arith.constant 0 : index
      %c0_21 = arith.constant 0 : index
      %32 = vector.load %arg11[%c0_20, %c0_21] : memref<16x32xf32, #tpu.memory_space<vmem>>, vector<16x32xf32>
      tpu.vector_store %arg11[%c0_20, %c0_21], %31 {strides = array<i32>} : memref<16x32xf32, #tpu.memory_space<vmem>>, vector<16x32xf32>,
    } else {
    }
    %c0 = arith.constant 0 : index
    %c0_1 = arith.constant 0 : index
    %3 = vector.load %arg2[%c0, %c0_1] : memref<16x32xbf16, #tpu.memory_space<vmem>>, vector<16x32xbf16>
    %c0_2 = arith.constant 0 : index
    %c0_3 = arith.constant 0 : index
    %4 = vector.load %arg3[%c0_2, %c0_3] : memref<32x128xbf16, #tpu.memory_space<vmem>>, vector<32x128xbf16>
    %cst = arith.constant dense<0.000000e+00> : vector<16x128xf32>
    %5 = tpu.matmul %3, %4, %cst {dimension_numbers = #tpu.dot_dimension_numbers<[1], [0], [0], [1], [0, 0, 1, 1], [], []>} : vector<16x32xbf16>, vector<32x128xbf16>, vector<16x128xf32> -> vector<16x128xf32>
    %c0_4 = arith.constant 0 : index
    %c0_5 = arith.constant 0 : index
    %6 = vector.load %arg4[%c0_4, %c0_5] : memref<1x128xf32, #tpu.memory_space<vmem>>, vector<1x128xf32>
    %7 = vector.broadcast %6 : vector<1x128xf32> to vector<16x128xf32>
    %8 = arith.addf %5, %7 : vector<16x128xf32>
    %9 = arith.mulf %8, %8 : vector<16x128xf32>
    %10 = arith.mulf %8, %9 : vector<16x128xf32>
    %cst_6 = arith.constant 4.471500e-02 : f32
    %11 = vector.broadcast %cst_6 : f32 to vector<16x128xf32>
    %12 = arith.mulf %11, %10 : vector<16x128xf32>
    %13 = arith.addf %8, %12 : vector<16x128xf32>
    %cst_7 = arith.constant 0.797884583 : f32
    %14 = vector.broadcast %cst_7 : f32 to vector<16x128xf32>
    %15 = arith.mulf %14, %13 : vector<16x128xf32>
    %16 = math.tanh %15 : vector<16x128xf32>
    %cst_8 = arith.constant 1.000000e+00 : f32
    %17 = vector.broadcast %cst_8 : f32 to vector<16x128xf32>
    %18 = arith.addf %17, %16 : vector<16x128xf32>
    %cst_9 = arith.constant 5.000000e-01 : f32
    %19 = vector.broadcast %cst_9 : f32 to vector<16x128xf32>
    %20 = arith.mulf %19, %18 : vector<16x128xf32>
    %21 = arith.mulf %8, %20 : vector<16x128xf32>
    %c0_10 = arith.constant 0 : index
    %c0_11 = arith.constant 0 : index
    %22 = vector.load %arg11[%c0_10, %c0_11] : memref<16x32xf32, #tpu.memory_space<vmem>>, vector<16x32xf32>
    %23 = arith.truncf %21 : vector<16x128xf32> to vector<16x128xbf16>
    %c0_12 = arith.constant 0 : index
    %c0_13 = arith.constant 0 : index
    %24 = vector.load %arg5[%c0_12, %c0_13] : memref<128x32xbf16, #tpu.memory_space<vmem>>, vector<128x32xbf16>
    %cst_14 = arith.constant dense<0.000000e+00> : vector<16x32xf32>
    %25 = tpu.matmul %23, %24, %cst_14 {dimension_numbers = #tpu.dot_dimension_numbers<[1], [0], [0], [1], [0, 0, 1, 1], [], []>} : vector<16x128xbf16>, vector<128x32xbf16>, vector<16x32xf32> -> vector<16x32xf32>
    %26 = arith.addf %22, %25 : vector<16x32xf32>
    %c0_15 = arith.constant 0 : index
    %c0_16 = arith.constant 0 : index
    %27 = vector.load %arg11[%c0_15, %c0_16] : memref<16x32xf32, #tpu.memory_space<vmem>>, vector<16x32xf32>
    tpu.vector_store %arg11[%c0_15, %c0_16], %26 {strides = array<i32>} : memref<16x32xf32, #tpu.memory_space<vmem>>, vector<16x32xf32>,
    %c0_i32_17 = arith.constant 0 : i32
    %28 = arith.cmpi eq, %arg1, %c0_i32_17 : i32
    %29 = arith.extui %28 : i1 to i32
    %c0_i32_18 = arith.constant 0 : i32
    %30 = arith.cmpi ne, %29, %c0_i32_18 : i32
    scf.if %30 {
      %c0_19 = arith.constant 0 : index
      %c0_20 = arith.constant 0 : index
      %31 = vector.load %arg11[%c0_19, %c0_20] : memref<16x32xf32, #tpu.memory_space<vmem>>, vector<16x32xf32>
      %c0_21 = arith.constant 0 : index
      %c0_22 = arith.constant 0 : index
      %32 = vector.load %arg6[%c0_21, %c0_22] : memref<1x32xf32, #tpu.memory_space<vmem>>, vector<1x32xf32>
      %33 = vector.broadcast %32 : vector<1x32xf32> to vector<16x32xf32>
      %34 = arith.addf %31, %33 : vector<16x32xf32>
      %c0_23 = arith.constant 0 : index
      %c0_24 = arith.constant 0 : index
      %35 = vector.load %arg7[%c0_23, %c0_24] : memref<16x32xbf16, #tpu.memory_space<vmem>>, vector<16x32xbf16>
      %36 = arith.extf %35 : vector<16x32xbf16> to vector<16x32xf32>
      %37 = arith.addf %34, %36 : vector<16x32xf32>
      %cst_25 = arith.constant dense<0.000000e+00> : vector<16xf32>
      %38 = vector.multi_reduction <add>, %37, %cst_25 [1] : vector<16x32xf32> to vector<16xf32>
      %39 = vector.shape_cast %38 : vector<16xf32> to vector<16x1xf32>
      %cst_26 = arith.constant 3.200000e+01 : f32
      %40 = vector.broadcast %cst_26 : f32 to vector<16x1xf32>
      %41 = arith.divf %39, %40 : vector<16x1xf32>
      %42 = vector.broadcast %41 : vector<16x1xf32> to vector<16x32xf32>
      %43 = arith.subf %37, %42 : vector<16x32xf32>
      %44 = arith.mulf %43, %43 : vector<16x32xf32>
      %cst_27 = arith.constant dense<0.000000e+00> : vector<16xf32>
      %45 = vector.multi_reduction <add>, %44, %cst_27 [1] : vector<16x32xf32> to vector<16xf32>
      %46 = vector.shape_cast %45 : vector<16xf32> to vector<16x1xf32>
      %cst_28 = arith.constant 3.200000e+01 : f32
      %47 = vector.broadcast %cst_28 : f32 to vector<16x1xf32>
      %48 = arith.divf %46, %47 : vector<16x1xf32>
      %49 = vector.broadcast %41 : vector<16x1xf32> to vector<16x32xf32>
      %50 = arith.subf %37, %49 : vector<16x32xf32>
      %cst_29 = arith.constant 9.99999996E-13 : f32
      %51 = vector.broadcast %cst_29 : f32 to vector<16x1xf32>
      %52 = arith.addf %48, %51 : vector<16x1xf32>
      %53 = math.rsqrt %52 : vector<16x1xf32>
      %54 = vector.broadcast %53 : vector<16x1xf32> to vector<16x32xf32>
      %55 = arith.mulf %50, %54 : vector<16x32xf32>
      %c0_30 = arith.constant 0 : index
      %c0_31 = arith.constant 0 : index
      %56 = vector.load %arg8[%c0_30, %c0_31] : memref<1x32xf32, #tpu.memory_space<vmem>>, vector<1x32xf32>
      %57 = vector.broadcast %56 : vector<1x32xf32> to vector<16x32xf32>
      %58 = arith.mulf %55, %57 : vector<16x32xf32>
      %c0_32 = arith.constant 0 : index
      %c0_33 = arith.constant 0 : index
      %59 = vector.load %arg9[%c0_32, %c0_33] : memref<1x32xf32, #tpu.memory_space<vmem>>, vector<1x32xf32>
      %60 = vector.broadcast %59 : vector<1x32xf32> to vector<16x32xf32>
      %61 = arith.addf %58, %60 : vector<16x32xf32>
      %62 = arith.truncf %61 : vector<16x32xf32> to vector<16x32xbf16>
      %c0_34 = arith.constant 0 : index
      %c0_35 = arith.constant 0 : index
      %63 = vector.load %arg10[%c0_34, %c0_35] : memref<16x32xbf16, #tpu.memory_space<vmem>>, vector<16x32xbf16>
      tpu.vector_store %arg10[%c0_34, %c0_35], %62 {strides = array<i32>} : memref<16x32xbf16, #tpu.memory_space<vmem>>, vector<16x32xbf16>,
    } else {
    }
    return
  }
  func.func @transform_0(%arg0: i32, %arg1: i32) -> (i32, i32) {
    %c0_i32 = arith.constant 0 : i32
    %c0_i32_0 = arith.constant 0 : i32
    return %arg0, %c0_i32 : i32, i32
  }
  func.func @transform_1(%arg0: i32, %arg1: i32) -> (i32, i32) {
    %c0_i32 = arith.constant 0 : i32
    %c0_i32_0 = arith.constant 0 : i32
    return %c0_i32, %arg1 : i32, i32
  }
  func.func @transform_2(%arg0: i32, %arg1: i32) -> (i32, i32) {
    %c0_i32 = arith.constant 0 : i32
    %c0_i32_0 = arith.constant 0 : i32
    return %c0_i32, %arg1 : i32, i32
  }
  func.func @transform_3(%arg0: i32, %arg1: i32) -> (i32, i32) {
    %c0_i32 = arith.constant 0 : i32
    %c0_i32_0 = arith.constant 0 : i32
    return %arg1, %c0_i32 : i32, i32
  }
  func.func @transform_4(%arg0: i32, %arg1: i32) -> (i32, i32) {
    %c0_i32 = arith.constant 0 : i32
    %c0_i32_0 = arith.constant 0 : i32
    %c0_i32_1 = arith.constant 0 : i32
    return %c0_i32, %c0_i32_0 : i32, i32
  }
  func.func @transform_5(%arg0: i32, %arg1: i32) -> (i32, i32) {
    %c0_i32 = arith.constant 0 : i32
    %c0_i32_0 = arith.constant 0 : i32
    return %arg0, %c0_i32 : i32, i32
  }
  func.func @transform_6(%arg0: i32, %arg1: i32) -> (i32, i32) {
    %c0_i32 = arith.constant 0 : i32
    %c0_i32_0 = arith.constant 0 : i32
    %c0_i32_1 = arith.constant 0 : i32
    return %c0_i32, %c0_i32_0 : i32, i32
  }
  func.func @transform_7(%arg0: i32, %arg1: i32) -> (i32, i32) {
    %c0_i32 = arith.constant 0 : i32
    %c0_i32_0 = arith.constant 0 : i32
    %c0_i32_1 = arith.constant 0 : i32
    return %c0_i32, %c0_i32_0 : i32, i32
  }
  func.func @transform_8(%arg0: i32, %arg1: i32) -> (i32, i32) {
    %c0_i32 = arith.constant 0 : i32
    %c0_i32_0 = arith.constant 0 : i32
    return %arg0, %c0_i32 : i32, i32
  }
}

module attributes {stable_mosaic.version = 11 : i64} {
  func.func @_dense_kernel(%arg0: i32, %arg1: i32, %arg2: i32, %arg3: memref<16x32xbf16, #tpu.memory_space<vmem>>, %arg4: memref<32x128xbf16, #tpu.memory_space<vmem>>, %arg5: memref<1x128xf32, #tpu.memory_space<vmem>>, %arg6: memref<16x128xf32, #tpu.memory_space<vmem>>, %arg7: memref<16x128xf32, #tpu.memory_space<vmem>>) attributes {dimension_semantics = [#tpu.dimension_semantics<parallel>, #tpu.dimension_semantics<parallel>, #tpu.dimension_semantics<arbitrary>], iteration_bounds = array<i64: 1, 1, 1>, scalar_prefetch = 0 : i64, scratch_operands = 1 : i64, tpu.core_type = #tpu.core_type<tc>, window_params = [{transform_indices = @transform_0, window_bounds = array<i64: 16, 32>}, {transform_indices = @transform_1, window_bounds = array<i64: 32, 128>}, {transform_indices = @transform_2, window_bounds = array<i64: 1, 128>}, {transform_indices = @transform_3, window_bounds = array<i64: 16, 128>}]} {
    %c0_i32 = arith.constant 0 : i32
    %0 = arith.cmpi eq, %arg2, %c0_i32 : i32
    %1 = arith.extui %0 : i1 to i32
    %c0_i32_0 = arith.constant 0 : i32
    %2 = arith.cmpi ne, %1, %c0_i32_0 : i32
    scf.if %2 {
      %cst_10 = arith.constant 0.000000e+00 : f32
      %12 = vector.broadcast %cst_10 : f32 to vector<16x128xf32>
      %c0_11 = arith.constant 0 : index
      %c0_12 = arith.constant 0 : index
      %13 = vector.load %arg7[%c0_11, %c0_12] : memref<16x128xf32, #tpu.memory_space<vmem>>, vector<16x128xf32>
      tpu.vector_store %arg7[%c0_11, %c0_12], %12 {strides = array<i32>} : memref<16x128xf32, #tpu.memory_space<vmem>>, vector<16x128xf32>,
    } else {
    }
    %c0 = arith.constant 0 : index
    %c0_1 = arith.constant 0 : index
    %3 = vector.load %arg7[%c0, %c0_1] : memref<16x128xf32, #tpu.memory_space<vmem>>, vector<16x128xf32>
    %c0_2 = arith.constant 0 : index
    %c0_3 = arith.constant 0 : index
    %4 = vector.load %arg3[%c0_2, %c0_3] : memref<16x32xbf16, #tpu.memory_space<vmem>>, vector<16x32xbf16>
    %c0_4 = arith.constant 0 : index
    %c0_5 = arith.constant 0 : index
    %5 = vector.load %arg4[%c0_4, %c0_5] : memref<32x128xbf16, #tpu.memory_space<vmem>>, vector<32x128xbf16>
    %cst = arith.constant dense<0.000000e+00> : vector<16x128xf32>
    %6 = tpu.matmul %4, %5, %cst {dimension_numbers = #tpu.dot_dimension_numbers<[1], [0], [0], [1], [0, 0, 1, 1], [], []>} : vector<16x32xbf16>, vector<32x128xbf16>, vector<16x128xf32> -> vector<16x128xf32>
    %7 = arith.addf %3, %6 : vector<16x128xf32>
    %c0_6 = arith.constant 0 : index
    %c0_7 = arith.constant 0 : index
    %8 = vector.load %arg7[%c0_6, %c0_7] : memref<16x128xf32, #tpu.memory_space<vmem>>, vector<16x128xf32>
    tpu.vector_store %arg7[%c0_6, %c0_7], %7 {strides = array<i32>} : memref<16x128xf32, #tpu.memory_space<vmem>>, vector<16x128xf32>,
    %c0_i32_8 = arith.constant 0 : i32
    %9 = arith.cmpi eq, %arg2, %c0_i32_8 : i32
    %10 = arith.extui %9 : i1 to i32
    %c0_i32_9 = arith.constant 0 : i32
    %11 = arith.cmpi ne, %10, %c0_i32_9 : i32
    scf.if %11 {
      %c0_10 = arith.constant 0 : index
      %c0_11 = arith.constant 0 : index
      %12 = vector.load %arg7[%c0_10, %c0_11] : memref<16x128xf32, #tpu.memory_space<vmem>>, vector<16x128xf32>
      %c0_12 = arith.constant 0 : index
      %c0_13 = arith.constant 0 : index
      %13 = vector.load %arg5[%c0_12, %c0_13] : memref<1x128xf32, #tpu.memory_space<vmem>>, vector<1x128xf32>
      %14 = vector.broadcast %13 : vector<1x128xf32> to vector<16x128xf32>
      %15 = arith.addf %12, %14 : vector<16x128xf32>
      %c0_14 = arith.constant 0 : index
      %c0_15 = arith.constant 0 : index
      %16 = vector.load %arg6[%c0_14, %c0_15] : memref<16x128xf32, #tpu.memory_space<vmem>>, vector<16x128xf32>
      tpu.vector_store %arg6[%c0_14, %c0_15], %15 {strides = array<i32>} : memref<16x128xf32, #tpu.memory_space<vmem>>, vector<16x128xf32>,
    } else {
    }
    return
  }
  func.func @transform_0(%arg0: i32, %arg1: i32, %arg2: i32) -> (i32, i32) {
    %c0_i32 = arith.constant 0 : i32
    return %arg0, %arg2 : i32, i32
  }
  func.func @transform_1(%arg0: i32, %arg1: i32, %arg2: i32) -> (i32, i32) {
    %c0_i32 = arith.constant 0 : i32
    return %arg2, %arg1 : i32, i32
  }
  func.func @transform_2(%arg0: i32, %arg1: i32, %arg2: i32) -> (i32, i32) {
    %c0_i32 = arith.constant 0 : i32
    %c0_i32_0 = arith.constant 0 : i32
    return %c0_i32, %arg1 : i32, i32
  }
  func.func @transform_3(%arg0: i32, %arg1: i32, %arg2: i32) -> (i32, i32) {
    %c0_i32 = arith.constant 0 : i32
    return %arg0, %arg1 : i32, i32
  }
}

</mosaic_0001>

<llo_original>
// kernel: bert_classifier_forward.13
$region0: #{bert_classifier_forward.13}
  #allocation0 [shape = 'u32[]', space=smem, size = 0x4, offset = 0x4, fixed_abs, tag = 'smem constant byte address 0x4 - core index']
  #allocation1 [shape = 'u32[144,128]{1,0:T(1,128)}', space=vmem, size = 0x12000, scoped, tag = 'internal scratch']
  #allocation2 [shape = 'f32[16,32]{1,0:T(8,128)}', space=vmem, size = 0x2000, scoped, tag = 'scratch operand']
  %s0 = inlined_call_operand.vmem [shape: bf16[16,32], index: 0, kind: input, shape index: {}]
  %s1 = inlined_call_operand.vmem [shape: bf16[32,32], index: 1, kind: input, shape index: {}]
  %s2 = inlined_call_operand.vmem [shape: f32[1,32], index: 2, kind: input, shape index: {}]
  %s3 = inlined_call_operand.vmem [shape: bf16[16,32], index: 3, kind: input, shape index: {}]
  %s4 = inlined_call_operand.vmem [shape: f32[1,32], index: 4, kind: input, shape index: {}]
  %s5 = inlined_call_operand.vmem [shape: f32[1,32], index: 5, kind: input, shape index: {}]
  %s6 = inlined_call_operand.vmem [shape: bf16[16,32], index: 6, kind: output, shape index: {}]
  %s7 = sld [smem:[#allocation0]]
  $region42: #{bert_classifier_forward.13} parent=0
    _
  %s9 = ssub.s32 1, %s7
  %s10 = scalar_select 0, %s9, %s7
  // Predicated region
  $region2: #{bert_classifier_forward.13} parent=0 // pred_check
    _
  $region3: #{bert_classifier_forward.13} parent=0 // pred_check_branch
    %12 = sbr.rel (0) target = $region5
  $region4: #{bert_classifier_forward.13} parent=0 // pred_region
    _
  $region5: #{bert_classifier_forward.13} parent=0 // pred_fallthru
    _
  // Predicated region
  $region6: #{bert_classifier_forward.13} parent=0 // pred_check
    _
  $region7: #{bert_classifier_forward.13} parent=0 // pred_check_branch
    %14 = sbr.rel (0) target = $region9
  $region8: #{bert_classifier_forward.13} parent=0 // pred_region
    _
  $region9: #{bert_classifier_forward.13} parent=0 // pred_fallthru
    _
  // Predicated region
  $region10: #{bert_classifier_forward.13} parent=0 // pred_check
    _
  $region11: #{bert_classifier_forward.13} parent=0 // pred_check_branch
    %16 = sbr.rel (0) target = $region13
  $region12: #{bert_classifier_forward.13} parent=0 // pred_region
    _
  $region13: #{bert_classifier_forward.13} parent=0 // pred_fallthru
    _
  // Predicated region
  $region14: #{bert_classifier_forward.13} parent=0 // pred_check
    _
  $region15: #{bert_classifier_forward.13} parent=0 // pred_check_branch
    %18 = sbr.rel (0) target = $region17
  $region16: #{bert_classifier_forward.13} parent=0 // pred_region
    _
  $region17: #{bert_classifier_forward.13} parent=0 // pred_fallthru
    _
  // Predicated region
  $region18: #{bert_classifier_forward.13} parent=0 // pred_check
    _
  $region19: #{bert_classifier_forward.13} parent=0 // pred_check_branch
    %20 = sbr.rel (0) target = $region21
  $region20: #{bert_classifier_forward.13} parent=0 // pred_region
    _
  $region21: #{bert_classifier_forward.13} parent=0 // pred_fallthru
    _
  // Predicated region
  $region22: #{bert_classifier_forward.13} parent=0 // pred_check
    _
  $region23: #{bert_classifier_forward.13} parent=0 // pred_check_branch
    %22 = sbr.rel (0) target = $region25
  $region24: #{bert_classifier_forward.13} parent=0 // pred_region
    _
  $region25: #{bert_classifier_forward.13} parent=0 // pred_fallthru
    _
  %p24 = scmp.eq.s32.totalorder 0, 0
  // Predicated region
  $region26: #{bert_classifier_forward.13} parent=0 // pred_check
    %p25 = pneg %p24
  $region27: #{bert_classifier_forward.13} parent=0 // pred_check_branch
    %27 = sbr.rel (%p25) target = $region29
  $region28: #{bert_classifier_forward.13} parent=0 // pred_region
    %vm28 = vcmask 261120
    %29 = vst.msk [vmem:[#allocation2] sm:$0xff] %vm28, 0.0
    %30 = vst.msk [vmem:[#allocation2 + $0x8] sm:$0xff] %vm28, 0.0
  $region29: #{bert_classifier_forward.13} parent=0 // pred_fallthru
    _
  %v31 = vld [vmem:[#allocation2] sm:$0xff]
  %v32 = vld [vmem:[#allocation2 + $0x8] sm:$0xff]
  %v33 = vld [vmem:[%s0] sm:$0xf]
  %v34 = vld [vmem:[%s0 + $0x4] sm:$0xf]
  %v35 = vld [vmem:[%s1] sm:$0xf]
  %v36 = vld [vmem:[%s1 + $0x4] sm:$0xf]
  %v37 = vld [vmem:[%s1 + $0x8] sm:$0xf]
  %v38 = vld [vmem:[%s1 + $0xc] sm:$0xf]
  %v41 = vunpack.c.l.b16 %v33
  %v42 = vunpack.c.l.b16 %v34
  %v43 = vpack.c.b16 %v42, %v41
  %v48 = vunpack.c.l.b16 %v35
  %v49 = vunpack.c.l.b16 %v36
  %v50 = vunpack.c.l.b16 %v37
  %v51 = vunpack.c.l.b16 %v38
  %v52 = vpack.c.b16 %v49, %v48
  %v53 = vpack.c.b16 %v51, %v50
  %vm56 = vcmask 261120
  %v58 = vsel %vm56, %v43, 0
  %60 = vmatprep.subr.bf16.mxu0 0
  %61 = vmatpush1.bf16.msra.mxu0 %v52
  %62 = vmatprep.subr.bf16.mxu0 0
  %63 = vmatpush1.bf16.msra.mxu0 %v53
  %64 = vmatprep.subr.bf16.mxu0 0
  %65 = vmatpush1.bf16.msra.mxu0 0
  %66 = vmatprep.subr.bf16.mxu0 0
  %67 = vmatpush1.bf16.msra.mxu0 0
  %68 = vmatprep.subr.bf16.mxu0 0
  %69 = vmatpush1.bf16.msra.mxu0 0
  %70 = vmatprep.subr.bf16.mxu0 0
  %71 = vmatpush1.bf16.msra.mxu0 0
  %72 = vmatprep.subr.bf16.mxu0 0
  %73 = vmatpush1.bf16.msra.mxu0 0
  %74 = vmatprep.subr.bf16.mxu0 0
  %75 = vmatpush1.bf16.msra.mxu0 0
  %76 = vmatprep.subr.bf16.mxu0 0
  %77 = vmatpush1.bf16.msra.mxu0 0
  %78 = vmatprep.subr.bf16.mxu0 0
  %79 = vmatpush1.bf16.msra.mxu0 0
  %80 = vmatprep.subr.bf16.mxu0 0
  %81 = vmatpush1.bf16.msra.mxu0 0
  %82 = vmatprep.subr.bf16.mxu0 0
  %83 = vmatpush1.bf16.msra.mxu0 0
  %84 = vmatprep.subr.bf16.mxu0 0
  %85 = vmatpush1.bf16.msra.mxu0 0
  %86 = vmatprep.subr.bf16.mxu0 0
  %87 = vmatpush1.bf16.msra.mxu0 0
  %88 = vmatprep.subr.bf16.mxu0 0
  %89 = vmatpush1.bf16.msra.mxu0 0
  %90 = vmatprep.subr.bf16.mxu0 0
  %91 = vmatpush1.bf16.msra.mxu0 0
  %92 = vmatprep.mubr.bf16.mxu0 0
  %93 = vmatmul.mubr.bf16.gmra.mrb[0].mxu0 %v58
  %v94 = vpop.f32.mrb[0].mxu0
  %v95 = vadd.f32 0.0, %v94
  %v96 = vpop.f32.mrb[0].mxu0
  %v97 = vpop.f32.mrb[0].mxu0
  %v98 = vadd.f32 0.0, %v97
  %v99 = vpop.f32.mrb[0].mxu0
  %100 = vdwg.mxu0
  %v101 = vadd.f32 %v31, %v95
  %v102 = vadd.f32 %v32, %v98
  %103 = vst.msk [vmem:[#allocation2] sm:$0xff] %vm56, %v101
  %104 = vst.msk [vmem:[#allocation2 + $0x8] sm:$0xff] %vm56, %v102
  // Predicated region
  $region30: #{bert_classifier_forward.13} parent=0 // pred_check
    %p105 = pneg %p24
  $region31: #{bert_classifier_forward.13} parent=0 // pred_check_branch
    %107 = sbr.rel (%p105) target = $region33
  $region32: #{bert_classifier_forward.13} parent=0 // pred_region
    %v108 = vld [vmem:[#allocation2] sm:$0xff]
    %v109 = vld [vmem:[#allocation2 + $0x8] sm:$0xff]
    %v110 = vld [vmem:[%s2] sm:$0x1]
    %v112 = vlaneseq
    %v113 = vshrl.u32 %v112, 7
    %v114 = vsub.s32 0, %v113
    %v115 = vrot.slane %v110, %v114
    %v117 = vadd.f32 %v108, %v115
    %v118 = vadd.f32 %v109, %v115
    %v119 = vld [vmem:[%s3] sm:$0xf]
    %v120 = vld [vmem:[%s3 + $0x4] sm:$0xf]
    %v121 = vunpack.c.l.bf16 %v119
    %v122 = vunpack.c.l.bf16 %v120
    %v123 = vadd.f32 %v117, %v121
    %v124 = vadd.f32 %v118, %v122
    %v125 = vsel %vm56, %v123, 0.0
    %126 = vadd.xlane.f32.xlu0 %v125
    %v127 = vpop.xlane.xlu0 %126
    %v128 = vsel %vm56, %v124, 0.0
    %129 = vadd.xlane.f32.xlu0 %v128
    %v130 = vpop.xlane.xlu0 %129
    %v131 = vrcp.pop 32.0
    %v132 = vmul.f32 %v127, %v131
    %v133 = vmul.f32 %v130, %v131
    %v134 = vsub.f32 %v123, %v132
    %v135 = vsub.f32 %v124, %v133
    %v136 = vmul.f32 %v134, %v134
    %v137 = vmul.f32 %v135, %v135
    %v138 = vsel %vm56, %v136, 0.0
    %139 = vadd.xlane.f32.xlu0 %v138
    %v140 = vpop.xlane.xlu0 %139
    %v141 = vsel %vm56, %v137, 0.0
    %142 = vadd.xlane.f32.xlu0 %v141
    %v143 = vpop.xlane.xlu0 %142
    %v144 = vmul.f32 %v140, %v131
    %v145 = vmul.f32 %v143, %v131
    %v146 = vadd.f32 %v144, 1e-12
    %v147 = vadd.f32 %v145, 1e-12
    %v148 = vrsqrt.pop %v146
    %v149 = vrsqrt.pop %v147
    %v150 = vmul.f32 %v134, %v148
    %v151 = vmul.f32 %v135, %v149
    %v152 = vld [vmem:[%s4] sm:$0x1]
    %v154 = vlaneseq
    %v155 = vshrl.u32 %v154, 7
    %v156 = vsub.s32 0, %v155
    %v157 = vrot.slane %v152, %v156
    %v159 = vmul.f32 %v150, %v157
    %v160 = vmul.f32 %v151, %v157
    %v161 = vld [vmem:[%s5] sm:$0x1]
    %v163 = vlaneseq
    %v164 = vshrl.u32 %v163, 7
    %v165 = vsub.s32 0, %v164
    %v166 = vrot.slane %v161, %v165
    %v168 = vadd.f32 %v159, %v166
    %v169 = vadd.f32 %v160, %v166
    %v170 = vpack.c.bf16 %v169, %v168
    %v172 = vunpack.c.l.b16 %v170
    %v173 = vunpack.c.h.b16 %v170
    %v174 = vpack.c.b16 %v172, %v172
    %v175 = vpack.c.b16 %v173, %v173
    %vm178 = vcmask 257024
    %179 = vst.msk [vmem:[%s6] sm:$0xf] %vm178, %v174
    %180 = vst.msk [vmem:[%s6 + $0x4] sm:$0xf] %vm178, %v175
  $region33: #{bert_classifier_forward.13} parent=0 // pred_fallthru
    _
  // Predicated region
  $region34: #{bert_classifier_forward.13} parent=0 // pred_check
    _
  $region35: #{bert_classifier_forward.13} parent=0 // pred_check_branch
    %182 = sbr.rel (0) target = $region37
  $region36: #{bert_classifier_forward.13} parent=0 // pred_region
    _
  $region37: #{bert_classifier_forward.13} parent=0 // pred_fallthru
    _
  // Predicated region
  $region38: #{bert_classifier_forward.13} parent=0 // pred_check
    _
  $region39: #{bert_classifier_forward.13} parent=0 // pred_check_branch
    %184 = sbr.rel (0) target = $region41
  $region40: #{bert_classifier_forward.13} parent=0 // pred_region
    _
  $region41: #{bert_classifier_forward.13} parent=0 // pred_fallthru
    _

// kernel: bert_classifier_forward.10
$region0: #{bert_classifier_forward.10}
  #allocation0 [shape = 'u32[]', space=smem, size = 0x4, offset = 0x4, fixed_abs, tag = 'smem constant byte address 0x4 - core index']
  #allocation1 [shape = 'u32[144,128]{1,0:T(1,128)}', space=vmem, size = 0x12000, scoped, tag = 'internal scratch']
  %s0 = inlined_call_operand.vmem [shape: f32[16,32], index: 0, kind: input, shape index: {}]
  %s1 = inlined_call_operand.vmem [shape: f32[1,32], index: 1, kind: input, shape index: {}]
  %s2 = inlined_call_operand.vmem [shape: f32[1,32], index: 2, kind: input, shape index: {}]
  %s3 = inlined_call_operand.vmem [shape: bf16[16,32], index: 3, kind: output, shape index: {}]
  %s4 = sld [smem:[#allocation0]]
  $region22: #{bert_classifier_forward.10} parent=0
    _
  %s6 = ssub.s32 1, %s4
  %s7 = scalar_select 0, %s6, %s4
  // Predicated region
  $region2: #{bert_classifier_forward.10} parent=0 // pred_check
    _
  $region3: #{bert_classifier_forward.10} parent=0 // pred_check_branch
    %9 = sbr.rel (0) target = $region5
  $region4: #{bert_classifier_forward.10} parent=0 // pred_region
    _
  $region5: #{bert_classifier_forward.10} parent=0 // pred_fallthru
    _
  // Predicated region
  $region6: #{bert_classifier_forward.10} parent=0 // pred_check
    _
  $region7: #{bert_classifier_forward.10} parent=0 // pred_check_branch
    %11 = sbr.rel (0) target = $region9
  $region8: #{bert_classifier_forward.10} parent=0 // pred_region
    _
  $region9: #{bert_classifier_forward.10} parent=0 // pred_fallthru
    _
  // Predicated region
  $region10: #{bert_classifier_forward.10} parent=0 // pred_check
    _
  $region11: #{bert_classifier_forward.10} parent=0 // pred_check_branch
    %13 = sbr.rel (0) target = $region13
  $region12: #{bert_classifier_forward.10} parent=0 // pred_region
    _
  $region13: #{bert_classifier_forward.10} parent=0 // pred_fallthru
    _
  %v14 = vld [vmem:[%s0] sm:$0xff]
  %v15 = vld [vmem:[%s0 + $0x8] sm:$0xff]
  %vm16 = vcmask 261120
  %v17 = vsel %vm16, %v14, 0.0
  %18 = vadd.xlane.f32.xlu0 %v17
  %v19 = vpop.xlane.xlu0 %18
  %v20 = vsel %vm16, %v15, 0.0
  %21 = vadd.xlane.f32.xlu0 %v20
  %v22 = vpop.xlane.xlu0 %21
  %v23 = vrcp.pop 32.0
  %v24 = vmul.f32 %v19, %v23
  %v25 = vmul.f32 %v22, %v23
  %v26 = vsub.f32 %v14, %v24
  %v27 = vsub.f32 %v15, %v25
  %v28 = vmul.f32 %v26, %v26
  %v29 = vmul.f32 %v27, %v27
  %v30 = vsel %vm16, %v28, 0.0
  %31 = vadd.xlane.f32.xlu0 %v30
  %v32 = vpop.xlane.xlu0 %31
  %v33 = vsel %vm16, %v29, 0.0
  %34 = vadd.xlane.f32.xlu0 %v33
  %v35 = vpop.xlane.xlu0 %34
  %v36 = vmul.f32 %v32, %v23
  %v37 = vmul.f32 %v35, %v23
  %v38 = vadd.f32 %v36, 1e-12
  %v39 = vadd.f32 %v37, 1e-12
  %v40 = vrsqrt.pop %v38
  %v41 = vrsqrt.pop %v39
  %v42 = vmul.f32 %v26, %v40
  %v43 = vmul.f32 %v27, %v41
  %v44 = vld [vmem:[%s1] sm:$0x1]
  %v46 = vlaneseq
  %v47 = vshrl.u32 %v46, 7
  %v48 = vsub.s32 0, %v47
  %v49 = vrot.slane %v44, %v48
  %v51 = vmul.f32 %v42, %v49
  %v52 = vmul.f32 %v43, %v49
  %v53 = vld [vmem:[%s2] sm:$0x1]
  %v55 = vlaneseq
  %v56 = vshrl.u32 %v55, 7
  %v57 = vsub.s32 0, %v56
  %v58 = vrot.slane %v53, %v57
  %v60 = vadd.f32 %v51, %v58
  %v61 = vadd.f32 %v52, %v58
  %v62 = vpack.c.bf16 %v61, %v60
  %v64 = vunpack.c.l.b16 %v62
  %v65 = vunpack.c.h.b16 %v62
  %v66 = vpack.c.b16 %v64, %v64
  %v67 = vpack.c.b16 %v65, %v65
  %vm70 = vcmask 257024
  %71 = vst.msk [vmem:[%s3] sm:$0xf] %vm70, %v66
  %72 = vst.msk [vmem:[%s3 + $0x4] sm:$0xf] %vm70, %v67
  // Predicated region
  $region14: #{bert_classifier_forward.10} parent=0 // pred_check
    _
  $region15: #{bert_classifier_forward.10} parent=0 // pred_check_branch
    %74 = sbr.rel (0) target = $region17
  $region16: #{bert_classifier_forward.10} parent=0 // pred_region
    _
  $region17: #{bert_classifier_forward.10} parent=0 // pred_fallthru
    _
  // Predicated region
  $region18: #{bert_classifier_forward.10} parent=0 // pred_check
    _
  $region19: #{bert_classifier_forward.10} parent=0 // pred_check_branch
    %76 = sbr.rel (0) target = $region21
  $region20: #{bert_classifier_forward.10} parent=0 // pred_region
    _
  $region21: #{bert_classifier_forward.10} parent=0 // pred_fallthru
    _

// kernel: bert_classifier_forward.11
$region0: #{bert_classifier_forward.11}
  #allocation0 [shape = 'u32[]', space=smem, size = 0x4, offset = 0x4, fixed_abs, tag = 'smem constant byte address 0x4 - core index']
  #allocation1 [shape = 'u32[144,128]{1,0:T(1,128)}', space=vmem, size = 0x12000, scoped, tag = 'internal scratch']
  #allocation2 [shape = 'f32[16,32]{1,0:T(8,128)}', space=vmem, size = 0x2000, scoped, tag = 'scratch operand']
  %s0 = inlined_call_operand.vmem [shape: bf16[16,32], index: 0, kind: input, shape index: {}]
  %s1 = inlined_call_operand.vmem [shape: bf16[3,32,32], index: 1, kind: input, shape index: {}]
  %s2 = inlined_call_operand.vmem [shape: f32[3,1,32], index: 2, kind: input, shape index: {}]
  %s3 = inlined_call_operand.vmem [shape: bf16[3,16,32], index: 3, kind: output, shape index: {}]
  %s4 = sld [smem:[#allocation0]]
  $region53: #{bert_classifier_forward.11} parent=0
    _
  %s6 = ssub.s32 1, %s4
  %s7 = scalar_select 0, %s6, %s4
  loop: start=0, step=1, limit=5
  $region2: #{bert_classifier_forward.11} parent=0 // loop_pre_header
    _
  $region3: #{bert_classifier_forward.11} parent=0 // loop_header
    %s9 = sphi 0, %s13
    %p10 = scmp.ge.s32.totalorder %s9, 5
    %s16 = sphi 0, %s42
    %s17 = sphi 0, %s38
    %s18 = sphi 0, %s34
    %s19 = sphi 0, %s30
    %s20 = sphi 0, %s16
    %s21 = sphi 0, %s17
    %s22 = sphi 0, %s18
    %s23 = sphi 0, %s19
    %s24 = sphi 0, %s20
    %s25 = sphi 0, %s21
    %s26 = sphi 0, %s22
    %s27 = sphi 0, %s23
    %s47 = sphi 0, %s49
    %s50 = sphi 0, %s47
    %s51 = sphi 0, %s50
    %s67 = sphi 0, %s51
    %s77 = sphi 0, %s79
    %s80 = sphi 0, %s77
    %s81 = sphi 0, %s80
    %s97 = sphi 0, %s81
    %s105 = sphi 0, %s107
    %s108 = sphi 0, %s105
    %s109 = sphi 0, %s108
    %s125 = sphi 0, %s109
    %s135 = sphi 0, %s137
    %s138 = sphi 0, %s135
    %s139 = sphi 0, %s138
    %s155 = sphi 0, %s139
  $region4: #{bert_classifier_forward.11} parent=0 // loop_header_branch
    %12 = sbr.rel (%p10) target = $region8
  $region5: #{bert_classifier_forward.11} parent=0 // loop_body
    %s14 = ssub.s32 %s9, 1
    %s15 = ssub.s32 %s9, 2
    %s28 = sadd.s32 1, %s19
    %p29 = scmp.ge.s32.totalorder %s28, 1
    %s30 = scalar_select %p29, 0, %s28
    %s31 = sadd.s32 1, %s18
    %s32 = scalar_select %p29, %s31, %s18
    %p33 = scmp.ge.s32.totalorder %s32, 1
    %s34 = scalar_select %p33, 0, %s32
    %s35 = sadd.s32 1, %s17
    %s36 = scalar_select %p33, %s35, %s17
    %p37 = scmp.ge.s32.totalorder %s36, 3
    %s38 = scalar_select %p37, 0, %s36
    %s39 = sadd.s32 1, %s16
    %s40 = scalar_select %p37, %s39, %s16
    %p41 = scmp.ge.s32.totalorder %s40, 1
    %s42 = scalar_select %p41, 0, %s40
    %s43 = ssub.s32 %s16, %s42
    %s44 = ssub.s32 %s19, %s30
    %s45 = sor.u32 %s43, %s44
    %p46 = scmp.eq.s32.totalorder %s45, 0
    %s48 = sadd.s32 %s47, 1
    %s49 = scalar_select %p46, %s47, %s48
    %p52 = pneg %p46
    %p53 = scmp.eq.s32.totalorder %s9, 2
    %p54 = por %p52, %p53
    %p55 = scmp.ne.s32.totalorder %s47, %s50
    %p56 = scmp.eq.s32.totalorder %s9, 0
    %p57 = por %p55, %p56
    %p58 = scmp.ne.s32.totalorder %s47, %s50
    %p59 = scmp.eq.s32.totalorder %s14, 2
    %p60 = por %p58, %p59
    %p61 = scmp.ne.s32.totalorder %s50, %s51
    %p62 = scmp.eq.s32.totalorder %s14, 0
    %p63 = por %p61, %p62
    %p64 = scmp.ne.s32.totalorder %s50, %s51
    %p65 = scmp.eq.s32.totalorder %s15, 2
    %p66 = por %p64, %p65
    %p68 = scmp.ne.s32.totalorder %s51, %s67
    %p69 = scmp.eq.s32.totalorder %s15, 0
    %p70 = por %p68, %p69
    %s71 = ssub.s32 %s17, %s38
    %s72 = ssub.s32 %s19, %s30
    %s73 = sor.u32 %s71, %s72
    %s74 = ssub.s32 %s18, %s34
    %s75 = sor.u32 %s73, %s74
    %p76 = scmp.eq.s32.totalorder %s75, 0
    %s78 = sadd.s32 %s77, 1
    %s79 = scalar_select %p76, %s77, %s78
    %p82 = pneg %p76
    %p83 = scmp.eq.s32.totalorder %s9, 2
    %p84 = por %p82, %p83
    %p85 = scmp.ne.s32.totalorder %s77, %s80
    %p86 = scmp.eq.s32.totalorder %s9, 0
    %p87 = por %p85, %p86
    %p88 = scmp.ne.s32.totalorder %s77, %s80
    %p89 = scmp.eq.s32.totalorder %s14, 2
    %p90 = por %p88, %p89
    %p91 = scmp.ne.s32.totalorder %s80, %s81
    %p92 = scmp.eq.s32.totalorder %s14, 0
    %p93 = por %p91, %p92
    %p94 = scmp.ne.s32.totalorder %s80, %s81
    %p95 = scmp.eq.s32.totalorder %s15, 2
    %p96 = por %p94, %p95
    %p98 = scmp.ne.s32.totalorder %s81, %s97
    %p99 = scmp.eq.s32.totalorder %s15, 0
    %p100 = por %p98, %p99
    %s101 = ssub.s32 %s17, %s38
    %s102 = ssub.s32 %s18, %s34
    %s103 = sor.u32 %s101, %s102
    %p104 = scmp.eq.s32.totalorder %s103, 0
    %s106 = sadd.s32 %s105, 1
    %s107 = scalar_select %p104, %s105, %s106
    %p110 = pneg %p104
    %p111 = scmp.eq.s32.totalorder %s9, 2
    %p112 = por %p110, %p111
    %p113 = scmp.ne.s32.totalorder %s105, %s108
    %p114 = scmp.eq.s32.totalorder %s9, 0
    %p115 = por %p113, %p114
    %p116 = scmp.ne.s32.totalorder %s105, %s108
    %p117 = scmp.eq.s32.totalorder %s14, 2
    %p118 = por %p116, %p117
    %p119 = scmp.ne.s32.totalorder %s108, %s109
    %p120 = scmp.eq.s32.totalorder %s14, 0
    %p121 = por %p119, %p120
    %p122 = scmp.ne.s32.totalorder %s108, %s109
    %p123 = scmp.eq.s32.totalorder %s15, 2
    %p124 = por %p122, %p123
    %p126 = scmp.ne.s32.totalorder %s109, %s125
    %p127 = scmp.eq.s32.totalorder %s15, 0
    %p128 = por %p126, %p127
    %s129 = ssub.s32 %s17, %s38
    %s130 = ssub.s32 %s16, %s42
    %s131 = sor.u32 %s129, %s130
    %s132 = ssub.s32 %s18, %s34
    %s133 = sor.u32 %s131, %s132
    %p134 = scmp.eq.s32.totalorder %s133, 0
    %s136 = sadd.s32 %s135, 1
    %s137 = scalar_select %p134, %s135, %s136
    %p140 = pneg %p134
    %p141 = scmp.eq.s32.totalorder %s9, 2
    %p142 = por %p140, %p141
    %p143 = scmp.ne.s32.totalorder %s135, %s138
    %p144 = scmp.eq.s32.totalorder %s9, 0
    %p145 = por %p143, %p144
    %p146 = scmp.ne.s32.totalorder %s135, %s138
    %p147 = scmp.eq.s32.totalorder %s14, 2
    %p148 = por %p146, %p147
    %p149 = scmp.ne.s32.totalorder %s138, %s139
    %p150 = scmp.eq.s32.totalorder %s14, 0
    %p151 = por %p149, %p150
    %p152 = scmp.ne.s32.totalorder %s138, %s139
    %p153 = scmp.eq.s32.totalorder %s15, 2
    %p154 = por %p152, %p153
    %p156 = scmp.ne.s32.totalorder %s139, %s155
    %p157 = scmp.eq.s32.totalorder %s15, 0
    %p158 = por %p156, %p157
    %p159 = scmp.le.s32.totalorder 1, %s9
    %p160 = scmp.lt.s32.totalorder %s9, 4
    %p161 = pnand %p159, %p160
    %p162 = pneg %p161
    // Predicated region
    $region9: #{bert_classifier_forward.11} parent=5 // pred_check
      _
    $region10: #{bert_classifier_forward.11} parent=5 // pred_check_branch
      %164 = sbr.rel (%p161) target = $region12
    $region11: #{bert_classifier_forward.11} parent=5 // pred_region
      %s165 = ssub.s32 %s9, 1
      // Predicated region
      $region13: #{bert_classifier_forward.11} parent=11 // pred_check
        %p166 = pneg %p63
      $region14: #{bert_classifier_forward.11} parent=11 // pred_check_branch
        %168 = sbr.rel (%p166) target = $region16
      $region15: #{bert_classifier_forward.11} parent=11 // pred_region
        %s169 = smul.u32 2, %s20
        %p170 = scmp.lt.s32.totalorder %s169, 1
        %s171 = scalar_select %p170, %s169, 1
        %p172 = scmp.lt.s32.totalorder %s23, 0
        %s173 = scalar_select %p172, %s23, 0
        %s174 = sadd.s32 %s173, %s171
        %s175 = smul.addr %s174, 4
        %s176 = scalar_lea.vmem %s0, %s175
        %s177 = smul.u32 2, %s20
      $region16: #{bert_classifier_forward.11} parent=11 // pred_fallthru
        _
    $region12: #{bert_classifier_forward.11} parent=5 // pred_fallthru
      _
    %p178 = scmp.lt.s32.totalorder %s9, 3
    // Predicated region
    $region17: #{bert_classifier_forward.11} parent=5 // pred_check
      %p179 = pneg %p178
    $region18: #{bert_classifier_forward.11} parent=5 // pred_check_branch
      %181 = sbr.rel (%p179) target = $region20
    $region19: #{bert_classifier_forward.11} parent=5 // pred_region
      // Predicated region
      $region21: #{bert_classifier_forward.11} parent=19 // pred_check
        %p182 = pneg %p87
      $region22: #{bert_classifier_forward.11} parent=19 // pred_check_branch
        %184 = sbr.rel (%p182) target = $region24
      $region23: #{bert_classifier_forward.11} parent=19 // pred_region
        %s185 = smul.u32 4, %s19
        %p186 = scmp.lt.s32.totalorder %s17, 2
        %s187 = scalar_select %p186, %s17, 2
        %p188 = scmp.lt.s32.totalorder %s185, 3
        %s189 = scalar_select %p188, %s185, 3
        %p190 = scmp.lt.s32.totalorder %s18, 0
        %s191 = scalar_select %p190, %s18, 0
        %s192 = sadd.s32 %s191, %s189
        %s193 = smul.addr %s187, 4
        %s194 = sadd.s32 %s192, %s193
        %s195 = smul.addr %s194, 4
        %s196 = scalar_lea.vmem %s1, %s195
        %s197 = smul.u32 4, %s19
      $region24: #{bert_classifier_forward.11} parent=19 // pred_fallthru
        _
      // Predicated region
      $region25: #{bert_classifier_forward.11} parent=19 // pred_check
        %p198 = pneg %p115
      $region26: #{bert_classifier_forward.11} parent=19 // pred_check_branch
        %200 = sbr.rel (%p198) target = $region28
      $region27: #{bert_classifier_forward.11} parent=19 // pred_region
        %p201 = scmp.lt.s32.totalorder %s17, 2
        %s202 = scalar_select %p201, %s17, 2
        %p203 = scmp.lt.s32.totalorder %s18, 0
        %s204 = scalar_select %p203, %s18, 0
        %s205 = sadd.s32 %s204, %s202
        %s206 = scalar_lea.vmem %s2, %s205
      $region28: #{bert_classifier_forward.11} parent=19 // pred_fallthru
        _
    $region20: #{bert_classifier_forward.11} parent=5 // pred_fallthru
      _
    %p207 = scmp.le.s32.totalorder 1, %s9
    %p208 = scmp.lt.s32.totalorder %s9, 4
    %p209 = pnand %p207, %p208
    %p210 = pneg %p209
    // Predicated region
    $region29: #{bert_classifier_forward.11} parent=5 // pred_check
      _
    $region30: #{bert_classifier_forward.11} parent=5 // pred_check_branch
      %212 = sbr.rel (%p209) target = $region32
    $region31: #{bert_classifier_forward.11} parent=5 // pred_region
      %s213 = ssub.s32 %s9, 1
      %s214 = smul.u32 2, %s20
      %p215 = scmp.lt.s32.totalorder %s214, 1
      %s216 = scalar_select %p215, %s214, 1
      %p217 = scmp.lt.s32.totalorder %s23, 0
      %s218 = scalar_select %p217, %s23, 0
      %s219 = sadd.s32 %s218, %s216
      %s220 = smul.addr %s219, 4
      %s221 = scalar_lea.vmem %s0, %s220
      %p222 = pneg %p63
      %p223 = pneg %p60
      %s224 = smul.u32 4, %s23
      %p225 = scmp.lt.s32.totalorder %s21, 2
      %s226 = scalar_select %p225, %s21, 2
      %p227 = scmp.lt.s32.totalorder %s224, 3
      %s228 = scalar_select %p227, %s224, 3
      %p229 = scmp.lt.s32.totalorder %s22, 0
      %s230 = scalar_select %p229, %s22, 0
      %s231 = sadd.s32 %s230, %s228
      %s232 = smul.addr %s226, 4
      %s233 = sadd.s32 %s231, %s232
      %s234 = smul.addr %s233, 4
      %s235 = scalar_lea.vmem %s1, %s234
      %p236 = pneg %p93
      %p237 = pneg %p90
      %p238 = scmp.lt.s32.totalorder %s21, 2
      %s239 = scalar_select %p238, %s21, 2
      %p240 = scmp.lt.s32.totalorder %s22, 0
      %s241 = scalar_select %p240, %s22, 0
      %s242 = sadd.s32 %s241, %s239
      %s243 = scalar_lea.vmem %s2, %s242
      %p244 = pneg %p121
      %p245 = pneg %p118
      %p246 = pneg %p151
      %p247 = pneg %p148
      %s248 = smul.u32 2, %s20
      %p249 = scmp.lt.s32.totalorder %s21, 2
      %s250 = scalar_select %p249, %s21, 2
      %p251 = scmp.lt.s32.totalorder %s248, 1
      %s252 = scalar_select %p251, %s248, 1
      %p253 = scmp.lt.s32.totalorder %s22, 0
      %s254 = scalar_select %p253, %s22, 0
      %s255 = sadd.s32 %s254, %s252
      %s256 = smul.addr %s250, 2
      %s257 = sadd.s32 %s255, %s256
      %s258 = smul.addr %s257, 4
      %s259 = scalar_lea.vmem %s3, %s258
      %s260 = smul.u32 2, %s20
      %p261 = scmp.lt.s32.totalorder %s260, 1
      %s262 = scalar_select %p261, %s260, 1
      %p263 = scmp.lt.s32.totalorder %s23, 0
      %s264 = scalar_select %p263, %s23, 0
      %s265 = sadd.s32 %s264, %s262
      %s266 = smul.addr %s265, 4
      %s267 = scalar_lea.vmem %s0, %s266
      %s268 = smul.u32 2, %s20
      %s269 = smul.u32 4, %s23
      %p270 = scmp.lt.s32.totalorder %s21, 2
      %s271 = scalar_select %p270, %s21, 2
      %p272 = scmp.lt.s32.totalorder %s269, 3
      %s273 = scalar_select %p272, %s269, 3
      %p274 = scmp.lt.s32.totalorder %s22, 0
      %s275 = scalar_select %p274, %s22, 0
      %s276 = sadd.s32 %s275, %s273
      %s277 = smul.addr %s271, 4
      %s278 = sadd.s32 %s276, %s277
      %s279 = smul.addr %s278, 4
      %s280 = scalar_lea.vmem %s1, %s279
      %s281 = smul.u32 4, %s23
      %p282 = scmp.lt.s32.totalorder %s21, 2
      %s283 = scalar_select %p282, %s21, 2
      %p284 = scmp.lt.s32.totalorder %s22, 0
      %s285 = scalar_select %p284, %s22, 0
      %s286 = sadd.s32 %s285, %s283
      %s287 = scalar_lea.vmem %s2, %s286
      %s288 = smul.u32 2, %s20
      %p289 = scmp.lt.s32.totalorder %s21, 2
      %s290 = scalar_select %p289, %s21, 2
      %p291 = scmp.lt.s32.totalorder %s288, 1
      %s292 = scalar_select %p291, %s288, 1
      %p293 = scmp.lt.s32.totalorder %s22, 0
      %s294 = scalar_select %p293, %s22, 0
      %s295 = sadd.s32 %s294, %s292
      %s296 = smul.addr %s290, 2
      %s297 = sadd.s32 %s295, %s296
      %s298 = smul.addr %s297, 4
      %s299 = scalar_lea.vmem %s3, %s298
      %s300 = smul.u32 2, %s20
      %p302 = scmp.eq.s32.totalorder %s23, 0
      // Predicated region
      $region33: #{bert_classifier_forward.11} parent=31 // pred_check
        %p303 = pneg %p302
      $region34: #{bert_classifier_forward.11} parent=31 // pred_check_branch
        %305 = sbr.rel (%p303) target = $region36
      $region35: #{bert_classifier_forward.11} parent=31 // pred_region
        %vm306 = vcmask 261120
        %307 = vst.msk [vmem:[#allocation2] sm:$0xff] %vm306, 0.0
        %308 = vst.msk [vmem:[#allocation2 + $0x8] sm:$0xff] %vm306, 0.0
      $region36: #{bert_classifier_forward.11} parent=31 // pred_fallthru
        _
      %v309 = vld [vmem:[#allocation2] sm:$0xff]
      %v310 = vld [vmem:[#allocation2 + $0x8] sm:$0xff]
      %v311 = vld [vmem:[%s267] sm:$0xf]
      %v312 = vld [vmem:[%s267 + $0x4] sm:$0xf]
      %v313 = vld [vmem:[%s280] sm:$0xf]
      %v314 = vld [vmem:[%s280 + $0x4] sm:$0xf]
      %v315 = vld [vmem:[%s280 + $0x8] sm:$0xf]
      %v316 = vld [vmem:[%s280 + $0xc] sm:$0xf]
      %v319 = vunpack.c.l.b16 %v311
      %v320 = vunpack.c.l.b16 %v312
      %v321 = vpack.c.b16 %v320, %v319
      %v326 = vunpack.c.l.b16 %v313
      %v327 = vunpack.c.l.b16 %v314
      %v328 = vunpack.c.l.b16 %v315
      %v329 = vunpack.c.l.b16 %v316
      %v330 = vpack.c.b16 %v327, %v326
      %v331 = vpack.c.b16 %v329, %v328
      %vm334 = vcmask 261120
      %v336 = vsel %vm334, %v321, 0
      %338 = vmatprep.subr.bf16.mxu0 0
      %339 = vmatpush1.bf16.msra.mxu0 %v330
      %340 = vmatprep.subr.bf16.mxu0 0
      %341 = vmatpush1.bf16.msra.mxu0 %v331
      %342 = vmatprep.subr.bf16.mxu0 0
      %343 = vmatpush1.bf16.msra.mxu0 0
      %344 = vmatprep.subr.bf16.mxu0 0
      %345 = vmatpush1.bf16.msra.mxu0 0
      %346 = vmatprep.subr.bf16.mxu0 0
      %347 = vmatpush1.bf16.msra.mxu0 0
      %348 = vmatprep.subr.bf16.mxu0 0
      %349 = vmatpush1.bf16.msra.mxu0 0
      %350 = vmatprep.subr.bf16.mxu0 0
      %351 = vmatpush1.bf16.msra.mxu0 0
      %352 = vmatprep.subr.bf16.mxu0 0
      %353 = vmatpush1.bf16.msra.mxu0 0
      %354 = vmatprep.subr.bf16.mxu0 0
      %355 = vmatpush1.bf16.msra.mxu0 0
      %356 = vmatprep.subr.bf16.mxu0 0
      %357 = vmatpush1.bf16.msra.mxu0 0
      %358 = vmatprep.subr.bf16.mxu0 0
      %359 = vmatpush1.bf16.msra.mxu0 0
      %360 = vmatprep.subr.bf16.mxu0 0
      %361 = vmatpush1.bf16.msra.mxu0 0
      %362 = vmatprep.subr.bf16.mxu0 0
      %363 = vmatpush1.bf16.msra.mxu0 0
      %364 = vmatprep.subr.bf16.mxu0 0
      %365 = vmatpush1.bf16.msra.mxu0 0
      %366 = vmatprep.subr.bf16.mxu0 0
      %367 = vmatpush1.bf16.msra.mxu0 0
      %368 = vmatprep.subr.bf16.mxu0 0
      %369 = vmatpush1.bf16.msra.mxu0 0
      %370 = vmatprep.mubr.bf16.mxu0 0
      %371 = vmatmul.mubr.bf16.gmra.mrb[0].mxu0 %v336
      %v372 = vpop.f32.mrb[0].mxu0
      %v373 = vadd.f32 0.0, %v372
      %v374 = vpop.f32.mrb[0].mxu0
      %v375 = vpop.f32.mrb[0].mxu0
      %v376 = vadd.f32 0.0, %v375
      %v377 = vpop.f32.mrb[0].mxu0
      %378 = vdwg.mxu0
      %v379 = vadd.f32 %v309, %v373
      %v380 = vadd.f32 %v310, %v376
      %381 = vst.msk [vmem:[#allocation2] sm:$0xff] %vm334, %v379
      %382 = vst.msk [vmem:[#allocation2 + $0x8] sm:$0xff] %vm334, %v380
      // Predicated region
      $region37: #{bert_classifier_forward.11} parent=31 // pred_check
        %p383 = pneg %p302
      $region38: #{bert_classifier_forward.11} parent=31 // pred_check_branch
        %385 = sbr.rel (%p383) target = $region40
      $region39: #{bert_classifier_forward.11} parent=31 // pred_region
        %v386 = vld [vmem:[#allocation2] sm:$0xff]
        %v387 = vld [vmem:[#allocation2 + $0x8] sm:$0xff]
        %v388 = vld [vmem:[%s287] sm:$0x1]
        %v390 = vlaneseq
        %v391 = vshrl.u32 %v390, 7
        %v392 = vsub.s32 0, %v391
        %v393 = vrot.slane %v388, %v392
        %v395 = vadd.f32 %v386, %v393
        %v396 = vadd.f32 %v387, %v393
        %v397 = vpack.c.bf16 %v396, %v395
        %v399 = vunpack.c.l.b16 %v397
        %v400 = vunpack.c.h.b16 %v397
        %v401 = vpack.c.b16 %v399, %v399
        %v402 = vpack.c.b16 %v400, %v400
        %vm405 = vcmask 257024
        %406 = vst.msk [vmem:[%s299] sm:$0xf] %vm405, %v401
        %407 = vst.msk [vmem:[%s299 + $0x4] sm:$0xf] %vm405, %v402
      $region40: #{bert_classifier_forward.11} parent=31 // pred_fallthru
        _
      %s408 = smul.u32 2, %s20
      %p409 = scmp.lt.s32.totalorder %s21, 2
      %s410 = scalar_select %p409, %s21, 2
      %p411 = scmp.lt.s32.totalorder %s408, 1
      %s412 = scalar_select %p411, %s408, 1
      %p413 = scmp.lt.s32.totalorder %s22, 0
      %s414 = scalar_select %p413, %s22, 0
      %s415 = sadd.s32 %s414, %s412
      %s416 = smul.addr %s410, 2
      %s417 = sadd.s32 %s415, %s416
      %s418 = smul.addr %s417, 4
      %s419 = scalar_lea.vmem %s3, %s418
      // Predicated region
      $region41: #{bert_classifier_forward.11} parent=31 // pred_check
        %p420 = pneg %p148
      $region42: #{bert_classifier_forward.11} parent=31 // pred_check_branch
        %422 = sbr.rel (%p420) target = $region44
      $region43: #{bert_classifier_forward.11} parent=31 // pred_region
        %s423 = smul.u32 2, %s20
      $region44: #{bert_classifier_forward.11} parent=31 // pred_fallthru
        _
    $region32: #{bert_classifier_forward.11} parent=5 // pred_fallthru
      _
    %p424 = scmp.le.s32.totalorder 2, %s9
    // Predicated region
    $region45: #{bert_classifier_forward.11} parent=5 // pred_check
      %p425 = pneg %p424
    $region46: #{bert_classifier_forward.11} parent=5 // pred_check_branch
      %427 = sbr.rel (%p425) target = $region48
    $region47: #{bert_classifier_forward.11} parent=5 // pred_region
      %s428 = ssub.s32 %s9, 2
      // Predicated region
      $region49: #{bert_classifier_forward.11} parent=47 // pred_check
        %p429 = pneg %p154
      $region50: #{bert_classifier_forward.11} parent=47 // pred_check_branch
        %431 = sbr.rel (%p429) target = $region52
      $region51: #{bert_classifier_forward.11} parent=47 // pred_region
        %s432 = smul.u32 2, %s24
        %p433 = scmp.lt.s32.totalorder %s25, 2
        %s434 = scalar_select %p433, %s25, 2
        %p435 = scmp.lt.s32.totalorder %s432, 1
        %s436 = scalar_select %p435, %s432, 1
        %p437 = scmp.lt.s32.totalorder %s26, 0
        %s438 = scalar_select %p437, %s26, 0
        %s439 = sadd.s32 %s438, %s436
        %s440 = smul.addr %s434, 2
        %s441 = sadd.s32 %s439, %s440
        %s442 = smul.addr %s441, 4
        %s443 = scalar_lea.vmem %s3, %s442
      $region52: #{bert_classifier_forward.11} parent=47 // pred_fallthru
        _
    $region48: #{bert_classifier_forward.11} parent=5 // pred_fallthru
      _
  $region6: #{bert_classifier_forward.11} parent=0 // loop_footer
    %s13 = sadd.s32 1, %s9
  $region7: #{bert_classifier_forward.11} parent=0 // loop_footer_branch
    %8 = sbr.rel target = $region3
  $region8: #{bert_classifier_forward.11} parent=0 // loop_exit
    _

// kernel: bert_classifier_forward.12
$region0: #{bert_classifier_forward.12}
  #allocation0 [shape = 'u32[]', space=smem, size = 0x4, offset = 0x4, fixed_abs, tag = 'smem constant byte address 0x4 - core index']
  #allocation1 [shape = 'u32[144,128]{1,0:T(1,128)}', space=vmem, size = 0x12000, scoped, tag = 'internal scratch']
  %s0 = inlined_call_operand.vmem [shape: bf16[3,2,8,32], index: 0, kind: input, shape index: {}, may-alias: {0,1,2}]
  %s1 = inlined_call_operand.vmem [shape: bf16[3,2,8,32], index: 1, kind: input, shape index: {}, may-alias: {0,1,2}]
  %s2 = inlined_call_operand.vmem [shape: bf16[3,2,8,32], index: 2, kind: input, shape index: {}, may-alias: {0,1,2}]
  %s3 = inlined_call_operand.vmem [shape: f32[2,1,8], index: 3, kind: input, shape index: {}]
  %s4 = inlined_call_operand.vmem [shape: bf16[2,8,32], index: 4, kind: output, shape index: {}]
  %s5 = sld [smem:[#allocation0]]
  $region49: #{bert_classifier_forward.12} parent=0
    _
  %s7 = ssub.s32 1, %s5
  %s8 = scalar_select 0, %s7, %s5
  loop: start=0, step=1, limit=4
  $region2: #{bert_classifier_forward.12} parent=0 // loop_pre_header
    _
  $region3: #{bert_classifier_forward.12} parent=0 // loop_header
    %s10 = sphi 0, %s14
    %p11 = scmp.ge.s32.totalorder %s10, 4
    %s17 = sphi 0, %s29
    %s18 = sphi 0, %s25
    %s19 = sphi 0, %s17
    %s20 = sphi 0, %s18
    %s21 = sphi 0, %s19
    %s22 = sphi 0, %s20
    %s34 = sphi 0, %s36
    %s37 = sphi 0, %s34
    %s38 = sphi 0, %s37
    %s54 = sphi 0, %s38
    %s60 = sphi 0, %s62
    %s63 = sphi 0, %s60
    %s64 = sphi 0, %s63
    %s80 = sphi 0, %s64
    %s86 = sphi 0, %s88
    %s89 = sphi 0, %s86
    %s90 = sphi 0, %s89
    %s106 = sphi 0, %s90
    %s112 = sphi 0, %s114
    %s115 = sphi 0, %s112
    %s116 = sphi 0, %s115
    %s132 = sphi 0, %s116
    %s140 = sphi 0, %s142
    %s143 = sphi 0, %s140
    %s144 = sphi 0, %s143
    %s160 = sphi 0, %s144
  $region4: #{bert_classifier_forward.12} parent=0 // loop_header_branch
    %13 = sbr.rel (%p11) target = $region8
  $region5: #{bert_classifier_forward.12} parent=0 // loop_body
    %s15 = ssub.s32 %s10, 1
    %s16 = ssub.s32 %s10, 2
    %s23 = sadd.s32 1, %s18
    %p24 = scmp.ge.s32.totalorder %s23, 1
    %s25 = scalar_select %p24, 0, %s23
    %s26 = sadd.s32 1, %s17
    %s27 = scalar_select %p24, %s26, %s17
    %p28 = scmp.ge.s32.totalorder %s27, 2
    %s29 = scalar_select %p28, 0, %s27
    %s30 = ssub.s32 %s17, %s29
    %s31 = ssub.s32 %s18, %s25
    %s32 = sor.u32 %s30, %s31
    %p33 = scmp.eq.s32.totalorder %s32, 0
    %s35 = sadd.s32 %s34, 1
    %s36 = scalar_select %p33, %s34, %s35
    %p39 = pneg %p33
    %p40 = scmp.eq.s32.totalorder %s10, 1
    %p41 = por %p39, %p40
    %p42 = scmp.ne.s32.totalorder %s34, %s37
    %p43 = scmp.eq.s32.totalorder %s10, 0
    %p44 = por %p42, %p43
    %p45 = scmp.ne.s32.totalorder %s34, %s37
    %p46 = scmp.eq.s32.totalorder %s15, 1
    %p47 = por %p45, %p46
    %p48 = scmp.ne.s32.totalorder %s37, %s38
    %p49 = scmp.eq.s32.totalorder %s15, 0
    %p50 = por %p48, %p49
    %p51 = scmp.ne.s32.totalorder %s37, %s38
    %p52 = scmp.eq.s32.totalorder %s16, 1
    %p53 = por %p51, %p52
    %p55 = scmp.ne.s32.totalorder %s38, %s54
    %p56 = scmp.eq.s32.totalorder %s16, 0
    %p57 = por %p55, %p56
    %s58 = ssub.s32 %s17, %s29
    %p59 = scmp.eq.s32.totalorder %s58, 0
    %s61 = sadd.s32 %s60, 1
    %s62 = scalar_select %p59, %s60, %s61
    %p65 = pneg %p59
    %p66 = scmp.eq.s32.totalorder %s10, 1
    %p67 = por %p65, %p66
    %p68 = scmp.ne.s32.totalorder %s60, %s63
    %p69 = scmp.eq.s32.totalorder %s10, 0
    %p70 = por %p68, %p69
    %p71 = scmp.ne.s32.totalorder %s60, %s63
    %p72 = scmp.eq.s32.totalorder %s15, 1
    %p73 = por %p71, %p72
    %p74 = scmp.ne.s32.totalorder %s63, %s64
    %p75 = scmp.eq.s32.totalorder %s15, 0
    %p76 = por %p74, %p75
    %p77 = scmp.ne.s32.totalorder %s63, %s64
    %p78 = scmp.eq.s32.totalorder %s16, 1
    %p79 = por %p77, %p78
    %p81 = scmp.ne.s32.totalorder %s64, %s80
    %p82 = scmp.eq.s32.totalorder %s16, 0
    %p83 = por %p81, %p82
    %s84 = ssub.s32 %s17, %s29
    %p85 = scmp.eq.s32.totalorder %s84, 0
    %s87 = sadd.s32 %s86, 1
    %s88 = scalar_select %p85, %s86, %s87
    %p91 = pneg %p85
    %p92 = scmp.eq.s32.totalorder %s10, 1
    %p93 = por %p91, %p92
    %p94 = scmp.ne.s32.totalorder %s86, %s89
    %p95 = scmp.eq.s32.totalorder %s10, 0
    %p96 = por %p94, %p95
    %p97 = scmp.ne.s32.totalorder %s86, %s89
    %p98 = scmp.eq.s32.totalorder %s15, 1
    %p99 = por %p97, %p98
    %p100 = scmp.ne.s32.totalorder %s89, %s90
    %p101 = scmp.eq.s32.totalorder %s15, 0
    %p102 = por %p100, %p101
    %p103 = scmp.ne.s32.totalorder %s89, %s90
    %p104 = scmp.eq.s32.totalorder %s16, 1
    %p105 = por %p103, %p104
    %p107 = scmp.ne.s32.totalorder %s90, %s106
    %p108 = scmp.eq.s32.totalorder %s16, 0
    %p109 = por %p107, %p108
    %s110 = ssub.s32 %s17, %s29
    %p111 = scmp.eq.s32.totalorder %s110, 0
    %s113 = sadd.s32 %s112, 1
    %s114 = scalar_select %p111, %s112, %s113
    %p117 = pneg %p111
    %p118 = scmp.eq.s32.totalorder %s10, 1
    %p119 = por %p117, %p118
    %p120 = scmp.ne.s32.totalorder %s112, %s115
    %p121 = scmp.eq.s32.totalorder %s10, 0
    %p122 = por %p120, %p121
    %p123 = scmp.ne.s32.totalorder %s112, %s115
    %p124 = scmp.eq.s32.totalorder %s15, 1
    %p125 = por %p123, %p124
    %p126 = scmp.ne.s32.totalorder %s115, %s116
    %p127 = scmp.eq.s32.totalorder %s15, 0
    %p128 = por %p126, %p127
    %p129 = scmp.ne.s32.totalorder %s115, %s116
    %p130 = scmp.eq.s32.totalorder %s16, 1
    %p131 = por %p129, %p130
    %p133 = scmp.ne.s32.totalorder %s116, %s132
    %p134 = scmp.eq.s32.totalorder %s16, 0
    %p135 = por %p133, %p134
    %s136 = ssub.s32 %s17, %s29
    %s137 = ssub.s32 %s18, %s25
    %s138 = sor.u32 %s136, %s137
    %p139 = scmp.eq.s32.totalorder %s138, 0
    %s141 = sadd.s32 %s140, 1
    %s142 = scalar_select %p139, %s140, %s141
    %p145 = pneg %p139
    %p146 = scmp.eq.s32.totalorder %s10, 1
    %p147 = por %p145, %p146
    %p148 = scmp.ne.s32.totalorder %s140, %s143
    %p149 = scmp.eq.s32.totalorder %s10, 0
    %p150 = por %p148, %p149
    %p151 = scmp.ne.s32.totalorder %s140, %s143
    %p152 = scmp.eq.s32.totalorder %s15, 1
    %p153 = por %p151, %p152
    %p154 = scmp.ne.s32.totalorder %s143, %s144
    %p155 = scmp.eq.s32.totalorder %s15, 0
    %p156 = por %p154, %p155
    %p157 = scmp.ne.s32.totalorder %s143, %s144
    %p158 = scmp.eq.s32.totalorder %s16, 1
    %p159 = por %p157, %p158
    %p161 = scmp.ne.s32.totalorder %s144, %s160
    %p162 = scmp.eq.s32.totalorder %s16, 0
    %p163 = por %p161, %p162
    %p164 = scmp.le.s32.totalorder 1, %s10
    %p165 = scmp.lt.s32.totalorder %s10, 3
    %p166 = pnand %p164, %p165
    %p167 = pneg %p166
    // Predicated region
    $region9: #{bert_classifier_forward.12} parent=5 // pred_check
      _
    $region10: #{bert_classifier_forward.12} parent=5 // pred_check_branch
      %169 = sbr.rel (%p166) target = $region12
    $region11: #{bert_classifier_forward.12} parent=5 // pred_region
      %s170 = ssub.s32 %s10, 1
    $region12: #{bert_classifier_forward.12} parent=5 // pred_fallthru
      _
    %p171 = scmp.lt.s32.totalorder %s10, 2
    // Predicated region
    $region13: #{bert_classifier_forward.12} parent=5 // pred_check
      %p172 = pneg %p171
    $region14: #{bert_classifier_forward.12} parent=5 // pred_check_branch
      %174 = sbr.rel (%p172) target = $region16
    $region15: #{bert_classifier_forward.12} parent=5 // pred_region
      // Predicated region
      $region17: #{bert_classifier_forward.12} parent=15 // pred_check
        %p175 = pneg %p44
      $region18: #{bert_classifier_forward.12} parent=15 // pred_check_branch
        %177 = sbr.rel (%p175) target = $region20
      $region19: #{bert_classifier_forward.12} parent=15 // pred_region
        %p178 = scmp.lt.s32.totalorder %s17, 1
        %s179 = scalar_select %p178, %s17, 1
        %p180 = scmp.lt.s32.totalorder %s18, 0
        %s181 = scalar_select %p180, %s18, 0
        %s182 = sadd.s32 %s181, %s179
        %s183 = smul.addr %s182, 4
        %s184 = scalar_lea.vmem %s0, %s183
      $region20: #{bert_classifier_forward.12} parent=15 // pred_fallthru
        _
      // Predicated region
      $region21: #{bert_classifier_forward.12} parent=15 // pred_check
        %p185 = pneg %p70
      $region22: #{bert_classifier_forward.12} parent=15 // pred_check_branch
        %187 = sbr.rel (%p185) target = $region24
      $region23: #{bert_classifier_forward.12} parent=15 // pred_region
        %p188 = scmp.lt.s32.totalorder %s17, 1
        %s189 = scalar_select %p188, %s17, 1
        %s190 = sadd.s32 %s189, 2
        %s191 = smul.addr %s190, 4
        %s192 = scalar_lea.vmem %s1, %s191
      $region24: #{bert_classifier_forward.12} parent=15 // pred_fallthru
        _
      // Predicated region
      $region25: #{bert_classifier_forward.12} parent=15 // pred_check
        %p193 = pneg %p96
      $region26: #{bert_classifier_forward.12} parent=15 // pred_check_branch
        %195 = sbr.rel (%p193) target = $region28
      $region27: #{bert_classifier_forward.12} parent=15 // pred_region
        %p196 = scmp.lt.s32.totalorder %s17, 1
        %s197 = scalar_select %p196, %s17, 1
        %s198 = sadd.s32 %s197, 4
        %s199 = smul.addr %s198, 4
        %s200 = scalar_lea.vmem %s2, %s199
      $region28: #{bert_classifier_forward.12} parent=15 // pred_fallthru
        _
      // Predicated region
      $region29: #{bert_classifier_forward.12} parent=15 // pred_check
        %p201 = pneg %p122
      $region30: #{bert_classifier_forward.12} parent=15 // pred_check_branch
        %203 = sbr.rel (%p201) target = $region32
      $region31: #{bert_classifier_forward.12} parent=15 // pred_region
        %p204 = scmp.lt.s32.totalorder %s17, 1
        %s205 = scalar_select %p204, %s17, 1
        %s206 = scalar_lea.vmem %s3, %s205
      $region32: #{bert_classifier_forward.12} parent=15 // pred_fallthru
        _
    $region16: #{bert_classifier_forward.12} parent=5 // pred_fallthru
      _
    %p207 = scmp.le.s32.totalorder 1, %s10
    %p208 = scmp.lt.s32.totalorder %s10, 3
    %p209 = pnand %p207, %p208
    %p210 = pneg %p209
    // Predicated region
    $region33: #{bert_classifier_forward.12} parent=5 // pred_check
      _
    $region34: #{bert_classifier_forward.12} parent=5 // pred_check_branch
      %212 = sbr.rel (%p209) target = $region36
    $region35: #{bert_classifier_forward.12} parent=5 // pred_region
      %s213 = ssub.s32 %s10, 1
      %p214 = scmp.lt.s32.totalorder %s19, 1
      %s215 = scalar_select %p214, %s19, 1
      %p216 = scmp.lt.s32.totalorder %s20, 0
      %s217 = scalar_select %p216, %s20, 0
      %s218 = sadd.s32 %s217, %s215
      %s219 = smul.addr %s218, 4
      %s220 = scalar_lea.vmem %s0, %s219
      %p221 = pneg %p50
      %p222 = pneg %p47
      %p223 = scmp.lt.s32.totalorder %s19, 1
      %s224 = scalar_select %p223, %s19, 1
      %s225 = sadd.s32 %s224, 2
      %s226 = smul.addr %s225, 4
      %s227 = scalar_lea.vmem %s1, %s226
      %p228 = pneg %p76
      %p229 = pneg %p73
      %p230 = scmp.lt.s32.totalorder %s19, 1
      %s231 = scalar_select %p230, %s19, 1
      %s232 = sadd.s32 %s231, 4
      %s233 = smul.addr %s232, 4
      %s234 = scalar_lea.vmem %s2, %s233
      %p235 = pneg %p102
      %p236 = pneg %p99
      %p237 = scmp.lt.s32.totalorder %s19, 1
      %s238 = scalar_select %p237, %s19, 1
      %s239 = scalar_lea.vmem %s3, %s238
      %p240 = pneg %p128
      %p241 = pneg %p125
      %p242 = pneg %p156
      %p243 = pneg %p153
      %p244 = scmp.lt.s32.totalorder %s19, 1
      %s245 = scalar_select %p244, %s19, 1
      %p246 = scmp.lt.s32.totalorder %s20, 0
      %s247 = scalar_select %p246, %s20, 0
      %s248 = sadd.s32 %s247, %s245
      %s249 = smul.addr %s248, 4
      %s250 = scalar_lea.vmem %s4, %s249
      %p251 = scmp.lt.s32.totalorder %s19, 1
      %s252 = scalar_select %p251, %s19, 1
      %p253 = scmp.lt.s32.totalorder %s20, 0
      %s254 = scalar_select %p253, %s20, 0
      %s255 = sadd.s32 %s254, %s252
      %s256 = smul.addr %s255, 4
      %s257 = scalar_lea.vmem %s0, %s256
      %p258 = scmp.lt.s32.totalorder %s19, 1
      %s259 = scalar_select %p258, %s19, 1
      %s260 = sadd.s32 %s259, 2
      %s261 = smul.addr %s260, 4
      %s262 = scalar_lea.vmem %s1, %s261
      %p263 = scmp.lt.s32.totalorder %s19, 1
      %s264 = scalar_select %p263, %s19, 1
      %s265 = sadd.s32 %s264, 4
      %s266 = smul.addr %s265, 4
      %s267 = scalar_lea.vmem %s2, %s266
      %p268 = scmp.lt.s32.totalorder %s19, 1
      %s269 = scalar_select %p268, %s19, 1
      %s270 = scalar_lea.vmem %s3, %s269
      %p271 = scmp.lt.s32.totalorder %s19, 1
      %s272 = scalar_select %p271, %s19, 1
      %p273 = scmp.lt.s32.totalorder %s20, 0
      %s274 = scalar_select %p273, %s20, 0
      %s275 = sadd.s32 %s274, %s272
      %s276 = smul.addr %s275, 4
      %s277 = scalar_lea.vmem %s4, %s276
      %v279 = vld [vmem:[%s270] sm:$0x1]
      %v280 = vld [vmem:[%s257] sm:$0xf]
      %v281 = vld [vmem:[%s262] sm:$0xf]
      %v282 = vld [vmem:[%s267] sm:$0xf]
      %vm283 = vcmask 64512
      %v285 = vsel %vm283, %v280, 0
      %v288 = vsel %vm283, %v281, 0
      %290 = vmatprep.subr.bf16.mxu0 0
      %291 = vmatpush1.bf16.xpose.msra.mxu0 %v288
      %292 = vmatprep.subr.bf16.mxu0 0
      %293 = vmatpush1.bf16.xpose.msra.mxu0 0
      %294 = vmatprep.subr.bf16.mxu0 0
      %295 = vmatpush1.bf16.xpose.msra.mxu0 0
      %296 = vmatprep.subr.bf16.mxu0 0
      %297 = vmatpush1.bf16.xpose.msra.mxu0 0
      %298 = vmatprep.subr.bf16.mxu0 0
      %299 = vmatpush1.bf16.xpose.msra.mxu0 0
      %300 = vmatprep.subr.bf16.mxu0 0
      %301 = vmatpush1.bf16.xpose.msra.mxu0 0
      %302 = vmatprep.subr.bf16.mxu0 0
      %303 = vmatpush1.bf16.xpose.msra.mxu0 0
      %304 = vmatprep.subr.bf16.mxu0 0
      %305 = vmatpush1.bf16.xpose.msra.mxu0 0
      %306 = vmatprep.subr.bf16.mxu0 0
      %307 = vmatpush1.bf16.xpose.msra.mxu0 0
      %308 = vmatprep.subr.bf16.mxu0 0
      %309 = vmatpush1.bf16.xpose.msra.mxu0 0
      %310 = vmatprep.subr.bf16.mxu0 0
      %311 = vmatpush1.bf16.xpose.msra.mxu0 0
      %312 = vmatprep.subr.bf16.mxu0 0
      %313 = vmatpush1.bf16.xpose.msra.mxu0 0
      %314 = vmatprep.subr.bf16.mxu0 0
      %315 = vmatpush1.bf16.xpose.msra.mxu0 0
      %316 = vmatprep.subr.bf16.mxu0 0
      %317 = vmatpush1.bf16.xpose.msra.mxu0 0
      %318 = vmatprep.subr.bf16.mxu0 0
      %319 = vmatpush1.bf16.xpose.msra.mxu0 0
      %320 = vmatprep.subr.bf16.mxu0 0
      %321 = vmatpush1.bf16.xpose.msra.mxu0 0
      %322 = vmatprep.mubr.bf16.mxu0 0
      %323 = vmatmul.mubr.bf16.gmra.mrb[0].mxu0 %v285
      %v324 = vpop.f32.mrb[0].mxu0
      %v325 = vadd.f32 0.0, %v324
      %v326 = vpop.f32.mrb[0].mxu0
      %v327 = vpop.f32.mrb[0].mxu0
      %v328 = vpop.f32.mrb[0].mxu0
      %329 = vdwg.mxu0
      %v330 = vmul.f32 %v325, 0.35355338
      %v332 = vlaneseq
      %v333 = vshrl.u32 %v332, 7
      %v334 = vsub.s32 0, %v333
      %v335 = vrot.slane %v279, %v334
      %v337 = vadd.f32 %v330, %v335
      %v338 = vsel %vm283, %v337, -inf
      %339 = vmax.xlane.f32.xlu0 %v338
      %v340 = vpop.xlane.xlu0 %339
      %v341 = vsub.f32 %v337, %v340
      %v342 = vmul.f32 %v341, 1.442695
      %v343 = vpow.pop %v342
      %v344 = vsel %vm283, %v343, 0.0
      %345 = vadd.xlane.f32.xlu0 %v344
      %v346 = vpop.xlane.xlu0 %345
      %v347 = vpack.c.bf16 %v343, %v343
      %v349 = vsel %vm283, %v347, 0
      %vm351 = vcmask 1043456
      %v353 = vsel %vm351, %v282, 0
      %355 = vmatprep.subr.bf16.mxu0 0
      %356 = vmatpush1.bf16.msra.mxu0 %v353
      %357 = vmatprep.subr.bf16.mxu0 0
      %358 = vmatpush1.bf16.msra.mxu0 0
      %359 = vmatprep.subr.bf16.mxu0 0
      %360 = vmatpush1.bf16.msra.mxu0 0
      %361 = vmatprep.subr.bf16.mxu0 0
      %362 = vmatpush1.bf16.msra.mxu0 0
      %363 = vmatprep.subr.bf16.mxu0 0
      %364 = vmatpush1.bf16.msra.mxu0 0
      %365 = vmatprep.subr.bf16.mxu0 0
      %366 = vmatpush1.bf16.msra.mxu0 0
      %367 = vmatprep.subr.bf16.mxu0 0
      %368 = vmatpush1.bf16.msra.mxu0 0
      %369 = vmatprep.subr.bf16.mxu0 0
      %370 = vmatpush1.bf16.msra.mxu0 0
      %371 = vmatprep.subr.bf16.mxu0 0
      %372 = vmatpush1.bf16.msra.mxu0 0
      %373 = vmatprep.subr.bf16.mxu0 0
      %374 = vmatpush1.bf16.msra.mxu0 0
      %375 = vmatprep.subr.bf16.mxu0 0
      %376 = vmatpush1.bf16.msra.mxu0 0
      %377 = vmatprep.subr.bf16.mxu0 0
      %378 = vmatpush1.bf16.msra.mxu0 0
      %379 = vmatprep.subr.bf16.mxu0 0
      %380 = vmatpush1.bf16.msra.mxu0 0
      %381 = vmatprep.subr.bf16.mxu0 0
      %382 = vmatpush1.bf16.msra.mxu0 0
      %383 = vmatprep.subr.bf16.mxu0 0
      %384 = vmatpush1.bf16.msra.mxu0 0
      %385 = vmatprep.subr.bf16.mxu0 0
      %386 = vmatpush1.bf16.msra.mxu0 0
      %387 = vmatprep.mubr.bf16.mxu0 0
      %388 = vmatmul.mubr.bf16.gmra.mrb[0].mxu0 %v349
      %v389 = vpop.f32.mrb[0].mxu0
      %v390 = vadd.f32 0.0, %v389
      %v391 = vpop.f32.mrb[0].mxu0
      %v392 = vpop.f32.mrb[0].mxu0
      %v393 = vpop.f32.mrb[0].mxu0
      %394 = vdwg.mxu0
      %v395 = vrcp.pop %v346
      %v396 = vmul.f32 %v390, %v395
      %v397 = vpack.c.bf16 %v396, %v396
      %vm398 = vcmask 60416
      %399 = vst.msk [vmem:[%s277] sm:$0xf] %vm398, %v397
      %v400 = vld [vmem:[%s257] sm:$0xf]
      %v401 = vld [vmem:[%s262] sm:$0xf]
      %v402 = vld [vmem:[%s267] sm:$0xf]
      %v404 = vunpack.c.l.b16 %v400
      %v405 = vpack.c.b16 %v404, %v404
      %406 = vrot.lane.b32.xlu0 %v405, 120
      %v407 = vpop.permute.xlu0 %406
      %v409 = vunpack.c.l.b16 %v401
      %v410 = vpack.c.b16 %v409, %v409
      %411 = vrot.lane.b32.xlu0 %v410, 120
      %v412 = vpop.permute.xlu0 %411
      %v414 = vsel %vm283, %v407, 0
      %v417 = vsel %vm283, %v412, 0
      %419 = vmatprep.subr.bf16.mxu0 0
      %420 = vmatpush1.bf16.xpose.msra.mxu0 %v417
      %421 = vmatprep.subr.bf16.mxu0 0
      %422 = vmatpush1.bf16.xpose.msra.mxu0 0
      %423 = vmatprep.subr.bf16.mxu0 0
      %424 = vmatpush1.bf16.xpose.msra.mxu0 0
      %425 = vmatprep.subr.bf16.mxu0 0
      %426 = vmatpush1.bf16.xpose.msra.mxu0 0
      %427 = vmatprep.subr.bf16.mxu0 0
      %428 = vmatpush1.bf16.xpose.msra.mxu0 0
      %429 = vmatprep.subr.bf16.mxu0 0
      %430 = vmatpush1.bf16.xpose.msra.mxu0 0
      %431 = vmatprep.subr.bf16.mxu0 0
      %432 = vmatpush1.bf16.xpose.msra.mxu0 0
      %433 = vmatprep.subr.bf16.mxu0 0
      %434 = vmatpush1.bf16.xpose.msra.mxu0 0
      %435 = vmatprep.subr.bf16.mxu0 0
      %436 = vmatpush1.bf16.xpose.msra.mxu0 0
      %437 = vmatprep.subr.bf16.mxu0 0
      %438 = vmatpush1.bf16.xpose.msra.mxu0 0
      %439 = vmatprep.subr.bf16.mxu0 0
      %440 = vmatpush1.bf16.xpose.msra.mxu0 0
      %441 = vmatprep.subr.bf16.mxu0 0
      %442 = vmatpush1.bf16.xpose.msra.mxu0 0
      %443 = vmatprep.subr.bf16.mxu0 0
      %444 = vmatpush1.bf16.xpose.msra.mxu0 0
      %445 = vmatprep.subr.bf16.mxu0 0
      %446 = vmatpush1.bf16.xpose.msra.mxu0 0
      %447 = vmatprep.subr.bf16.mxu0 0
      %448 = vmatpush1.bf16.xpose.msra.mxu0 0
      %449 = vmatprep.subr.bf16.mxu0 0
      %450 = vmatpush1.bf16.xpose.msra.mxu0 0
      %451 = vmatprep.mubr.bf16.mxu0 0
      %452 = vmatmul.mubr.bf16.gmra.mrb[0].mxu0 %v414
      %v453 = vpop.f32.mrb[0].mxu0
      %v454 = vadd.f32 0.0, %v453
      %v455 = vpop.f32.mrb[0].mxu0
      %v456 = vpop.f32.mrb[0].mxu0
      %v457 = vpop.f32.mrb[0].mxu0
      %458 = vdwg.mxu0
      %v459 = vmul.f32 %v454, 0.35355338
      %v460 = vadd.f32 %v459, %v335
      %v461 = vsel %vm283, %v460, -inf
      %462 = vmax.xlane.f32.xlu0 %v461
      %v463 = vpop.xlane.xlu0 %462
      %v464 = vsub.f32 %v460, %v463
      %v465 = vmul.f32 %v464, 1.442695
      %v466 = vpow.pop %v465
      %v467 = vsel %vm283, %v466, 0.0
      %468 = vadd.xlane.f32.xlu0 %v467
      %v469 = vpop.xlane.xlu0 %468
      %v470 = vpack.c.bf16 %v466, %v466
      %v472 = vunpack.c.l.b16 %v402
      %v473 = vpack.c.b16 %v472, %v472
      %474 = vrot.lane.b32.xlu0 %v473, 120
      %v475 = vpop.permute.xlu0 %474
      %v477 = vsel %vm283, %v470, 0
      %v480 = vsel %vm351, %v475, 0
      %482 = vmatprep.subr.bf16.mxu0 0
      %483 = vmatpush1.bf16.msra.mxu0 %v480
      %484 = vmatprep.subr.bf16.mxu0 0
      %485 = vmatpush1.bf16.msra.mxu0 0
      %486 = vmatprep.subr.bf16.mxu0 0
      %487 = vmatpush1.bf16.msra.mxu0 0
      %488 = vmatprep.subr.bf16.mxu0 0
      %489 = vmatpush1.bf16.msra.mxu0 0
      %490 = vmatprep.subr.bf16.mxu0 0
      %491 = vmatpush1.bf16.msra.mxu0 0
      %492 = vmatprep.subr.bf16.mxu0 0
      %493 = vmatpush1.bf16.msra.mxu0 0
      %494 = vmatprep.subr.bf16.mxu0 0
      %495 = vmatpush1.bf16.msra.mxu0 0
      %496 = vmatprep.subr.bf16.mxu0 0
      %497 = vmatpush1.bf16.msra.mxu0 0
      %498 = vmatprep.subr.bf16.mxu0 0
      %499 = vmatpush1.bf16.msra.mxu0 0
      %500 = vmatprep.subr.bf16.mxu0 0
      %501 = vmatpush1.bf16.msra.mxu0 0
      %502 = vmatprep.subr.bf16.mxu0 0
      %503 = vmatpush1.bf16.msra.mxu0 0
      %504 = vmatprep.subr.bf16.mxu0 0
      %505 = vmatpush1.bf16.msra.mxu0 0
      %506 = vmatprep.subr.bf16.mxu0 0
      %507 = vmatpush1.bf16.msra.mxu0 0
      %508 = vmatprep.subr.bf16.mxu0 0
      %509 = vmatpush1.bf16.msra.mxu0 0
      %510 = vmatprep.subr.bf16.mxu0 0
      %511 = vmatpush1.bf16.msra.mxu0 0
      %512 = vmatprep.subr.bf16.mxu0 0
      %513 = vmatpush1.bf16.msra.mxu0 0
      %514 = vmatprep.mubr.bf16.mxu0 0
      %515 = vmatmul.mubr.bf16.gmra.mrb[0].mxu0 %v477
      %v516 = vpop.f32.mrb[0].mxu0
      %v517 = vadd.f32 0.0, %v516
      %v518 = vpop.f32.mrb[0].mxu0
      %v519 = vpop.f32.mrb[0].mxu0
      %v520 = vpop.f32.mrb[0].mxu0
      %521 = vdwg.mxu0
      %v522 = vrcp.pop %v469
      %v523 = vmul.f32 %v517, %v522
      %v524 = vpack.c.bf16 %v523, %v523
      %v526 = vunpack.c.l.b16 %v524
      %v527 = vpack.c.b16 %v526, %v526
      %528 = vrot.lane.b32.xlu0 %v527, 8
      %v529 = vpop.permute.xlu0 %528
      %vm531 = vcmask 126016
      %532 = vst.msk [vmem:[%s277] sm:$0xf] %vm531, %v529
      %v533 = vld [vmem:[%s257] sm:$0xf]
      %v534 = vld [vmem:[%s262] sm:$0xf]
      %v535 = vld [vmem:[%s267] sm:$0xf]
      %v537 = vunpack.c.l.b16 %v533
      %v538 = vpack.c.b16 %v537, %v537
      %539 = vrot.lane.b32.xlu0 %v538, 112
      %v540 = vpop.permute.xlu0 %539
      %v542 = vunpack.c.l.b16 %v534
      %v543 = vpack.c.b16 %v542, %v542
      %544 = vrot.lane.b32.xlu0 %v543, 112
      %v545 = vpop.permute.xlu0 %544
      %v547 = vsel %vm283, %v540, 0
      %v550 = vsel %vm283, %v545, 0
      %552 = vmatprep.subr.bf16.mxu0 0
      %553 = vmatpush1.bf16.xpose.msra.mxu0 %v550
      %554 = vmatprep.subr.bf16.mxu0 0
      %555 = vmatpush1.bf16.xpose.msra.mxu0 0
      %556 = vmatprep.subr.bf16.mxu0 0
      %557 = vmatpush1.bf16.xpose.msra.mxu0 0
      %558 = vmatprep.subr.bf16.mxu0 0
      %559 = vmatpush1.bf16.xpose.msra.mxu0 0
      %560 = vmatprep.subr.bf16.mxu0 0
      %561 = vmatpush1.bf16.xpose.msra.mxu0 0
      %562 = vmatprep.subr.bf16.mxu0 0
      %563 = vmatpush1.bf16.xpose.msra.mxu0 0
      %564 = vmatprep.subr.bf16.mxu0 0
      %565 = vmatpush1.bf16.xpose.msra.mxu0 0
      %566 = vmatprep.subr.bf16.mxu0 0
      %567 = vmatpush1.bf16.xpose.msra.mxu0 0
      %568 = vmatprep.subr.bf16.mxu0 0
      %569 = vmatpush1.bf16.xpose.msra.mxu0 0
      %570 = vmatprep.subr.bf16.mxu0 0
      %571 = vmatpush1.bf16.xpose.msra.mxu0 0
      %572 = vmatprep.subr.bf16.mxu0 0
      %573 = vmatpush1.bf16.xpose.msra.mxu0 0
      %574 = vmatprep.subr.bf16.mxu0 0
      %575 = vmatpush1.bf16.xpose.msra.mxu0 0
      %576 = vmatprep.subr.bf16.mxu0 0
      %577 = vmatpush1.bf16.xpose.msra.mxu0 0
      %578 = vmatprep.subr.bf16.mxu0 0
      %579 = vmatpush1.bf16.xpose.msra.mxu0 0
      %580 = vmatprep.subr.bf16.mxu0 0
      %581 = vmatpush1.bf16.xpose.msra.mxu0 0
      %582 = vmatprep.subr.bf16.mxu0 0
      %583 = vmatpush1.bf16.xpose.msra.mxu0 0
      %584 = vmatprep.mubr.bf16.mxu0 0
      %585 = vmatmul.mubr.bf16.gmra.mrb[0].mxu0 %v547
      %v586 = vpop.f32.mrb[0].mxu0
      %v587 = vadd.f32 0.0, %v586
      %v588 = vpop.f32.mrb[0].mxu0
      %v589 = vpop.f32.mrb[0].mxu0
      %v590 = vpop.f32.mrb[0].mxu0
      %591 = vdwg.mxu0
      %v592 = vmul.f32 %v587, 0.35355338
      %v593 = vadd.f32 %v592, %v335
      %v594 = vsel %vm283, %v593, -inf
      %595 = vmax.xlane.f32.xlu0 %v594
      %v596 = vpop.xlane.xlu0 %595
      %v597 = vsub.f32 %v593, %v596
      %v598 = vmul.f32 %v597, 1.442695
      %v599 = vpow.pop %v598
      %v600 = vsel %vm283, %v599, 0.0
      %601 = vadd.xlane.f32.xlu0 %v600
      %v602 = vpop.xlane.xlu0 %601
      %v603 = vpack.c.bf16 %v599, %v599
      %v605 = vunpack.c.l.b16 %v535
      %v606 = vpack.c.b16 %v605, %v605
      %607 = vrot.lane.b32.xlu0 %v606, 112
      %v608 = vpop.permute.xlu0 %607
      %v610 = vsel %vm283, %v603, 0
      %v613 = vsel %vm351, %v608, 0
      %615 = vmatprep.subr.bf16.mxu0 0
      %616 = vmatpush1.bf16.msra.mxu0 %v613
      %617 = vmatprep.subr.bf16.mxu0 0
      %618 = vmatpush1.bf16.msra.mxu0 0
      %619 = vmatprep.subr.bf16.mxu0 0
      %620 = vmatpush1.bf16.msra.mxu0 0
      %621 = vmatprep.subr.bf16.mxu0 0
      %622 = vmatpush1.bf16.msra.mxu0 0
      %623 = vmatprep.subr.bf16.mxu0 0
      %624 = vmatpush1.bf16.msra.mxu0 0
      %625 = vmatprep.subr.bf16.mxu0 0
      %626 = vmatpush1.bf16.msra.mxu0 0
      %627 = vmatprep.subr.bf16.mxu0 0
      %628 = vmatpush1.bf16.msra.mxu0 0
      %629 = vmatprep.subr.bf16.mxu0 0
      %630 = vmatpush1.bf16.msra.mxu0 0
      %631 = vmatprep.subr.bf16.mxu0 0
      %632 = vmatpush1.bf16.msra.mxu0 0
      %633 = vmatprep.subr.bf16.mxu0 0
      %634 = vmatpush1.bf16.msra.mxu0 0
      %635 = vmatprep.subr.bf16.mxu0 0
      %636 = vmatpush1.bf16.msra.mxu0 0
      %637 = vmatprep.subr.bf16.mxu0 0
      %638 = vmatpush1.bf16.msra.mxu0 0
      %639 = vmatprep.subr.bf16.mxu0 0
      %640 = vmatpush1.bf16.msra.mxu0 0
      %641 = vmatprep.subr.bf16.mxu0 0
      %642 = vmatpush1.bf16.msra.mxu0 0
      %643 = vmatprep.subr.bf16.mxu0 0
      %644 = vmatpush1.bf16.msra.mxu0 0
      %645 = vmatprep.subr.bf16.mxu0 0
      %646 = vmatpush1.bf16.msra.mxu0 0
      %647 = vmatprep.mubr.bf16.mxu0 0
      %648 = vmatmul.mubr.bf16.gmra.mrb[0].mxu0 %v610
      %v649 = vpop.f32.mrb[0].mxu0
      %v650 = vadd.f32 0.0, %v649
      %v651 = vpop.f32.mrb[0].mxu0
      %v652 = vpop.f32.mrb[0].mxu0
      %v653 = vpop.f32.mrb[0].mxu0
      %654 = vdwg.mxu0
      %v655 = vrcp.pop %v602
      %v656 = vmul.f32 %v650, %v655
      %v657 = vpack.c.bf16 %v656, %v656
      %v659 = vunpack.c.l.b16 %v657
      %v660 = vpack.c.b16 %v659, %v659
      %661 = vrot.lane.b32.xlu0 %v660, 16
      %v662 = vpop.permute.xlu0 %661
      %vm664 = vcmask 191616
      %665 = vst.msk [vmem:[%s277] sm:$0xf] %vm664, %v662
      %v666 = vld [vmem:[%s257] sm:$0xf]
      %v667 = vld [vmem:[%s262] sm:$0xf]
      %v668 = vld [vmem:[%s267] sm:$0xf]
      %v670 = vunpack.c.l.b16 %v666
      %v671 = vpack.c.b16 %v670, %v670
      %672 = vrot.lane.b32.xlu0 %v671, 104
      %v673 = vpop.permute.xlu0 %672
      %v675 = vunpack.c.l.b16 %v667
      %v676 = vpack.c.b16 %v675, %v675
      %677 = vrot.lane.b32.xlu0 %v676, 104
      %v678 = vpop.permute.xlu0 %677
      %v680 = vsel %vm283, %v673, 0
      %v683 = vsel %vm283, %v678, 0
      %685 = vmatprep.subr.bf16.mxu0 0
      %686 = vmatpush1.bf16.xpose.msra.mxu0 %v683
      %687 = vmatprep.subr.bf16.mxu0 0
      %688 = vmatpush1.bf16.xpose.msra.mxu0 0
      %689 = vmatprep.subr.bf16.mxu0 0
      %690 = vmatpush1.bf16.xpose.msra.mxu0 0
      %691 = vmatprep.subr.bf16.mxu0 0
      %692 = vmatpush1.bf16.xpose.msra.mxu0 0
      %693 = vmatprep.subr.bf16.mxu0 0
      %694 = vmatpush1.bf16.xpose.msra.mxu0 0
      %695 = vmatprep.subr.bf16.mxu0 0
      %696 = vmatpush1.bf16.xpose.msra.mxu0 0
      %697 = vmatprep.subr.bf16.mxu0 0
      %698 = vmatpush1.bf16.xpose.msra.mxu0 0
      %699 = vmatprep.subr.bf16.mxu0 0
      %700 = vmatpush1.bf16.xpose.msra.mxu0 0
      %701 = vmatprep.subr.bf16.mxu0 0
      %702 = vmatpush1.bf16.xpose.msra.mxu0 0
      %703 = vmatprep.subr.bf16.mxu0 0
      %704 = vmatpush1.bf16.xpose.msra.mxu0 0
      %705 = vmatprep.subr.bf16.mxu0 0
      %706 = vmatpush1.bf16.xpose.msra.mxu0 0
      %707 = vmatprep.subr.bf16.mxu0 0
      %708 = vmatpush1.bf16.xpose.msra.mxu0 0
      %709 = vmatprep.subr.bf16.mxu0 0
      %710 = vmatpush1.bf16.xpose.msra.mxu0 0
      %711 = vmatprep.subr.bf16.mxu0 0
      %712 = vmatpush1.bf16.xpose.msra.mxu0 0
      %713 = vmatprep.subr.bf16.mxu0 0
      %714 = vmatpush1.bf16.xpose.msra.mxu0 0
      %715 = vmatprep.subr.bf16.mxu0 0
      %716 = vmatpush1.bf16.xpose.msra.mxu0 0
      %717 = vmatprep.mubr.bf16.mxu0 0
      %718 = vmatmul.mubr.bf16.gmra.mrb[0].mxu0 %v680
      %v719 = vpop.f32.mrb[0].mxu0
      %v720 = vadd.f32 0.0, %v719
      %v721 = vpop.f32.mrb[0].mxu0
      %v722 = vpop.f32.mrb[0].mxu0
      %v723 = vpop.f32.mrb[0].mxu0
      %724 = vdwg.mxu0
      %v725 = vmul.f32 %v720, 0.35355338
      %v726 = vadd.f32 %v725, %v335
      %v727 = vsel %vm283, %v726, -inf
      %728 = vmax.xlane.f32.xlu0 %v727
      %v729 = vpop.xlane.xlu0 %728
      %v730 = vsub.f32 %v726, %v729
      %v731 = vmul.f32 %v730, 1.442695
      %v732 = vpow.pop %v731
      %v733 = vsel %vm283, %v732, 0.0
      %734 = vadd.xlane.f32.xlu0 %v733
      %v735 = vpop.xlane.xlu0 %734
      %v736 = vpack.c.bf16 %v732, %v732
      %v738 = vunpack.c.l.b16 %v668
      %v739 = vpack.c.b16 %v738, %v738
      %740 = vrot.lane.b32.xlu0 %v739, 104
      %v741 = vpop.permute.xlu0 %740
      %v743 = vsel %vm283, %v736, 0
      %v746 = vsel %vm351, %v741, 0
      %748 = vmatprep.subr.bf16.mxu0 0
      %749 = vmatpush1.bf16.msra.mxu0 %v746
      %750 = vmatprep.subr.bf16.mxu0 0
      %751 = vmatpush1.bf16.msra.mxu0 0
      %752 = vmatprep.subr.bf16.mxu0 0
      %753 = vmatpush1.bf16.msra.mxu0 0
      %754 = vmatprep.subr.bf16.mxu0 0
      %755 = vmatpush1.bf16.msra.mxu0 0
      %756 = vmatprep.subr.bf16.mxu0 0
      %757 = vmatpush1.bf16.msra.mxu0 0
      %758 = vmatprep.subr.bf16.mxu0 0
      %759 = vmatpush1.bf16.msra.mxu0 0
      %760 = vmatprep.subr.bf16.mxu0 0
      %761 = vmatpush1.bf16.msra.mxu0 0
      %762 = vmatprep.subr.bf16.mxu0 0
      %763 = vmatpush1.bf16.msra.mxu0 0
      %764 = vmatprep.subr.bf16.mxu0 0
      %765 = vmatpush1.bf16.msra.mxu0 0
      %766 = vmatprep.subr.bf16.mxu0 0
      %767 = vmatpush1.bf16.msra.mxu0 0
      %768 = vmatprep.subr.bf16.mxu0 0
      %769 = vmatpush1.bf16.msra.mxu0 0
      %770 = vmatprep.subr.bf16.mxu0 0
      %771 = vmatpush1.bf16.msra.mxu0 0
      %772 = vmatprep.subr.bf16.mxu0 0
      %773 = vmatpush1.bf16.msra.mxu0 0
      %774 = vmatprep.subr.bf16.mxu0 0
      %775 = vmatpush1.bf16.msra.mxu0 0
      %776 = vmatprep.subr.bf16.mxu0 0
      %777 = vmatpush1.bf16.msra.mxu0 0
      %778 = vmatprep.subr.bf16.mxu0 0
      %779 = vmatpush1.bf16.msra.mxu0 0
      %780 = vmatprep.mubr.bf16.mxu0 0
      %781 = vmatmul.mubr.bf16.gmra.mrb[0].mxu0 %v743
      %v782 = vpop.f32.mrb[0].mxu0
      %v783 = vadd.f32 0.0, %v782
      %v784 = vpop.f32.mrb[0].mxu0
      %v785 = vpop.f32.mrb[0].mxu0
      %v786 = vpop.f32.mrb[0].mxu0
      %787 = vdwg.mxu0
      %v788 = vrcp.pop %v735
      %v789 = vmul.f32 %v783, %v788
      %v790 = vpack.c.bf16 %v789, %v789
      %v792 = vunpack.c.l.b16 %v790
      %v793 = vpack.c.b16 %v792, %v792
      %794 = vrot.lane.b32.xlu0 %v793, 24
      %v795 = vpop.permute.xlu0 %794
      %vm797 = vcmask 257216
      %798 = vst.msk [vmem:[%s277] sm:$0xf] %vm797, %v795
      %p799 = scmp.lt.s32.totalorder %s19, 1
      %s800 = scalar_select %p799, %s19, 1
      %p801 = scmp.lt.s32.totalorder %s20, 0
      %s802 = scalar_select %p801, %s20, 0
      %s803 = sadd.s32 %s802, %s800
      %s804 = smul.addr %s803, 4
      %s805 = scalar_lea.vmem %s4, %s804
      // Predicated region
      $region37: #{bert_classifier_forward.12} parent=35 // pred_check
        %p806 = pneg %p153
      $region38: #{bert_classifier_forward.12} parent=35 // pred_check_branch
        %808 = sbr.rel (%p806) target = $region40
      $region39: #{bert_classifier_forward.12} parent=35 // pred_region
        _
      $region40: #{bert_classifier_forward.12} parent=35 // pred_fallthru
        _
    $region36: #{bert_classifier_forward.12} parent=5 // pred_fallthru
      _
    %p809 = scmp.le.s32.totalorder 2, %s10
    // Predicated region
    $region41: #{bert_classifier_forward.12} parent=5 // pred_check
      %p810 = pneg %p809
    $region42: #{bert_classifier_forward.12} parent=5 // pred_check_branch
      %812 = sbr.rel (%p810) target = $region44
    $region43: #{bert_classifier_forward.12} parent=5 // pred_region
      %s813 = ssub.s32 %s10, 2
      // Predicated region
      $region45: #{bert_classifier_forward.12} parent=43 // pred_check
        %p814 = pneg %p159
      $region46: #{bert_classifier_forward.12} parent=43 // pred_check_branch
        %816 = sbr.rel (%p814) target = $region48
      $region47: #{bert_classifier_forward.12} parent=43 // pred_region
        %p817 = scmp.lt.s32.totalorder %s21, 1
        %s818 = scalar_select %p817, %s21, 1
        %p819 = scmp.lt.s32.totalorder %s22, 0
        %s820 = scalar_select %p819, %s22, 0
        %s821 = sadd.s32 %s820, %s818
        %s822 = smul.addr %s821, 4
        %s823 = scalar_lea.vmem %s4, %s822
      $region48: #{bert_classifier_forward.12} parent=43 // pred_fallthru
        _
    $region44: #{bert_classifier_forward.12} parent=5 // pred_fallthru
      _
  $region6: #{bert_classifier_forward.12} parent=0 // loop_footer
    %s14 = sadd.s32 1, %s10
  $region7: #{bert_classifier_forward.12} parent=0 // loop_footer_branch
    %9 = sbr.rel target = $region3
  $region8: #{bert_classifier_forward.12} parent=0 // loop_exit
    _

// kernel: bert_classifier_forward.19
$region0: #{bert_classifier_forward.19}
  #allocation0 [shape = 'u32[]', space=smem, size = 0x4, offset = 0x4, fixed_abs, tag = 'smem constant byte address 0x4 - core index']
  #allocation1 [shape = 'u32[144,128]{1,0:T(1,128)}', space=vmem, size = 0x12000, scoped, tag = 'internal scratch']
  #allocation2 [shape = 'f32[16,128]{1,0:T(8,128)}', space=vmem, size = 0x2000, scoped, tag = 'scratch operand']
  %s0 = inlined_call_operand.vmem [shape: bf16[16,32], index: 0, kind: input, shape index: {}]
  %s1 = inlined_call_operand.vmem [shape: bf16[32,128], index: 1, kind: input, shape index: {}]
  %s2 = inlined_call_operand.vmem [shape: f32[1,128], index: 2, kind: input, shape index: {}]
  %s3 = inlined_call_operand.vmem [shape: f32[16,128], index: 3, kind: output, shape index: {}]
  %s4 = sld [smem:[#allocation0]]
  $region30: #{bert_classifier_forward.19} parent=0
    _
  %s6 = ssub.s32 1, %s4
  %s7 = scalar_select 0, %s6, %s4
  // Predicated region
  $region2: #{bert_classifier_forward.19} parent=0 // pred_check
    _
  $region3: #{bert_classifier_forward.19} parent=0 // pred_check_branch
    %9 = sbr.rel (0) target = $region5
  $region4: #{bert_classifier_forward.19} parent=0 // pred_region
    _
  $region5: #{bert_classifier_forward.19} parent=0 // pred_fallthru
    _
  // Predicated region
  $region6: #{bert_classifier_forward.19} parent=0 // pred_check
    _
  $region7: #{bert_classifier_forward.19} parent=0 // pred_check_branch
    %11 = sbr.rel (0) target = $region9
  $region8: #{bert_classifier_forward.19} parent=0 // pred_region
    _
  $region9: #{bert_classifier_forward.19} parent=0 // pred_fallthru
    _
  // Predicated region
  $region10: #{bert_classifier_forward.19} parent=0 // pred_check
    _
  $region11: #{bert_classifier_forward.19} parent=0 // pred_check_branch
    %13 = sbr.rel (0) target = $region13
  $region12: #{bert_classifier_forward.19} parent=0 // pred_region
    _
  $region13: #{bert_classifier_forward.19} parent=0 // pred_fallthru
    _
  %p15 = scmp.eq.s32.totalorder 0, 0
  // Predicated region
  $region14: #{bert_classifier_forward.19} parent=0 // pred_check
    %p16 = pneg %p15
  $region15: #{bert_classifier_forward.19} parent=0 // pred_check_branch
    %18 = sbr.rel (%p16) target = $region17
  $region16: #{bert_classifier_forward.19} parent=0 // pred_region
    %19 = vst [vmem:[#allocation2] sm:$0xff] 0.0
    %20 = vst [vmem:[#allocation2 + $0x8] sm:$0xff] 0.0
  $region17: #{bert_classifier_forward.19} parent=0 // pred_fallthru
    _
  %v21 = vld [vmem:[#allocation2] sm:$0xff]
  %v22 = vld [vmem:[#allocation2 + $0x8] sm:$0xff]
  %v23 = vld [vmem:[%s0] sm:$0xf]
  %v24 = vld [vmem:[%s0 + $0x4] sm:$0xf]
  %v25 = vld [vmem:[%s1] sm:$0xf]
  %v26 = vld [vmem:[%s1 + $0x4] sm:$0xf]
  %v27 = vld [vmem:[%s1 + $0x8] sm:$0xf]
  %v28 = vld [vmem:[%s1 + $0xc] sm:$0xf]
  %v31 = vunpack.c.l.b16 %v23
  %v32 = vunpack.c.l.b16 %v24
  %v33 = vpack.c.b16 %v32, %v31
  %v38 = vunpack.c.l.b16 %v25
  %v39 = vunpack.c.l.b16 %v26
  %v40 = vunpack.c.l.b16 %v27
  %v41 = vunpack.c.l.b16 %v28
  %v42 = vpack.c.b16 %v39, %v38
  %v43 = vpack.c.b16 %v41, %v40
  %vm46 = vcmask 261120
  %v48 = vsel %vm46, %v33, 0
  %50 = vmatprep.subr.bf16.mxu0 0
  %51 = vmatpush1.bf16.msra.mxu0 %v42
  %52 = vmatprep.subr.bf16.mxu0 0
  %53 = vmatpush1.bf16.msra.mxu0 %v43
  %54 = vmatprep.subr.bf16.mxu0 0
  %55 = vmatpush1.bf16.msra.mxu0 0
  %56 = vmatprep.subr.bf16.mxu0 0
  %57 = vmatpush1.bf16.msra.mxu0 0
  %58 = vmatprep.subr.bf16.mxu0 0
  %59 = vmatpush1.bf16.msra.mxu0 0
  %60 = vmatprep.subr.bf16.mxu0 0
  %61 = vmatpush1.bf16.msra.mxu0 0
  %62 = vmatprep.subr.bf16.mxu0 0
  %63 = vmatpush1.bf16.msra.mxu0 0
  %64 = vmatprep.subr.bf16.mxu0 0
  %65 = vmatpush1.bf16.msra.mxu0 0
  %66 = vmatprep.subr.bf16.mxu0 0
  %67 = vmatpush1.bf16.msra.mxu0 0
  %68 = vmatprep.subr.bf16.mxu0 0
  %69 = vmatpush1.bf16.msra.mxu0 0
  %70 = vmatprep.subr.bf16.mxu0 0
  %71 = vmatpush1.bf16.msra.mxu0 0
  %72 = vmatprep.subr.bf16.mxu0 0
  %73 = vmatpush1.bf16.msra.mxu0 0
  %74 = vmatprep.subr.bf16.mxu0 0
  %75 = vmatpush1.bf16.msra.mxu0 0
  %76 = vmatprep.subr.bf16.mxu0 0
  %77 = vmatpush1.bf16.msra.mxu0 0
  %78 = vmatprep.subr.bf16.mxu0 0
  %79 = vmatpush1.bf16.msra.mxu0 0
  %80 = vmatprep.subr.bf16.mxu0 0
  %81 = vmatpush1.bf16.msra.mxu0 0
  %82 = vmatprep.mubr.bf16.mxu0 0
  %83 = vmatmul.mubr.bf16.gmra.mrb[0].mxu0 %v48
  %v84 = vpop.f32.mrb[0].mxu0
  %v85 = vadd.f32 0.0, %v84
  %v86 = vpop.f32.mrb[0].mxu0
  %v87 = vpop.f32.mrb[0].mxu0
  %v88 = vadd.f32 0.0, %v87
  %v89 = vpop.f32.mrb[0].mxu0
  %90 = vdwg.mxu0
  %v91 = vadd.f32 %v21, %v85
  %v92 = vadd.f32 %v22, %v88
  %93 = vst [vmem:[#allocation2] sm:$0xff] %v91
  %94 = vst [vmem:[#allocation2 + $0x8] sm:$0xff] %v92
  // Predicated region
  $region18: #{bert_classifier_forward.19} parent=0 // pred_check
    %p95 = pneg %p15
  $region19: #{bert_classifier_forward.19} parent=0 // pred_check_branch
    %97 = sbr.rel (%p95) target = $region21
  $region20: #{bert_classifier_forward.19} parent=0 // pred_region
    %v98 = vld [vmem:[#allocation2] sm:$0xff]
    %v99 = vld [vmem:[#allocation2 + $0x8] sm:$0xff]
    %v100 = vld [vmem:[%s2] sm:$0x1]
    %v102 = vlaneseq
    %v103 = vshrl.u32 %v102, 7
    %v104 = vsub.s32 0, %v103
    %v105 = vrot.slane %v100, %v104
    %v107 = vadd.f32 %v98, %v105
    %v108 = vadd.f32 %v99, %v105
    %109 = vst [vmem:[%s3] sm:$0xff] %v107
    %110 = vst [vmem:[%s3 + $0x8] sm:$0xff] %v108
  $region21: #{bert_classifier_forward.19} parent=0 // pred_fallthru
    _
  // Predicated region
  $region22: #{bert_classifier_forward.19} parent=0 // pred_check
    _
  $region23: #{bert_classifier_forward.19} parent=0 // pred_check_branch
    %112 = sbr.rel (0) target = $region25
  $region24: #{bert_classifier_forward.19} parent=0 // pred_region
    _
  $region25: #{bert_classifier_forward.19} parent=0 // pred_fallthru
    _
  // Predicated region
  $region26: #{bert_classifier_forward.19} parent=0 // pred_check
    _
  $region27: #{bert_classifier_forward.19} parent=0 // pred_check_branch
    %114 = sbr.rel (0) target = $region29
  $region28: #{bert_classifier_forward.19} parent=0 // pred_region
    _
  $region29: #{bert_classifier_forward.19} parent=0 // pred_fallthru
    _

// kernel: bert_classifier_forward.14
$region0: #{bert_classifier_forward.14}
  #allocation0 [shape = 'u32[]', space=smem, size = 0x4, offset = 0x4, fixed_abs, tag = 'smem constant byte address 0x4 - core index']
  #allocation1 [shape = 'u32[144,128]{1,0:T(1,128)}', space=vmem, size = 0x12000, scoped, tag = 'internal scratch']
  #allocation2 [shape = 'f32[16,32]{1,0:T(8,128)}', space=vmem, size = 0x2000, scoped, tag = 'scratch operand']
  %s0 = inlined_call_operand.vmem [shape: bf16[16,32], index: 0, kind: input, shape index: {}, may-alias: {0,5}]
  %s1 = inlined_call_operand.vmem [shape: bf16[32,128], index: 1, kind: input, shape index: {}]
  %s2 = inlined_call_operand.vmem [shape: f32[1,128], index: 2, kind: input, shape index: {}]
  %s3 = inlined_call_operand.vmem [shape: bf16[128,32], index: 3, kind: input, shape index: {}]
  %s4 = inlined_call_operand.vmem [shape: f32[1,32], index: 4, kind: input, shape index: {}]
  %s5 = inlined_call_operand.vmem [shape: bf16[16,32], index: 5, kind: input, shape index: {}, may-alias: {0,5}]
  %s6 = inlined_call_operand.vmem [shape: f32[1,32], index: 6, kind: input, shape index: {}]
  %s7 = inlined_call_operand.vmem [shape: f32[1,32], index: 7, kind: input, shape index: {}]
  %s8 = inlined_call_operand.vmem [shape: bf16[16,32], index: 8, kind: output, shape index: {}]
  %s9 = sld [smem:[#allocation0]]
  $region50: #{bert_classifier_forward.14} parent=0
    _
  %s11 = ssub.s32 1, %s9
  %s12 = scalar_select 0, %s11, %s9
  // Predicated region
  $region2: #{bert_classifier_forward.14} parent=0 // pred_check
    _
  $region3: #{bert_classifier_forward.14} parent=0 // pred_check_branch
    %14 = sbr.rel (0) target = $region5
  $region4: #{bert_classifier_forward.14} parent=0 // pred_region
    _
  $region5: #{bert_classifier_forward.14} parent=0 // pred_fallthru
    _
  // Predicated region
  $region6: #{bert_classifier_forward.14} parent=0 // pred_check
    _
  $region7: #{bert_classifier_forward.14} parent=0 // pred_check_branch
    %16 = sbr.rel (0) target = $region9
  $region8: #{bert_classifier_forward.14} parent=0 // pred_region
    _
  $region9: #{bert_classifier_forward.14} parent=0 // pred_fallthru
    _
  // Predicated region
  $region10: #{bert_classifier_forward.14} parent=0 // pred_check
    _
  $region11: #{bert_classifier_forward.14} parent=0 // pred_check_branch
    %18 = sbr.rel (0) target = $region13
  $region12: #{bert_classifier_forward.14} parent=0 // pred_region
    _
  $region13: #{bert_classifier_forward.14} parent=0 // pred_fallthru
    _
  // Predicated region
  $region14: #{bert_classifier_forward.14} parent=0 // pred_check
    _
  $region15: #{bert_classifier_forward.14} parent=0 // pred_check_branch
    %20 = sbr.rel (0) target = $region17
  $region16: #{bert_classifier_forward.14} parent=0 // pred_region
    _
  $region17: #{bert_classifier_forward.14} parent=0 // pred_fallthru
    _
  // Predicated region
  $region18: #{bert_classifier_forward.14} parent=0 // pred_check
    _
  $region19: #{bert_classifier_forward.14} parent=0 // pred_check_branch
    %22 = sbr.rel (0) target = $region21
  $region20: #{bert_classifier_forward.14} parent=0 // pred_region
    _
  $region21: #{bert_classifier_forward.14} parent=0 // pred_fallthru
    _
  // Predicated region
  $region22: #{bert_classifier_forward.14} parent=0 // pred_check
    _
  $region23: #{bert_classifier_forward.14} parent=0 // pred_check_branch
    %24 = sbr.rel (0) target = $region25
  $region24: #{bert_classifier_forward.14} parent=0 // pred_region
    _
  $region25: #{bert_classifier_forward.14} parent=0 // pred_fallthru
    _
  // Predicated region
  $region26: #{bert_classifier_forward.14} parent=0 // pred_check
    _
  $region27: #{bert_classifier_forward.14} parent=0 // pred_check_branch
    %26 = sbr.rel (0) target = $region29
  $region28: #{bert_classifier_forward.14} parent=0 // pred_region
    _
  $region29: #{bert_classifier_forward.14} parent=0 // pred_fallthru
    _
  // Predicated region
  $region30: #{bert_classifier_forward.14} parent=0 // pred_check
    _
  $region31: #{bert_classifier_forward.14} parent=0 // pred_check_branch
    %28 = sbr.rel (0) target = $region33
  $region32: #{bert_classifier_forward.14} parent=0 // pred_region
    _
  $region33: #{bert_classifier_forward.14} parent=0 // pred_fallthru
    _
  %p30 = scmp.eq.s32.totalorder 0, 0
  // Predicated region
  $region34: #{bert_classifier_forward.14} parent=0 // pred_check
    %p31 = pneg %p30
  $region35: #{bert_classifier_forward.14} parent=0 // pred_check_branch
    %33 = sbr.rel (%p31) target = $region37
  $region36: #{bert_classifier_forward.14} parent=0 // pred_region
    %vm34 = vcmask 261120
    %35 = vst.msk [vmem:[#allocation2] sm:$0xff] %vm34, 0.0
    %36 = vst.msk [vmem:[#allocation2 + $0x8] sm:$0xff] %vm34, 0.0
  $region37: #{bert_classifier_forward.14} parent=0 // pred_fallthru
    _
  %v37 = vld [vmem:[%s0] sm:$0xf]
  %v38 = vld [vmem:[%s0 + $0x4] sm:$0xf]
  %v39 = vld [vmem:[%s1] sm:$0xf]
  %v40 = vld [vmem:[%s1 + $0x4] sm:$0xf]
  %v41 = vld [vmem:[%s1 + $0x8] sm:$0xf]
  %v42 = vld [vmem:[%s1 + $0xc] sm:$0xf]
  %v43 = vld [vmem:[%s2] sm:$0x1]
  %v45 = vlaneseq
  %v46 = vshrl.u32 %v45, 7
  %v47 = vsub.s32 0, %v46
  %v48 = vrot.slane %v43, %v47
  %v52 = vunpack.c.l.b16 %v37
  %v53 = vunpack.c.l.b16 %v38
  %v54 = vpack.c.b16 %v53, %v52
  %v59 = vunpack.c.l.b16 %v39
  %v60 = vunpack.c.l.b16 %v40
  %v61 = vunpack.c.l.b16 %v41
  %v62 = vunpack.c.l.b16 %v42
  %v63 = vpack.c.b16 %v60, %v59
  %v64 = vpack.c.b16 %v62, %v61
  %vm67 = vcmask 261120
  %v69 = vsel %vm67, %v54, 0
  %71 = vmatprep.subr.bf16.mxu0 0
  %72 = vmatpush1.bf16.msra.mxu0 %v63
  %73 = vmatprep.subr.bf16.mxu0 0
  %74 = vmatpush1.bf16.msra.mxu0 %v64
  %75 = vmatprep.subr.bf16.mxu0 0
  %76 = vmatpush1.bf16.msra.mxu0 0
  %77 = vmatprep.subr.bf16.mxu0 0
  %78 = vmatpush1.bf16.msra.mxu0 0
  %79 = vmatprep.subr.bf16.mxu0 0
  %80 = vmatpush1.bf16.msra.mxu0 0
  %81 = vmatprep.subr.bf16.mxu0 0
  %82 = vmatpush1.bf16.msra.mxu0 0
  %83 = vmatprep.subr.bf16.mxu0 0
  %84 = vmatpush1.bf16.msra.mxu0 0
  %85 = vmatprep.subr.bf16.mxu0 0
  %86 = vmatpush1.bf16.msra.mxu0 0
  %87 = vmatprep.subr.bf16.mxu0 0
  %88 = vmatpush1.bf16.msra.mxu0 0
  %89 = vmatprep.subr.bf16.mxu0 0
  %90 = vmatpush1.bf16.msra.mxu0 0
  %91 = vmatprep.subr.bf16.mxu0 0
  %92 = vmatpush1.bf16.msra.mxu0 0
  %93 = vmatprep.subr.bf16.mxu0 0
  %94 = vmatpush1.bf16.msra.mxu0 0
  %95 = vmatprep.subr.bf16.mxu0 0
  %96 = vmatpush1.bf16.msra.mxu0 0
  %97 = vmatprep.subr.bf16.mxu0 0
  %98 = vmatpush1.bf16.msra.mxu0 0
  %99 = vmatprep.subr.bf16.mxu0 0
  %100 = vmatpush1.bf16.msra.mxu0 0
  %101 = vmatprep.subr.bf16.mxu0 0
  %102 = vmatpush1.bf16.msra.mxu0 0
  %103 = vmatprep.mubr.bf16.mxu0 0
  %104 = vmatmul.mubr.bf16.gmra.mrb[0].mxu0 %v69
  %v105 = vpop.f32.mrb[0].mxu0
  %v106 = vadd.f32 %v48, %v105
  %v107 = vpop.f32.mrb[0].mxu0
  %v108 = vpop.f32.mrb[0].mxu0
  %v109 = vadd.f32 %v48, %v108
  %v110 = vpop.f32.mrb[0].mxu0
  %111 = vdwg.mxu0
  %v112 = vmul.f32 %v106, %v106
  %v113 = vmul.f32 %v109, %v109
  %v114 = vmul.f32 %v106, %v112
  %v115 = vmul.f32 %v109, %v113
  %v116 = vmul.f32 %v114, 0.044715
  %v117 = vmul.f32 %v115, 0.044715
  %v118 = vadd.f32 %v106, %v116
  %v119 = vadd.f32 %v109, %v117
  %v120 = vmul.f32 %v118, 0.7978846
  %v121 = vmul.f32 %v119, 0.7978846
  %v122 = vtanh.pop %v120
  %v123 = vtanh.pop %v121
  %v124 = vadd.f32 %v122, 1.0
  %v125 = vadd.f32 %v123, 1.0
  %v126 = vmul.f32 %v124, 0.5
  %v127 = vmul.f32 %v125, 0.5
  %v128 = vmul.f32 %v106, %v126
  %v129 = vmul.f32 %v109, %v127
  %v130 = vld [vmem:[#allocation2] sm:$0xff]
  %v131 = vld [vmem:[#allocation2 + $0x8] sm:$0xff]
  %v132 = vpack.c.bf16 %v129, %v128
  %v133 = vld [vmem:[%s3] sm:$0xf]
  %v134 = vld [vmem:[%s3 + $0x4] sm:$0xf]
  %v135 = vld [vmem:[%s3 + $0x8] sm:$0xf]
  %v136 = vld [vmem:[%s3 + $0xc] sm:$0xf]
  %v137 = vld [vmem:[%s3 + $0x10] sm:$0xf]
  %v138 = vld [vmem:[%s3 + $0x14] sm:$0xf]
  %v139 = vld [vmem:[%s3 + $0x18] sm:$0xf]
  %v140 = vld [vmem:[%s3 + $0x1c] sm:$0xf]
  %v141 = vld [vmem:[%s3 + $0x20] sm:$0xf]
  %v142 = vld [vmem:[%s3 + $0x24] sm:$0xf]
  %v143 = vld [vmem:[%s3 + $0x28] sm:$0xf]
  %v144 = vld [vmem:[%s3 + $0x2c] sm:$0xf]
  %v145 = vld [vmem:[%s3 + $0x30] sm:$0xf]
  %v146 = vld [vmem:[%s3 + $0x34] sm:$0xf]
  %v147 = vld [vmem:[%s3 + $0x38] sm:$0xf]
  %v148 = vld [vmem:[%s3 + $0x3c] sm:$0xf]
  %v165 = vunpack.c.l.b16 %v133
  %v166 = vunpack.c.l.b16 %v134
  %v167 = vunpack.c.l.b16 %v135
  %v168 = vunpack.c.l.b16 %v136
  %v169 = vunpack.c.l.b16 %v137
  %v170 = vunpack.c.l.b16 %v138
  %v171 = vunpack.c.l.b16 %v139
  %v172 = vunpack.c.l.b16 %v140
  %v173 = vunpack.c.l.b16 %v141
  %v174 = vunpack.c.l.b16 %v142
  %v175 = vunpack.c.l.b16 %v143
  %v176 = vunpack.c.l.b16 %v144
  %v177 = vunpack.c.l.b16 %v145
  %v178 = vunpack.c.l.b16 %v146
  %v179 = vunpack.c.l.b16 %v147
  %v180 = vunpack.c.l.b16 %v148
  %v181 = vpack.c.b16 %v166, %v165
  %v182 = vpack.c.b16 %v168, %v167
  %v183 = vpack.c.b16 %v170, %v169
  %v184 = vpack.c.b16 %v172, %v171
  %v185 = vpack.c.b16 %v174, %v173
  %v186 = vpack.c.b16 %v176, %v175
  %v187 = vpack.c.b16 %v178, %v177
  %v188 = vpack.c.b16 %v180, %v179
  %197 = vmatprep.subr.bf16.mxu0 0
  %198 = vmatpush1.bf16.msra.mxu0 %v181
  %199 = vmatprep.subr.bf16.mxu0 0
  %200 = vmatpush1.bf16.msra.mxu0 %v182
  %201 = vmatprep.subr.bf16.mxu0 0
  %202 = vmatpush1.bf16.msra.mxu0 %v183
  %203 = vmatprep.subr.bf16.mxu0 0
  %204 = vmatpush1.bf16.msra.mxu0 %v184
  %205 = vmatprep.subr.bf16.mxu0 0
  %206 = vmatpush1.bf16.msra.mxu0 %v185
  %207 = vmatprep.subr.bf16.mxu0 0
  %208 = vmatpush1.bf16.msra.mxu0 %v186
  %209 = vmatprep.subr.bf16.mxu0 0
  %210 = vmatpush1.bf16.msra.mxu0 %v187
  %211 = vmatprep.subr.bf16.mxu0 0
  %212 = vmatpush1.bf16.msra.mxu0 %v188
  %213 = vmatprep.subr.bf16.mxu0 0
  %214 = vmatpush1.bf16.msra.mxu0 0
  %215 = vmatprep.subr.bf16.mxu0 0
  %216 = vmatpush1.bf16.msra.mxu0 0
  %217 = vmatprep.subr.bf16.mxu0 0
  %218 = vmatpush1.bf16.msra.mxu0 0
  %219 = vmatprep.subr.bf16.mxu0 0
  %220 = vmatpush1.bf16.msra.mxu0 0
  %221 = vmatprep.subr.bf16.mxu0 0
  %222 = vmatpush1.bf16.msra.mxu0 0
  %223 = vmatprep.subr.bf16.mxu0 0
  %224 = vmatpush1.bf16.msra.mxu0 0
  %225 = vmatprep.subr.bf16.mxu0 0
  %226 = vmatpush1.bf16.msra.mxu0 0
  %227 = vmatprep.subr.bf16.mxu0 0
  %228 = vmatpush1.bf16.msra.mxu0 0
  %229 = vmatprep.mubr.bf16.mxu0 0
  %230 = vmatmul.mubr.bf16.gmra.mrb[0].mxu0 %v132
  %v231 = vpop.f32.mrb[0].mxu0
  %v232 = vadd.f32 0.0, %v231
  %v233 = vpop.f32.mrb[0].mxu0
  %v234 = vpop.f32.mrb[0].mxu0
  %v235 = vadd.f32 0.0, %v234
  %v236 = vpop.f32.mrb[0].mxu0
  %237 = vdwg.mxu0
  %v238 = vadd.f32 %v130, %v232
  %v239 = vadd.f32 %v131, %v235
  %240 = vst.msk [vmem:[#allocation2] sm:$0xff] %vm67, %v238
  %241 = vst.msk [vmem:[#allocation2 + $0x8] sm:$0xff] %vm67, %v239
  // Predicated region
  $region38: #{bert_classifier_forward.14} parent=0 // pred_check
    %p242 = pneg %p30
  $region39: #{bert_classifier_forward.14} parent=0 // pred_check_branch
    %244 = sbr.rel (%p242) target = $region41
  $region40: #{bert_classifier_forward.14} parent=0 // pred_region
    %v245 = vld [vmem:[#allocation2] sm:$0xff]
    %v246 = vld [vmem:[#allocation2 + $0x8] sm:$0xff]
    %v247 = vld [vmem:[%s4] sm:$0x1]
    %v249 = vlaneseq
    %v250 = vshrl.u32 %v249, 7
    %v251 = vsub.s32 0, %v250
    %v252 = vrot.slane %v247, %v251
    %v254 = vadd.f32 %v245, %v252
    %v255 = vadd.f32 %v246, %v252
    %v256 = vld [vmem:[%s5] sm:$0xf]
    %v257 = vld [vmem:[%s5 + $0x4] sm:$0xf]
    %v258 = vunpack.c.l.bf16 %v256
    %v259 = vunpack.c.l.bf16 %v257
    %v260 = vadd.f32 %v254, %v258
    %v261 = vadd.f32 %v255, %v259
    %v262 = vsel %vm67, %v260, 0.0
    %263 = vadd.xlane.f32.xlu0 %v262
    %v264 = vpop.xlane.xlu0 %263
    %v265 = vsel %vm67, %v261, 0.0
    %266 = vadd.xlane.f32.xlu0 %v265
    %v267 = vpop.xlane.xlu0 %266
    %v268 = vrcp.pop 32.0
    %v269 = vmul.f32 %v264, %v268
    %v270 = vmul.f32 %v267, %v268
    %v271 = vsub.f32 %v260, %v269
    %v272 = vsub.f32 %v261, %v270
    %v273 = vmul.f32 %v271, %v271
    %v274 = vmul.f32 %v272, %v272
    %v275 = vsel %vm67, %v273, 0.0
    %276 = vadd.xlane.f32.xlu0 %v275
    %v277 = vpop.xlane.xlu0 %276
    %v278 = vsel %vm67, %v274, 0.0
    %279 = vadd.xlane.f32.xlu0 %v278
    %v280 = vpop.xlane.xlu0 %279
    %v281 = vmul.f32 %v277, %v268
    %v282 = vmul.f32 %v280, %v268
    %v283 = vadd.f32 %v281, 1e-12
    %v284 = vadd.f32 %v282, 1e-12
    %v285 = vrsqrt.pop %v283
    %v286 = vrsqrt.pop %v284
    %v287 = vmul.f32 %v271, %v285
    %v288 = vmul.f32 %v272, %v286
    %v289 = vld [vmem:[%s6] sm:$0x1]
    %v291 = vlaneseq
    %v292 = vshrl.u32 %v291, 7
    %v293 = vsub.s32 0, %v292
    %v294 = vrot.slane %v289, %v293
    %v296 = vmul.f32 %v287, %v294
    %v297 = vmul.f32 %v288, %v294
    %v298 = vld [vmem:[%s7] sm:$0x1]
    %v300 = vlaneseq
    %v301 = vshrl.u32 %v300, 7
    %v302 = vsub.s32 0, %v301
    %v303 = vrot.slane %v298, %v302
    %v305 = vadd.f32 %v296, %v303
    %v306 = vadd.f32 %v297, %v303
    %v307 = vpack.c.bf16 %v306, %v305
    %v309 = vunpack.c.l.b16 %v307
    %v310 = vunpack.c.h.b16 %v307
    %v311 = vpack.c.b16 %v309, %v309
    %v312 = vpack.c.b16 %v310, %v310
    %vm315 = vcmask 257024
    %316 = vst.msk [vmem:[%s8] sm:$0xf] %vm315, %v311
    %317 = vst.msk [vmem:[%s8 + $0x4] sm:$0xf] %vm315, %v312
  $region41: #{bert_classifier_forward.14} parent=0 // pred_fallthru
    _
  // Predicated region
  $region42: #{bert_classifier_forward.14} parent=0 // pred_check
    _
  $region43: #{bert_classifier_forward.14} parent=0 // pred_check_branch
    %319 = sbr.rel (0) target = $region45
  $region44: #{bert_classifier_forward.14} parent=0 // pred_region
    _
  $region45: #{bert_classifier_forward.14} parent=0 // pred_fallthru
    _
  // Predicated region
  $region46: #{bert_classifier_forward.14} parent=0 // pred_check
    _
  $region47: #{bert_classifier_forward.14} parent=0 // pred_check_branch
    %321 = sbr.rel (0) target = $region49
  $region48: #{bert_classifier_forward.14} parent=0 // pred_region
    _
  $region49: #{bert_classifier_forward.14} parent=0 // pred_fallthru
    _

</llo_original>
